<compile_context>
chip_gen: v7x
topology: tpu7x:2x2x1
jax: 0.10.0
libtpu: 0.0.40
codegen_flags: <defaults>
</compile_context>

<pallas_src>
import functools
import math

import jax
import jax.numpy as jnp
from jax.experimental import pallas as pl
from jax.experimental.pallas import tpu as pltpu

_LANE = 128


def _round_up(n, m):
    return ((n + m - 1) // m) * m


# --------------------------------------------------------------------------
# Fused kernel: in-kernel im2col -> conv matmuls -> running max-pool ->
# bias -> branch concat -> FC chain -> sigmoid.
# --------------------------------------------------------------------------
def _fused_kernel(x_ref, *refs, kernel_heights, num_fc, t_chunk):
    """refs = [w_0, b_0, ..., w_{nb-1}, b_{nb-1},
               fcw_0, fcb_0, ..., fcw_{nf-1}, fcb_{nf-1}, out_ref]"""
    o_ref = refs[-1]
    nb = len(kernel_heights)
    tb, seq_len, alpha = x_ref.shape

    feats = []
    for bi, kh in enumerate(kernel_heights):
        w = refs[2 * bi][...]            # (kh*alpha, F)  bf16
        bias = refs[2 * bi + 1][...]     # (1, F)         f32
        f = w.shape[1]
        t_total = seq_len - kh + 1

        branch_max = None
        # Chunk conv positions; global max-pool folds into a running max so the
        # (tb, chunk, F) activation stays bounded in VMEM.
        for t0 in range(0, t_total, t_chunk):
            tt = min(t_chunk, t_total - t0)
            # In-kernel im2col: kh sublane-shifted views of x, lane-concat.
            taps = [x_ref[:, pl.ds(t0 + i, tt), :] for i in range(kh)]
            xcol = taps[0] if kh == 1 else jnp.concatenate(taps, axis=-1)
            # One dense-K MXU matmul per chunk (f32 accumulation).
            part = jnp.dot(xcol.reshape(tb * tt, kh * alpha), w,
                           preferred_element_type=jnp.float32)      # (tb*tt, F)
            part = jnp.max(part.reshape(tb, tt, f), axis=1)         # (tb, F)
            branch_max = part if branch_max is None else jnp.maximum(
                branch_max, part)
        # Per-filter bias commutes with max-pool.
        feats.append(branch_max + bias)                              # (tb, F)

    net = feats[0] if nb == 1 else jnp.concatenate(feats, axis=-1)

    base = 2 * nb
    for j in range(num_fc):
        w = refs[base + 2 * j][...]        # (in, out_padded) bf16
        b = refs[base + 2 * j + 1][...]    # (1, out_padded)  f32
        net = jnp.dot(net.astype(jnp.bfloat16), w,
                      preferred_element_type=jnp.float32) + b

    # Lane-dense (multiple-of-128) full-block store.
    o_ref[...] = jax.nn.sigmoid(net)


def _pick_batch_tile(batch):
    """Batch tile: multiple of 8 when it enables a >1 'parallel' grid."""
    for tb in (128, 64, 32, 16, 8):
        if batch % tb == 0 and batch > tb:
            return tb
    return batch


def fused_forward(x, conv_ws, conv_bs, kernel_heights, fc_ws, fc_bs, *,
                  t_chunk=512):
    batch, seq_len, alpha = x.shape
    num_fc = len(fc_ws)
    out_dim = fc_ws[-1].shape[1]          # already padded to multiple of 128

    tb = _pick_batch_tile(batch)
    grid = (batch // tb,)

    in_specs = [pl.BlockSpec((tb, seq_len, alpha), lambda i: (i, 0, 0))]
    args = [x.astype(jnp.bfloat16)]
    for w, b in zip(conv_ws, conv_bs):
        k, f = w.shape
        in_specs.append(pl.BlockSpec((k, f), lambda i: (0, 0)))
        in_specs.append(pl.BlockSpec((1, f), lambda i: (0, 0)))
        args += [w.astype(jnp.bfloat16),
                 b.reshape(1, -1).astype(jnp.float32)]
    for w, b in zip(fc_ws, fc_bs):
        in_specs.append(pl.BlockSpec(w.shape, lambda i: (0, 0)))
        in_specs.append(pl.BlockSpec((1, w.shape[1]), lambda i: (0, 0)))
        args += [w.astype(jnp.bfloat16),
                 b.reshape(1, -1).astype(jnp.float32)]

    kernel = functools.partial(_fused_kernel,
                               kernel_heights=tuple(kernel_heights),
                               num_fc=num_fc,
                               t_chunk=t_chunk)
    return pl.pallas_call(
        kernel,
        out_shape=jax.ShapeDtypeStruct((batch, out_dim), jnp.float32),
        grid=grid,
        in_specs=in_specs,
        out_specs=pl.BlockSpec((tb, out_dim), lambda i: (i, 0)),
        compiler_params=pltpu.CompilerParams(
            dimension_semantics=("parallel",)),
    )(*args)


def _im2col(x, kh):
    """(B, L, A) -> (B, T, kh*A) with column order tap-major then alphabet."""
    _, seq_len, _ = x.shape
    t = seq_len - kh + 1
    cols = [x[:, i:i + t, :] for i in range(kh)]
    return jnp.concatenate(cols, axis=-1)


# --------------------------------------------------------------------------
# Model wrapper (parameter setup = glue, compute = fused Pallas kernel).
# --------------------------------------------------------------------------
class Model1Pallas:
    def __init__(self, terms_classes, params, kernels_tuple, filters_list, key):
        self.kernels_tuple = kernels_tuple
        self.filters = filters_list
        self.maxlen = params["MAXLEN"]
        self.fc_depth = params["FC_depth"]
        self.terms_classes = terms_classes
        self.terms_padded = max(_LANE, _round_up(terms_classes, _LANE))

        keys = iter(jax.random.split(
            key, 4 * (len(kernels_tuple) + self.fc_depth + 1)))

        # conv branches: stored as (KH, A, F); matmul form is (KH*A, F).
        self.conv_w, self.conv_b = [], []
        for (kh, kw), f in zip(kernels_tuple, filters_list):
            bound = 1.0 / math.sqrt(1 * kh * kw)   # PyTorch default init range
            self.conv_w.append(jax.random.uniform(next(keys), (kh, kw, f),
                                                  jnp.float32, -bound, bound))
            self.conv_b.append(jax.random.uniform(next(keys), (f,),
                                                  jnp.float32, -bound, bound))

        # linear layers: fc_layers (if any) followed by output_layer.
        # Weights stored (in_features, out_features) = nn.Linear.weight.T
        self.linears = []
        sum_f = sum(filters_list)
        if self.fc_depth > 0:
            for i in range(self.fc_depth):
                fan_in = sum_f if i == 0 else terms_classes
                bound = 1.0 / math.sqrt(fan_in)
                w = jax.random.uniform(next(keys), (fan_in, terms_classes),
                                       jnp.float32, -bound, bound)
                b = jax.random.uniform(next(keys), (terms_classes,),
                                       jnp.float32, -bound, bound)
                self.linears.append((w, b))
            out_in = terms_classes
        else:
            out_in = sum_f
        bound = 1.0 / math.sqrt(out_in)
        w = jax.random.uniform(next(keys), (out_in, terms_classes),
                               jnp.float32, -bound, bound)
        b = jax.random.uniform(next(keys), (terms_classes,),
                               jnp.float32, -bound, bound)
        self.linears.append((w, b))

        # Zero-padded FC parameters (lane-dense intermediates / output).
        # Padded rows/cols are zero, so the first `terms_classes` outputs are
        # mathematically identical to the unpadded chain.
        self.padded_linears = []
        for j, (w, b) in enumerate(self.linears):
            in_dim = w.shape[0] if j == 0 else self.terms_padded
            wp = jnp.zeros((in_dim, self.terms_padded), jnp.float32)
            wp = wp.at[:w.shape[0], :w.shape[1]].set(w)
            bp = jnp.zeros((self.terms_padded,), jnp.float32)
            bp = bp.at[:b.shape[0]].set(b)
            self.padded_linears.append((wp, bp))

    def __call__(self, x):
        _, _, alphabet = x.shape
        conv_ws, kernel_heights = [], []
        for (kh, kw), w in zip(self.kernels_tuple, self.conv_w):
            assert kw == alphabet, "conv kernel width must equal alphabet size"
            conv_ws.append(w.reshape(kh * kw, -1))       # (KH*A, F)
            kernel_heights.append(kh)
        fc_ws = [w for w, _ in self.padded_linears]
        fc_bs = [b for _, b in self.padded_linears]
        out = fused_forward(x, conv_ws, self.conv_b, kernel_heights,
                            fc_ws, fc_bs)
        return out[:, :self.terms_classes]

    # Pure-JAX f32 reference (for correctness checking only).
    def reference(self, x):
        nets = []
        for (kh, kw), w, b in zip(self.kernels_tuple, self.conv_w, self.conv_b):
            xc = _im2col(x, kh)                                   # (B, T, KH*A)
            conv = jnp.einsum("btk,kf->btf", xc, w.reshape(kh * kw, -1))
            nets.append(jnp.max(conv, axis=1) + b[None, :])
        net = nets[0] if len(nets) == 1 else jnp.concatenate(nets, axis=1)
        for w, b in self.linears:
            net = net @ w + b[None, :]
        return jax.nn.sigmoid(net)


if __name__ == "__main__":
    # Small, forward-consistent shapes (full-width kernels, width == alphabet).
    params_local_aa = {"MAXLEN": 32, "FC_depth": 1}
    kernels_tuple = ((4, 21), (8, 21))
    filters_list = [16, 32]
    terms_classes = 8
    B = 4

    key = jax.random.PRNGKey(0)
    k_x, k_p = jax.random.split(key)
    x = jax.random.normal(k_x, (B, params_local_aa["MAXLEN"], 21), jnp.float32)

    model = Model1Pallas(terms_classes, params_local_aa, kernels_tuple,
                         filters_list, k_p)

    out = jax.block_until_ready(model(x))
    assert out.shape == (B, terms_classes)
    assert bool(jnp.all((out >= 0.0) & (out <= 1.0)))

    # Compare against the f32 pure-JAX reference (bf16 matmuls -> loose tol).
    ref = jax.block_until_ready(model.reference(x))
    assert bool(jnp.max(jnp.abs(out - ref)) < 5e-2), "mismatch vs reference"

    print("KERNEL_OK")
</pallas_src>

<mosaic_0001>
module attributes {stable_mosaic.version = 11 : i64} {
  func.func @_fused_kernel(%arg0: i32, %arg1: memref<4x32x21xbf16, #tpu.memory_space<vmem>>, %arg2: memref<84x16xbf16, #tpu.memory_space<vmem>>, %arg3: memref<1x16xf32, #tpu.memory_space<vmem>>, %arg4: memref<168x32xbf16, #tpu.memory_space<vmem>>, %arg5: memref<1x32xf32, #tpu.memory_space<vmem>>, %arg6: memref<48x128xbf16, #tpu.memory_space<vmem>>, %arg7: memref<1x128xf32, #tpu.memory_space<vmem>>, %arg8: memref<128x128xbf16, #tpu.memory_space<vmem>>, %arg9: memref<1x128xf32, #tpu.memory_space<vmem>>, %arg10: memref<4x128xf32, #tpu.memory_space<vmem>>) attributes {dimension_semantics = [#tpu.dimension_semantics<parallel>], iteration_bounds = array<i64: 1>, scalar_prefetch = 0 : i64, scratch_operands = 0 : i64, tpu.core_type = #tpu.core_type<tc>, window_params = [{transform_indices = @transform_0, window_bounds = array<i64: 4, 32, 21>}, {pipeline_mode = #tpu.pipeline_mode<synchronous>, transform_indices = @transform_1, window_bounds = array<i64: 84, 16>}, {pipeline_mode = #tpu.pipeline_mode<synchronous>, transform_indices = @transform_2, window_bounds = array<i64: 1, 16>}, {pipeline_mode = #tpu.pipeline_mode<synchronous>, transform_indices = @transform_3, window_bounds = array<i64: 168, 32>}, {pipeline_mode = #tpu.pipeline_mode<synchronous>, transform_indices = @transform_4, window_bounds = array<i64: 1, 32>}, {pipeline_mode = #tpu.pipeline_mode<synchronous>, transform_indices = @transform_5, window_bounds = array<i64: 48, 128>}, {pipeline_mode = #tpu.pipeline_mode<synchronous>, transform_indices = @transform_6, window_bounds = array<i64: 1, 128>}, {pipeline_mode = #tpu.pipeline_mode<synchronous>, transform_indices = @transform_7, window_bounds = array<i64: 128, 128>}, {pipeline_mode = #tpu.pipeline_mode<synchronous>, transform_indices = @transform_8, window_bounds = array<i64: 1, 128>}, {transform_indices = @transform_9, window_bounds = array<i64: 4, 128>}]} {
    %c0 = arith.constant 0 : index
    %c0_0 = arith.constant 0 : index
    %0 = vector.load %arg2[%c0, %c0_0] : memref<84x16xbf16, #tpu.memory_space<vmem>>, vector<84x16xbf16>
    %c0_1 = arith.constant 0 : index
    %c0_2 = arith.constant 0 : index
    %1 = vector.load %arg3[%c0_1, %c0_2] : memref<1x16xf32, #tpu.memory_space<vmem>>, vector<1x16xf32>
    %c0_3 = arith.constant 0 : index
    %c0_4 = arith.constant 0 : index
    %c0_5 = arith.constant 0 : index
    %2 = vector.load %arg1[%c0_3, %c0_4, %c0_5] : memref<4x32x21xbf16, #tpu.memory_space<vmem>>, vector<4x29x21xbf16>
    %c0_6 = arith.constant 0 : index
    %c1 = arith.constant 1 : index
    %c0_7 = arith.constant 0 : index
    %3 = vector.load %arg1[%c0_6, %c1, %c0_7] : memref<4x32x21xbf16, #tpu.memory_space<vmem>>, vector<4x29x21xbf16>
    %c0_8 = arith.constant 0 : index
    %c2 = arith.constant 2 : index
    %c0_9 = arith.constant 0 : index
    %4 = vector.load %arg1[%c0_8, %c2, %c0_9] : memref<4x32x21xbf16, #tpu.memory_space<vmem>>, vector<4x29x21xbf16>
    %c0_10 = arith.constant 0 : index
    %c3 = arith.constant 3 : index
    %c0_11 = arith.constant 0 : index
    %5 = vector.load %arg1[%c0_10, %c3, %c0_11] : memref<4x32x21xbf16, #tpu.memory_space<vmem>>, vector<4x29x21xbf16>
    %6 = tpu.concatenate %2, %3, %4, %5 in 2 : vector<4x29x21xbf16>, vector<4x29x21xbf16>, vector<4x29x21xbf16>, vector<4x29x21xbf16> -> vector<4x29x84xbf16>
    %7 = vector.shape_cast %6 : vector<4x29x84xbf16> to vector<116x84xbf16>
    %cst = arith.constant dense<0.000000e+00> : vector<116x16xf32>
    %8 = tpu.matmul %7, %0, %cst {dimension_numbers = #tpu.dot_dimension_numbers<[1], [0], [0], [1], [0, 0, 1, 1], [], []>} : vector<116x84xbf16>, vector<84x16xbf16>, vector<116x16xf32> -> vector<116x16xf32>
    %9 = vector.shape_cast %8 : vector<116x16xf32> to vector<4x29x16xf32>
    %cst_12 = arith.constant dense<0xFF800000> : vector<4x16xf32>
    %10 = vector.multi_reduction <maximumf>, %9, %cst_12 [1] : vector<4x29x16xf32> to vector<4x16xf32>
    %11 = vector.broadcast %1 : vector<1x16xf32> to vector<4x16xf32>
    %12 = arith.addf %10, %11 : vector<4x16xf32>
    %c0_13 = arith.constant 0 : index
    %c0_14 = arith.constant 0 : index
    %13 = vector.load %arg4[%c0_13, %c0_14] : memref<168x32xbf16, #tpu.memory_space<vmem>>, vector<168x32xbf16>
    %c0_15 = arith.constant 0 : index
    %c0_16 = arith.constant 0 : index
    %14 = vector.load %arg5[%c0_15, %c0_16] : memref<1x32xf32, #tpu.memory_space<vmem>>, vector<1x32xf32>
    %c0_17 = arith.constant 0 : index
    %c0_18 = arith.constant 0 : index
    %c0_19 = arith.constant 0 : index
    %15 = vector.load %arg1[%c0_17, %c0_18, %c0_19] : memref<4x32x21xbf16, #tpu.memory_space<vmem>>, vector<4x25x21xbf16>
    %c0_20 = arith.constant 0 : index
    %c1_21 = arith.constant 1 : index
    %c0_22 = arith.constant 0 : index
    %16 = vector.load %arg1[%c0_20, %c1_21, %c0_22] : memref<4x32x21xbf16, #tpu.memory_space<vmem>>, vector<4x25x21xbf16>
    %c0_23 = arith.constant 0 : index
    %c2_24 = arith.constant 2 : index
    %c0_25 = arith.constant 0 : index
    %17 = vector.load %arg1[%c0_23, %c2_24, %c0_25] : memref<4x32x21xbf16, #tpu.memory_space<vmem>>, vector<4x25x21xbf16>
    %c0_26 = arith.constant 0 : index
    %c3_27 = arith.constant 3 : index
    %c0_28 = arith.constant 0 : index
    %18 = vector.load %arg1[%c0_26, %c3_27, %c0_28] : memref<4x32x21xbf16, #tpu.memory_space<vmem>>, vector<4x25x21xbf16>
    %c0_29 = arith.constant 0 : index
    %c4 = arith.constant 4 : index
    %c0_30 = arith.constant 0 : index
    %19 = vector.load %arg1[%c0_29, %c4, %c0_30] : memref<4x32x21xbf16, #tpu.memory_space<vmem>>, vector<4x25x21xbf16>
    %c0_31 = arith.constant 0 : index
    %c5 = arith.constant 5 : index
    %c0_32 = arith.constant 0 : index
    %20 = vector.load %arg1[%c0_31, %c5, %c0_32] : memref<4x32x21xbf16, #tpu.memory_space<vmem>>, vector<4x25x21xbf16>
    %c0_33 = arith.constant 0 : index
    %c6 = arith.constant 6 : index
    %c0_34 = arith.constant 0 : index
    %21 = vector.load %arg1[%c0_33, %c6, %c0_34] : memref<4x32x21xbf16, #tpu.memory_space<vmem>>, vector<4x25x21xbf16>
    %c0_35 = arith.constant 0 : index
    %c7 = arith.constant 7 : index
    %c0_36 = arith.constant 0 : index
    %22 = vector.load %arg1[%c0_35, %c7, %c0_36] : memref<4x32x21xbf16, #tpu.memory_space<vmem>>, vector<4x25x21xbf16>
    %23 = tpu.concatenate %15, %16, %17, %18, %19, %20, %21, %22 in 2 : vector<4x25x21xbf16>, vector<4x25x21xbf16>, vector<4x25x21xbf16>, vector<4x25x21xbf16>, vector<4x25x21xbf16>, vector<4x25x21xbf16>, vector<4x25x21xbf16>, vector<4x25x21xbf16> -> vector<4x25x168xbf16>
    %24 = vector.shape_cast %23 : vector<4x25x168xbf16> to vector<100x168xbf16>
    %cst_37 = arith.constant dense<0.000000e+00> : vector<100x32xf32>
    %25 = tpu.matmul %24, %13, %cst_37 {dimension_numbers = #tpu.dot_dimension_numbers<[1], [0], [0], [1], [0, 0, 1, 1], [], []>} : vector<100x168xbf16>, vector<168x32xbf16>, vector<100x32xf32> -> vector<100x32xf32>
    %26 = vector.shape_cast %25 : vector<100x32xf32> to vector<4x25x32xf32>
    %cst_38 = arith.constant dense<0xFF800000> : vector<4x32xf32>
    %27 = vector.multi_reduction <maximumf>, %26, %cst_38 [1] : vector<4x25x32xf32> to vector<4x32xf32>
    %28 = vector.broadcast %14 : vector<1x32xf32> to vector<4x32xf32>
    %29 = arith.addf %27, %28 : vector<4x32xf32>
    %30 = tpu.concatenate %12, %29 in 1 : vector<4x16xf32>, vector<4x32xf32> -> vector<4x48xf32>
    %c0_39 = arith.constant 0 : index
    %c0_40 = arith.constant 0 : index
    %31 = vector.load %arg6[%c0_39, %c0_40] : memref<48x128xbf16, #tpu.memory_space<vmem>>, vector<48x128xbf16>
    %c0_41 = arith.constant 0 : index
    %c0_42 = arith.constant 0 : index
    %32 = vector.load %arg7[%c0_41, %c0_42] : memref<1x128xf32, #tpu.memory_space<vmem>>, vector<1x128xf32>
    %33 = arith.truncf %30 : vector<4x48xf32> to vector<4x48xbf16>
    %cst_43 = arith.constant dense<0.000000e+00> : vector<4x128xf32>
    %34 = tpu.matmul %33, %31, %cst_43 {dimension_numbers = #tpu.dot_dimension_numbers<[1], [0], [0], [1], [0, 0, 1, 1], [], []>} : vector<4x48xbf16>, vector<48x128xbf16>, vector<4x128xf32> -> vector<4x128xf32>
    %35 = vector.broadcast %32 : vector<1x128xf32> to vector<4x128xf32>
    %36 = arith.addf %34, %35 : vector<4x128xf32>
    %c0_44 = arith.constant 0 : index
    %c0_45 = arith.constant 0 : index
    %37 = vector.load %arg8[%c0_44, %c0_45] : memref<128x128xbf16, #tpu.memory_space<vmem>>, vector<128x128xbf16>
    %c0_46 = arith.constant 0 : index
    %c0_47 = arith.constant 0 : index
    %38 = vector.load %arg9[%c0_46, %c0_47] : memref<1x128xf32, #tpu.memory_space<vmem>>, vector<1x128xf32>
    %39 = arith.truncf %36 : vector<4x128xf32> to vector<4x128xbf16>
    %cst_48 = arith.constant dense<0.000000e+00> : vector<4x128xf32>
    %40 = tpu.matmul %39, %37, %cst_48 {dimension_numbers = #tpu.dot_dimension_numbers<[1], [0], [0], [1], [0, 0, 1, 1], [], []>} : vector<4x128xbf16>, vector<128x128xbf16>, vector<4x128xf32> -> vector<4x128xf32>
    %41 = vector.broadcast %38 : vector<1x128xf32> to vector<4x128xf32>
    %42 = arith.addf %40, %41 : vector<4x128xf32>
    %43 = arith.negf %42 : vector<4x128xf32>
    %44 = math.exp %43 : vector<4x128xf32>
    %cst_49 = arith.constant 1.000000e+00 : f32
    %45 = vector.broadcast %cst_49 : f32 to vector<4x128xf32>
    %46 = arith.addf %45, %44 : vector<4x128xf32>
    %47 = arith.divf %45, %46 : vector<4x128xf32>
    %c0_50 = arith.constant 0 : index
    %c0_51 = arith.constant 0 : index
    %48 = vector.load %arg10[%c0_50, %c0_51] : memref<4x128xf32, #tpu.memory_space<vmem>>, vector<4x128xf32>
    tpu.vector_store %arg10[%c0_50, %c0_51], %47 {strides = array<i32>} : memref<4x128xf32, #tpu.memory_space<vmem>>, vector<4x128xf32>,
    return
  }
  func.func @transform_0(%arg0: i32) -> (i32, i32, i32) {
    %c0_i32 = arith.constant 0 : i32
    %c0_i32_0 = arith.constant 0 : i32
    %c0_i32_1 = arith.constant 0 : i32
    return %arg0, %c0_i32, %c0_i32_0 : i32, i32, i32
  }
  func.func @transform_1(%arg0: i32) -> (i32, i32) {
    %c0_i32 = arith.constant 0 : i32
    %c0_i32_0 = arith.constant 0 : i32
    %c0_i32_1 = arith.constant 0 : i32
    return %c0_i32, %c0_i32_0 : i32, i32
  }
  func.func @transform_2(%arg0: i32) -> (i32, i32) {
    %c0_i32 = arith.constant 0 : i32
    %c0_i32_0 = arith.constant 0 : i32
    %c0_i32_1 = arith.constant 0 : i32
    return %c0_i32, %c0_i32_0 : i32, i32
  }
  func.func @transform_3(%arg0: i32) -> (i32, i32) {
    %c0_i32 = arith.constant 0 : i32
    %c0_i32_0 = arith.constant 0 : i32
    %c0_i32_1 = arith.constant 0 : i32
    return %c0_i32, %c0_i32_0 : i32, i32
  }
  func.func @transform_4(%arg0: i32) -> (i32, i32) {
    %c0_i32 = arith.constant 0 : i32
    %c0_i32_0 = arith.constant 0 : i32
    %c0_i32_1 = arith.constant 0 : i32
    return %c0_i32, %c0_i32_0 : i32, i32
  }
  func.func @transform_5(%arg0: i32) -> (i32, i32) {
    %c0_i32 = arith.constant 0 : i32
    %c0_i32_0 = arith.constant 0 : i32
    %c0_i32_1 = arith.constant 0 : i32
    return %c0_i32, %c0_i32_0 : i32, i32
  }
  func.func @transform_6(%arg0: i32) -> (i32, i32) {
    %c0_i32 = arith.constant 0 : i32
    %c0_i32_0 = arith.constant 0 : i32
    %c0_i32_1 = arith.constant 0 : i32
    return %c0_i32, %c0_i32_0 : i32, i32
  }
  func.func @transform_7(%arg0: i32) -> (i32, i32) {
    %c0_i32 = arith.constant 0 : i32
    %c0_i32_0 = arith.constant 0 : i32
    %c0_i32_1 = arith.constant 0 : i32
    return %c0_i32, %c0_i32_0 : i32, i32
  }
  func.func @transform_8(%arg0: i32) -> (i32, i32) {
    %c0_i32 = arith.constant 0 : i32
    %c0_i32_0 = arith.constant 0 : i32
    %c0_i32_1 = arith.constant 0 : i32
    return %c0_i32, %c0_i32_0 : i32, i32
  }
  func.func @transform_9(%arg0: i32) -> (i32, i32) {
    %c0_i32 = arith.constant 0 : i32
    %c0_i32_0 = arith.constant 0 : i32
    return %arg0, %c0_i32 : i32, i32
  }
}

</mosaic_0001>

<llo_original>
// kernel: tpu_custom_call.1
$region0: #{tpu_custom_call.1}
  #allocation0 [shape = 'u32[]', space=smem, size = 0x4, offset = 0x4, fixed_abs, tag = 'smem constant byte address 0x4 - core index']
  #allocation1 [shape = 'u32[144,128]{1,0:T(1,128)}', space=vmem, size = 0x12000, scoped, tag = 'internal scratch']
  %s0 = inlined_call_operand.vmem [shape: bf16[4,32,21], index: 0, kind: input, shape index: {}]
  %s1 = inlined_call_operand.vmem [shape: bf16[84,16], index: 1, kind: input, shape index: {}]
  %s2 = inlined_call_operand.vmem [shape: f32[1,16], index: 2, kind: input, shape index: {}]
  %s3 = inlined_call_operand.vmem [shape: bf16[168,32], index: 3, kind: input, shape index: {}]
  %s4 = inlined_call_operand.vmem [shape: f32[1,32], index: 4, kind: input, shape index: {}]
  %s5 = inlined_call_operand.vmem [shape: bf16[48,128], index: 5, kind: input, shape index: {}]
  %s6 = inlined_call_operand.vmem [shape: f32[1,128], index: 6, kind: input, shape index: {}]
  %s7 = inlined_call_operand.vmem [shape: bf16[128,128], index: 7, kind: input, shape index: {}]
  %s8 = inlined_call_operand.vmem [shape: f32[1,128], index: 8, kind: input, shape index: {}]
  %s9 = inlined_call_operand.hbm [shape: f32[4,128], index: 9, kind: output, shape index: {}]
  %s10 = sld [smem:[#allocation0]]
  $region46: #{tpu_custom_call.1} parent=0
    _
  %s12 = ssub.s32 1, %s10
  %s13 = scalar_select 0, %s12, %s10
  $region1: #{tpu_custom_call.1} parent=0
    #allocation2 [shape = 'u8[2048]{0}', space=vmem, size = 0x800, scoped, tag = 'output window, operand 0, single buffered']
    #allocation3 [shape = 's32[1]{0}', space=sflag, size = 0x4, scoped, tag = 'scoped memory for tpu_custom_call.1']
    %14 = vsyncpa [#allocation3], 0
    // Predicated region
    $region2: #{tpu_custom_call.1} parent=1 // pred_check
      _
    $region3: #{tpu_custom_call.1} parent=1 // pred_check_branch
      %16 = sbr.rel (0) target = $region5
    $region4: #{tpu_custom_call.1} parent=1 // pred_region
      _
    $region5: #{tpu_custom_call.1} parent=1 // pred_fallthru
      _
    // Predicated region
    $region6: #{tpu_custom_call.1} parent=1 // pred_check
      _
    $region7: #{tpu_custom_call.1} parent=1 // pred_check_branch
      %18 = sbr.rel (0) target = $region9
    $region8: #{tpu_custom_call.1} parent=1 // pred_region
      _
    $region9: #{tpu_custom_call.1} parent=1 // pred_fallthru
      _
    // Predicated region
    $region10: #{tpu_custom_call.1} parent=1 // pred_check
      _
    $region11: #{tpu_custom_call.1} parent=1 // pred_check_branch
      %20 = sbr.rel (0) target = $region13
    $region12: #{tpu_custom_call.1} parent=1 // pred_region
      _
    $region13: #{tpu_custom_call.1} parent=1 // pred_fallthru
      _
    // Predicated region
    $region14: #{tpu_custom_call.1} parent=1 // pred_check
      _
    $region15: #{tpu_custom_call.1} parent=1 // pred_check_branch
      %22 = sbr.rel (0) target = $region17
    $region16: #{tpu_custom_call.1} parent=1 // pred_region
      _
    $region17: #{tpu_custom_call.1} parent=1 // pred_fallthru
      _
    // Predicated region
    $region18: #{tpu_custom_call.1} parent=1 // pred_check
      _
    $region19: #{tpu_custom_call.1} parent=1 // pred_check_branch
      %24 = sbr.rel (0) target = $region21
    $region20: #{tpu_custom_call.1} parent=1 // pred_region
      _
    $region21: #{tpu_custom_call.1} parent=1 // pred_fallthru
      _
    // Predicated region
    $region22: #{tpu_custom_call.1} parent=1 // pred_check
      _
    $region23: #{tpu_custom_call.1} parent=1 // pred_check_branch
      %26 = sbr.rel (0) target = $region25
    $region24: #{tpu_custom_call.1} parent=1 // pred_region
      _
    $region25: #{tpu_custom_call.1} parent=1 // pred_fallthru
      _
    // Predicated region
    $region26: #{tpu_custom_call.1} parent=1 // pred_check
      _
    $region27: #{tpu_custom_call.1} parent=1 // pred_check_branch
      %28 = sbr.rel (0) target = $region29
    $region28: #{tpu_custom_call.1} parent=1 // pred_region
      _
    $region29: #{tpu_custom_call.1} parent=1 // pred_fallthru
      _
    // Predicated region
    $region30: #{tpu_custom_call.1} parent=1 // pred_check
      _
    $region31: #{tpu_custom_call.1} parent=1 // pred_check_branch
      %30 = sbr.rel (0) target = $region33
    $region32: #{tpu_custom_call.1} parent=1 // pred_region
      _
    $region33: #{tpu_custom_call.1} parent=1 // pred_fallthru
      _
    // Predicated region
    $region34: #{tpu_custom_call.1} parent=1 // pred_check
      _
    $region35: #{tpu_custom_call.1} parent=1 // pred_check_branch
      %32 = sbr.rel (0) target = $region37
    $region36: #{tpu_custom_call.1} parent=1 // pred_region
      _
    $region37: #{tpu_custom_call.1} parent=1 // pred_fallthru
      _
    %v34 = vld [vmem:[%s1] sm:$0xf]
    %v35 = vld [vmem:[%s1 + $0x4] sm:$0xf]
    %v36 = vld [vmem:[%s1 + $0x8] sm:$0xf]
    %v37 = vld [vmem:[%s1 + $0xc] sm:$0xf]
    %v38 = vld [vmem:[%s1 + $0x10] sm:$0xf]
    %v39 = vld [vmem:[%s1 + $0x14] sm:$0xf]
    %v40 = vld [vmem:[%s1 + $0x18] sm:$0xf]
    %v41 = vld [vmem:[%s1 + $0x1c] sm:$0xf]
    %v42 = vld [vmem:[%s1 + $0x20] sm:$0xf]
    %v43 = vld [vmem:[%s1 + $0x24] sm:$0xf]
    %v44 = vld [vmem:[%s1 + $0x28] sm:$0x3]
    %v45 = vld [vmem:[%s2] sm:$0x1]
    %v46 = vld [vmem:[%s0] sm:$0xf]
    %v47 = vld [vmem:[%s0 + $0x4] sm:$0xf]
    %v48 = vld [vmem:[%s0 + $0x8] sm:$0xf]
    %v49 = vld [vmem:[%s0 + $0xc] sm:$0x7]
    %v50 = vld [vmem:[%s0 + $0x10] sm:$0xf]
    %v51 = vld [vmem:[%s0 + $0x14] sm:$0xf]
    %v52 = vld [vmem:[%s0 + $0x18] sm:$0xf]
    %v53 = vld [vmem:[%s0 + $0x1c] sm:$0x7]
    %v54 = vld [vmem:[%s0 + $0x20] sm:$0xf]
    %v55 = vld [vmem:[%s0 + $0x24] sm:$0xf]
    %v56 = vld [vmem:[%s0 + $0x28] sm:$0xf]
    %v57 = vld [vmem:[%s0 + $0x2c] sm:$0x7]
    %v58 = vld [vmem:[%s0 + $0x30] sm:$0xf]
    %v59 = vld [vmem:[%s0 + $0x34] sm:$0xf]
    %v60 = vld [vmem:[%s0 + $0x38] sm:$0xf]
    %v61 = vld [vmem:[%s0 + $0x3c] sm:$0x7]
    %v62 = vld [vmem:[%s0] sm:$0xe]
    %v63 = vld [vmem:[%s0 + $0xc] sm:$0xf]
    %v64 = vld [vmem:[%s0 + $0x10] sm:$0xe]
    %v65 = vld [vmem:[%s0 + $0x1c] sm:$0xf]
    %v66 = vld [vmem:[%s0 + $0x20] sm:$0xe]
    %v67 = vld [vmem:[%s0 + $0x2c] sm:$0xf]
    %v68 = vld [vmem:[%s0 + $0x30] sm:$0xe]
    %v69 = vld [vmem:[%s0 + $0x3c] sm:$0xf]
    %v86 = vunpack.c.l.b16 %v46
    %v87 = vunpack.c.l.b16 %v47
    %v88 = vunpack.c.l.b16 %v48
    %v89 = vunpack.c.l.b16 %v49
    %v90 = vunpack.c.l.b16 %v50
    %v91 = vunpack.c.l.b16 %v51
    %v92 = vunpack.c.l.b16 %v52
    %v93 = vunpack.c.l.b16 %v53
    %v94 = vunpack.c.l.b16 %v54
    %v95 = vunpack.c.l.b16 %v55
    %v96 = vunpack.c.l.b16 %v56
    %v97 = vunpack.c.l.b16 %v57
    %v98 = vunpack.c.l.b16 %v58
    %v99 = vunpack.c.l.b16 %v59
    %v100 = vunpack.c.l.b16 %v60
    %v101 = vunpack.c.l.b16 %v61
    %v102 = vpack.c.b16 %v87, %v86
    %v103 = vpack.c.b16 %v89, %v88
    %v104 = vpack.c.b16 %v91, %v90
    %v105 = vpack.c.b16 %v93, %v92
    %v106 = vpack.c.b16 %v95, %v94
    %v107 = vpack.c.b16 %v97, %v96
    %v108 = vpack.c.b16 %v99, %v98
    %v109 = vpack.c.b16 %v101, %v100
    %vm110 = vsmask.f32 7424
    %v112 = vshrl.u32 %v102, 16
    %v114 = vshll.u32 %v102, 16
    %v116 = vrot.slane %v114, 1
    %v117 = vor.u32 %v112, %v116
    %v119 = vshll.u32 %v103, 16
    %v121 = vrot.slane %v119, 1
    %v122 = vsel %vm110, %v117, %v121
    %v123 = vshrl.u32 %v103, 16
    %v125 = vor.u32 %v123, %v121
    %v127 = vshrl.u32 %v104, 16
    %v129 = vshll.u32 %v104, 16
    %v131 = vrot.slane %v129, 1
    %v132 = vor.u32 %v127, %v131
    %v134 = vshll.u32 %v105, 16
    %v136 = vrot.slane %v134, 1
    %v137 = vsel %vm110, %v132, %v136
    %v138 = vshrl.u32 %v105, 16
    %v140 = vor.u32 %v138, %v136
    %v142 = vshrl.u32 %v106, 16
    %v144 = vshll.u32 %v106, 16
    %v146 = vrot.slane %v144, 1
    %v147 = vor.u32 %v142, %v146
    %v149 = vshll.u32 %v107, 16
    %v151 = vrot.slane %v149, 1
    %v152 = vsel %vm110, %v147, %v151
    %v153 = vshrl.u32 %v107, 16
    %v155 = vor.u32 %v153, %v151
    %v157 = vshrl.u32 %v108, 16
    %v159 = vshll.u32 %v108, 16
    %v161 = vrot.slane %v159, 1
    %v162 = vor.u32 %v157, %v161
    %v164 = vshll.u32 %v109, 16
    %v166 = vrot.slane %v164, 1
    %v167 = vsel %vm110, %v162, %v166
    %v168 = vshrl.u32 %v109, 16
    %v170 = vor.u32 %v168, %v166
    %171 = vrot.lane.b32.xlu0 %v122, 21
    %v172 = vpop.permute.xlu0 %171
    %173 = vrot.lane.b32.xlu0 %v125, 21
    %v174 = vpop.permute.xlu0 %173
    %175 = vrot.lane.b32.xlu0 %v137, 21
    %v176 = vpop.permute.xlu0 %175
    %177 = vrot.lane.b32.xlu0 %v140, 21
    %v178 = vpop.permute.xlu0 %177
    %179 = vrot.lane.b32.xlu0 %v152, 21
    %v180 = vpop.permute.xlu0 %179
    %181 = vrot.lane.b32.xlu0 %v155, 21
    %v182 = vpop.permute.xlu0 %181
    %183 = vrot.lane.b32.xlu0 %v167, 21
    %v184 = vpop.permute.xlu0 %183
    %185 = vrot.lane.b32.xlu0 %v170, 21
    %v186 = vpop.permute.xlu0 %185
    %v195 = vunpack.c.l.b16 %v62
    %v196 = vunpack.c.l.b16 %v63
    %v197 = vunpack.c.l.b16 %v64
    %v198 = vunpack.c.l.b16 %v65
    %v199 = vunpack.c.l.b16 %v66
    %v200 = vunpack.c.l.b16 %v67
    %v201 = vunpack.c.l.b16 %v68
    %v202 = vunpack.c.l.b16 %v69
    %v203 = vpack.c.b16 %v87, %v195
    %v204 = vpack.c.b16 %v196, %v88
    %v205 = vpack.c.b16 %v91, %v197
    %v206 = vpack.c.b16 %v198, %v92
    %v207 = vpack.c.b16 %v95, %v199
    %v208 = vpack.c.b16 %v200, %v96
    %v209 = vpack.c.b16 %v99, %v201
    %v210 = vpack.c.b16 %v202, %v100
    %vm211 = vcmask 1046528
    %v212 = vrot.slane %v203, 1
    %v213 = vrot.slane %v204, 1
    %v214 = vsel %vm211, %v212, %v213
    %v215 = vrot.slane %v205, 1
    %v216 = vrot.slane %v206, 1
    %v217 = vsel %vm211, %v215, %v216
    %v218 = vrot.slane %v207, 1
    %v219 = vrot.slane %v208, 1
    %v220 = vsel %vm211, %v218, %v219
    %v221 = vrot.slane %v209, 1
    %v222 = vrot.slane %v210, 1
    %v223 = vsel %vm211, %v221, %v222
    %224 = vrot.lane.b32.xlu0 %v214, 42
    %v225 = vpop.permute.xlu0 %224
    %226 = vrot.lane.b32.xlu0 %v213, 42
    %v227 = vpop.permute.xlu0 %226
    %228 = vrot.lane.b32.xlu0 %v217, 42
    %v229 = vpop.permute.xlu0 %228
    %230 = vrot.lane.b32.xlu0 %v216, 42
    %v231 = vpop.permute.xlu0 %230
    %232 = vrot.lane.b32.xlu0 %v220, 42
    %v233 = vpop.permute.xlu0 %232
    %234 = vrot.lane.b32.xlu0 %v219, 42
    %v235 = vpop.permute.xlu0 %234
    %236 = vrot.lane.b32.xlu0 %v223, 42
    %v237 = vpop.permute.xlu0 %236
    %238 = vrot.lane.b32.xlu0 %v222, 42
    %v239 = vpop.permute.xlu0 %238
    %vm240 = vsmask.f32 6400
    %v242 = vshrl.u32 %v203, 16
    %v244 = vrot.slane %v242, 1
    %v245 = vshll.u32 %v203, 16
    %v247 = vrot.slane %v245, 2
    %v248 = vor.u32 %v244, %v247
    %v250 = vshrl.u32 %v204, 16
    %v252 = vrot.slane %v250, 1
    %v253 = vshll.u32 %v204, 16
    %v255 = vrot.slane %v253, 2
    %v256 = vor.u32 %v252, %v255
    %v257 = vsel %vm240, %v248, %v256
    %v259 = vshrl.u32 %v205, 16
    %v261 = vrot.slane %v259, 1
    %v262 = vshll.u32 %v205, 16
    %v264 = vrot.slane %v262, 2
    %v265 = vor.u32 %v261, %v264
    %v267 = vshrl.u32 %v206, 16
    %v269 = vrot.slane %v267, 1
    %v270 = vshll.u32 %v206, 16
    %v272 = vrot.slane %v270, 2
    %v273 = vor.u32 %v269, %v272
    %v274 = vsel %vm240, %v265, %v273
    %v276 = vshrl.u32 %v207, 16
    %v278 = vrot.slane %v276, 1
    %v279 = vshll.u32 %v207, 16
    %v281 = vrot.slane %v279, 2
    %v282 = vor.u32 %v278, %v281
    %v284 = vshrl.u32 %v208, 16
    %v286 = vrot.slane %v284, 1
    %v287 = vshll.u32 %v208, 16
    %v289 = vrot.slane %v287, 2
    %v290 = vor.u32 %v286, %v289
    %v291 = vsel %vm240, %v282, %v290
    %v293 = vshrl.u32 %v209, 16
    %v295 = vrot.slane %v293, 1
    %v296 = vshll.u32 %v209, 16
    %v298 = vrot.slane %v296, 2
    %v299 = vor.u32 %v295, %v298
    %v301 = vshrl.u32 %v210, 16
    %v303 = vrot.slane %v301, 1
    %v304 = vshll.u32 %v210, 16
    %v306 = vrot.slane %v304, 2
    %v307 = vor.u32 %v303, %v306
    %v308 = vsel %vm240, %v299, %v307
    %309 = vrot.lane.b32.xlu0 %v257, 63
    %v310 = vpop.permute.xlu0 %309
    %311 = vrot.lane.b32.xlu0 %v256, 63
    %v312 = vpop.permute.xlu0 %311
    %313 = vrot.lane.b32.xlu0 %v274, 63
    %v314 = vpop.permute.xlu0 %313
    %315 = vrot.lane.b32.xlu0 %v273, 63
    %v316 = vpop.permute.xlu0 %315
    %317 = vrot.lane.b32.xlu0 %v291, 63
    %v318 = vpop.permute.xlu0 %317
    %319 = vrot.lane.b32.xlu0 %v290, 63
    %v320 = vpop.permute.xlu0 %319
    %321 = vrot.lane.b32.xlu0 %v308, 63
    %v322 = vpop.permute.xlu0 %321
    %323 = vrot.lane.b32.xlu0 %v307, 63
    %v324 = vpop.permute.xlu0 %323
    %vm325 = vcmask 171008
    %v327 = vsel %vm325, %v102, %v172
    %v329 = vsel %vm325, %v103, %v174
    %v331 = vsel %vm325, %v104, %v176
    %v333 = vsel %vm325, %v105, %v178
    %v335 = vsel %vm325, %v106, %v180
    %v337 = vsel %vm325, %v107, %v182
    %v339 = vsel %vm325, %v108, %v184
    %v341 = vsel %vm325, %v109, %v186
    %vm342 = vcmask 343040
    %v344 = vsel %vm342, %v327, %v225
    %v346 = vsel %vm342, %v329, %v227
    %v348 = vsel %vm342, %v331, %v229
    %v350 = vsel %vm342, %v333, %v231
    %v352 = vsel %vm342, %v335, %v233
    %v354 = vsel %vm342, %v337, %v235
    %v356 = vsel %vm342, %v339, %v237
    %v358 = vsel %vm342, %v341, %v239
    %vm359 = vcmask 515072
    %v361 = vsel %vm359, %v344, %v310
    %v363 = vsel %vm359, %v346, %v312
    %v365 = vsel %vm359, %v348, %v314
    %v367 = vsel %vm359, %v350, %v316
    %v369 = vsel %vm359, %v352, %v318
    %v371 = vsel %vm359, %v354, %v320
    %v373 = vsel %vm359, %v356, %v322
    %v375 = vsel %vm359, %v358, %v324
    %v384 = vcombine.high %v361, %v361
    %v386 = vunpack.c.l.s4 1966171168
    %v387 = vunpack.c.0.s8 %v386
    %v388 = vlaneseq
    %v389 = vshrl.u32 %v388, 7
    %v390 = vsub.s32 %v387, %v389
    %v391 = vrot.slane %v361, %v390
    %v393 = vunpack.c.l.s4 1966171168
    %v394 = vunpack.c.0.s8 %v393
    %v395 = vlaneseq
    %v396 = vshrl.u32 %v395, 7
    %v397 = vsub.s32 %v394, %v396
    %v398 = vrot.slane %v384, %v397
    %v399 = vcombine.high %v391, %v391
    %v400 = vcombine.high %v398, %v398
    %v402 = vunpack.c.l.s4 1966171168
    %v403 = vunpack.c.0.s8 %v402
    %v404 = vlaneseq
    %v405 = vshrl.u32 %v404, 7
    %v406 = vsub.s32 %v403, %v405
    %v407 = vrot.slane %v391, %v406
    %v409 = vunpack.c.l.s4 1966171168
    %v410 = vunpack.c.0.s8 %v409
    %v411 = vlaneseq
    %v412 = vshrl.u32 %v411, 7
    %v413 = vsub.s32 %v410, %v412
    %v414 = vrot.slane %v398, %v413
    %v416 = vunpack.c.l.s4 1966171168
    %v417 = vunpack.c.0.s8 %v416
    %v418 = vlaneseq
    %v419 = vshrl.u32 %v418, 7
    %v420 = vsub.s32 %v417, %v419
    %v421 = vrot.slane %v399, %v420
    %v423 = vunpack.c.l.s4 1966171168
    %v424 = vunpack.c.0.s8 %v423
    %v425 = vlaneseq
    %v426 = vshrl.u32 %v425, 7
    %v427 = vsub.s32 %v424, %v426
    %v428 = vrot.slane %v400, %v427
    %v429 = vcombine.high %v407, %v407
    %v430 = vcombine.high %v414, %v414
    %v431 = vcombine.high %v421, %v421
    %v432 = vcombine.high %v428, %v428
    %v433 = vcombine.high %v363, %v363
    %v435 = vunpack.c.l.s4 1966171168
    %v436 = vunpack.c.0.s8 %v435
    %v437 = vlaneseq
    %v438 = vshrl.u32 %v437, 7
    %v439 = vsub.s32 %v436, %v438
    %v440 = vrot.slane %v363, %v439
    %v442 = vunpack.c.l.s4 1966171168
    %v443 = vunpack.c.0.s8 %v442
    %v444 = vlaneseq
    %v445 = vshrl.u32 %v444, 7
    %v446 = vsub.s32 %v443, %v445
    %v447 = vrot.slane %v433, %v446
    %v448 = vcombine.high %v440, %v440
    %v449 = vcombine.high %v447, %v447
    %v451 = vunpack.c.l.s4 1966171168
    %v452 = vunpack.c.0.s8 %v451
    %v453 = vlaneseq
    %v454 = vshrl.u32 %v453, 7
    %v455 = vsub.s32 %v452, %v454
    %v456 = vrot.slane %v440, %v455
    %v458 = vunpack.c.l.s4 1966171168
    %v459 = vunpack.c.0.s8 %v458
    %v460 = vlaneseq
    %v461 = vshrl.u32 %v460, 7
    %v462 = vsub.s32 %v459, %v461
    %v463 = vrot.slane %v447, %v462
    %v465 = vunpack.c.l.s4 1966171168
    %v466 = vunpack.c.0.s8 %v465
    %v467 = vlaneseq
    %v468 = vshrl.u32 %v467, 7
    %v469 = vsub.s32 %v466, %v468
    %v470 = vrot.slane %v448, %v469
    %v472 = vunpack.c.l.s4 1966171168
    %v473 = vunpack.c.0.s8 %v472
    %v474 = vlaneseq
    %v475 = vshrl.u32 %v474, 7
    %v476 = vsub.s32 %v473, %v475
    %v477 = vrot.slane %v449, %v476
    %v478 = vcombine.high %v456, %v456
    %v479 = vcombine.high %v463, %v463
    %v480 = vcombine.high %v470, %v470
    %v481 = vcombine.high %v365, %v365
    %v483 = vunpack.c.l.s4 1966171168
    %v484 = vunpack.c.0.s8 %v483
    %v485 = vlaneseq
    %v486 = vshrl.u32 %v485, 7
    %v487 = vsub.s32 %v484, %v486
    %v488 = vrot.slane %v365, %v487
    %v490 = vunpack.c.l.s4 1966171168
    %v491 = vunpack.c.0.s8 %v490
    %v492 = vlaneseq
    %v493 = vshrl.u32 %v492, 7
    %v494 = vsub.s32 %v491, %v493
    %v495 = vrot.slane %v481, %v494
    %v496 = vcombine.high %v488, %v488
    %v497 = vcombine.high %v495, %v495
    %v499 = vunpack.c.l.s4 1966171168
    %v500 = vunpack.c.0.s8 %v499
    %v501 = vlaneseq
    %v502 = vshrl.u32 %v501, 7
    %v503 = vsub.s32 %v500, %v502
    %v504 = vrot.slane %v488, %v503
    %v506 = vunpack.c.l.s4 1966171168
    %v507 = vunpack.c.0.s8 %v506
    %v508 = vlaneseq
    %v509 = vshrl.u32 %v508, 7
    %v510 = vsub.s32 %v507, %v509
    %v511 = vrot.slane %v495, %v510
    %v513 = vunpack.c.l.s4 1966171168
    %v514 = vunpack.c.0.s8 %v513
    %v515 = vlaneseq
    %v516 = vshrl.u32 %v515, 7
    %v517 = vsub.s32 %v514, %v516
    %v518 = vrot.slane %v496, %v517
    %v520 = vunpack.c.l.s4 1966171168
    %v521 = vunpack.c.0.s8 %v520
    %v522 = vlaneseq
    %v523 = vshrl.u32 %v522, 7
    %v524 = vsub.s32 %v521, %v523
    %v525 = vrot.slane %v497, %v524
    %v526 = vcombine.high %v504, %v504
    %v527 = vcombine.high %v511, %v511
    %v528 = vcombine.high %v518, %v518
    %v529 = vcombine.high %v525, %v525
    %v530 = vcombine.high %v367, %v367
    %v532 = vunpack.c.l.s4 1966171168
    %v533 = vunpack.c.0.s8 %v532
    %v534 = vlaneseq
    %v535 = vshrl.u32 %v534, 7
    %v536 = vsub.s32 %v533, %v535
    %v537 = vrot.slane %v367, %v536
    %v539 = vunpack.c.l.s4 1966171168
    %v540 = vunpack.c.0.s8 %v539
    %v541 = vlaneseq
    %v542 = vshrl.u32 %v541, 7
    %v543 = vsub.s32 %v540, %v542
    %v544 = vrot.slane %v530, %v543
    %v545 = vcombine.high %v537, %v537
    %v546 = vcombine.high %v544, %v544
    %v548 = vunpack.c.l.s4 1966171168
    %v549 = vunpack.c.0.s8 %v548
    %v550 = vlaneseq
    %v551 = vshrl.u32 %v550, 7
    %v552 = vsub.s32 %v549, %v551
    %v553 = vrot.slane %v537, %v552
    %v555 = vunpack.c.l.s4 1966171168
    %v556 = vunpack.c.0.s8 %v555
    %v557 = vlaneseq
    %v558 = vshrl.u32 %v557, 7
    %v559 = vsub.s32 %v556, %v558
    %v560 = vrot.slane %v544, %v559
    %v562 = vunpack.c.l.s4 1966171168
    %v563 = vunpack.c.0.s8 %v562
    %v564 = vlaneseq
    %v565 = vshrl.u32 %v564, 7
    %v566 = vsub.s32 %v563, %v565
    %v567 = vrot.slane %v545, %v566
    %v569 = vunpack.c.l.s4 1966171168
    %v570 = vunpack.c.0.s8 %v569
    %v571 = vlaneseq
    %v572 = vshrl.u32 %v571, 7
    %v573 = vsub.s32 %v570, %v572
    %v574 = vrot.slane %v546, %v573
    %v575 = vcombine.high %v553, %v553
    %v576 = vcombine.high %v560, %v560
    %v577 = vcombine.high %v567, %v567
    %v578 = vcombine.high %v369, %v369
    %v580 = vunpack.c.l.s4 1966171168
    %v581 = vunpack.c.0.s8 %v580
    %v582 = vlaneseq
    %v583 = vshrl.u32 %v582, 7
    %v584 = vsub.s32 %v581, %v583
    %v585 = vrot.slane %v369, %v584
    %v587 = vunpack.c.l.s4 1966171168
    %v588 = vunpack.c.0.s8 %v587
    %v589 = vlaneseq
    %v590 = vshrl.u32 %v589, 7
    %v591 = vsub.s32 %v588, %v590
    %v592 = vrot.slane %v578, %v591
    %v593 = vcombine.high %v585, %v585
    %v594 = vcombine.high %v592, %v592
    %v596 = vunpack.c.l.s4 1966171168
    %v597 = vunpack.c.0.s8 %v596
    %v598 = vlaneseq
    %v599 = vshrl.u32 %v598, 7
    %v600 = vsub.s32 %v597, %v599
    %v601 = vrot.slane %v585, %v600
    %v603 = vunpack.c.l.s4 1966171168
    %v604 = vunpack.c.0.s8 %v603
    %v605 = vlaneseq
    %v606 = vshrl.u32 %v605, 7
    %v607 = vsub.s32 %v604, %v606
    %v608 = vrot.slane %v592, %v607
    %v610 = vunpack.c.l.s4 1966171168
    %v611 = vunpack.c.0.s8 %v610
    %v612 = vlaneseq
    %v613 = vshrl.u32 %v612, 7
    %v614 = vsub.s32 %v611, %v613
    %v615 = vrot.slane %v593, %v614
    %v617 = vunpack.c.l.s4 1966171168
    %v618 = vunpack.c.0.s8 %v617
    %v619 = vlaneseq
    %v620 = vshrl.u32 %v619, 7
    %v621 = vsub.s32 %v618, %v620
    %v622 = vrot.slane %v594, %v621
    %v623 = vcombine.high %v601, %v601
    %v624 = vcombine.high %v608, %v608
    %v625 = vcombine.high %v615, %v615
    %v626 = vcombine.high %v622, %v622
    %v627 = vcombine.high %v371, %v371
    %v629 = vunpack.c.l.s4 1966171168
    %v630 = vunpack.c.0.s8 %v629
    %v631 = vlaneseq
    %v632 = vshrl.u32 %v631, 7
    %v633 = vsub.s32 %v630, %v632
    %v634 = vrot.slane %v371, %v633
    %v636 = vunpack.c.l.s4 1966171168
    %v637 = vunpack.c.0.s8 %v636
    %v638 = vlaneseq
    %v639 = vshrl.u32 %v638, 7
    %v640 = vsub.s32 %v637, %v639
    %v641 = vrot.slane %v627, %v640
    %v642 = vcombine.high %v634, %v634
    %v643 = vcombine.high %v641, %v641
    %v645 = vunpack.c.l.s4 1966171168
    %v646 = vunpack.c.0.s8 %v645
    %v647 = vlaneseq
    %v648 = vshrl.u32 %v647, 7
    %v649 = vsub.s32 %v646, %v648
    %v650 = vrot.slane %v634, %v649
    %v652 = vunpack.c.l.s4 1966171168
    %v653 = vunpack.c.0.s8 %v652
    %v654 = vlaneseq
    %v655 = vshrl.u32 %v654, 7
    %v656 = vsub.s32 %v653, %v655
    %v657 = vrot.slane %v641, %v656
    %v659 = vunpack.c.l.s4 1966171168
    %v660 = vunpack.c.0.s8 %v659
    %v661 = vlaneseq
    %v662 = vshrl.u32 %v661, 7
    %v663 = vsub.s32 %v660, %v662
    %v664 = vrot.slane %v642, %v663
    %v666 = vunpack.c.l.s4 1966171168
    %v667 = vunpack.c.0.s8 %v666
    %v668 = vlaneseq
    %v669 = vshrl.u32 %v668, 7
    %v670 = vsub.s32 %v667, %v669
    %v671 = vrot.slane %v643, %v670
    %v672 = vcombine.high %v650, %v650
    %v673 = vcombine.high %v657, %v657
    %v674 = vcombine.high %v664, %v664
    %v675 = vcombine.high %v373, %v373
    %v677 = vunpack.c.l.s4 1966171168
    %v678 = vunpack.c.0.s8 %v677
    %v679 = vlaneseq
    %v680 = vshrl.u32 %v679, 7
    %v681 = vsub.s32 %v678, %v680
    %v682 = vrot.slane %v373, %v681
    %v684 = vunpack.c.l.s4 1966171168
    %v685 = vunpack.c.0.s8 %v684
    %v686 = vlaneseq
    %v687 = vshrl.u32 %v686, 7
    %v688 = vsub.s32 %v685, %v687
    %v689 = vrot.slane %v675, %v688
    %v690 = vcombine.high %v682, %v682
    %v691 = vcombine.high %v689, %v689
    %v693 = vunpack.c.l.s4 1966171168
    %v694 = vunpack.c.0.s8 %v693
    %v695 = vlaneseq
    %v696 = vshrl.u32 %v695, 7
    %v697 = vsub.s32 %v694, %v696
    %v698 = vrot.slane %v682, %v697
    %v700 = vunpack.c.l.s4 1966171168
    %v701 = vunpack.c.0.s8 %v700
    %v702 = vlaneseq
    %v703 = vshrl.u32 %v702, 7
    %v704 = vsub.s32 %v701, %v703
    %v705 = vrot.slane %v689, %v704
    %v707 = vunpack.c.l.s4 1966171168
    %v708 = vunpack.c.0.s8 %v707
    %v709 = vlaneseq
    %v710 = vshrl.u32 %v709, 7
    %v711 = vsub.s32 %v708, %v710
    %v712 = vrot.slane %v690, %v711
    %v714 = vunpack.c.l.s4 1966171168
    %v715 = vunpack.c.0.s8 %v714
    %v716 = vlaneseq
    %v717 = vshrl.u32 %v716, 7
    %v718 = vsub.s32 %v715, %v717
    %v719 = vrot.slane %v691, %v718
    %v720 = vcombine.high %v698, %v698
    %v721 = vcombine.high %v705, %v705
    %v722 = vcombine.high %v712, %v712
    %v723 = vcombine.high %v719, %v719
    %v724 = vcombine.high %v375, %v375
    %v726 = vunpack.c.l.s4 1966171168
    %v727 = vunpack.c.0.s8 %v726
    %v728 = vlaneseq
    %v729 = vshrl.u32 %v728, 7
    %v730 = vsub.s32 %v727, %v729
    %v731 = vrot.slane %v375, %v730
    %v733 = vunpack.c.l.s4 1966171168
    %v734 = vunpack.c.0.s8 %v733
    %v735 = vlaneseq
    %v736 = vshrl.u32 %v735, 7
    %v737 = vsub.s32 %v734, %v736
    %v738 = vrot.slane %v724, %v737
    %v739 = vcombine.high %v731, %v731
    %v740 = vcombine.high %v738, %v738
    %v742 = vunpack.c.l.s4 1966171168
    %v743 = vunpack.c.0.s8 %v742
    %v744 = vlaneseq
    %v745 = vshrl.u32 %v744, 7
    %v746 = vsub.s32 %v743, %v745
    %v747 = vrot.slane %v731, %v746
    %v749 = vunpack.c.l.s4 1966171168
    %v750 = vunpack.c.0.s8 %v749
    %v751 = vlaneseq
    %v752 = vshrl.u32 %v751, 7
    %v753 = vsub.s32 %v750, %v752
    %v754 = vrot.slane %v738, %v753
    %v756 = vunpack.c.l.s4 1966171168
    %v757 = vunpack.c.0.s8 %v756
    %v758 = vlaneseq
    %v759 = vshrl.u32 %v758, 7
    %v760 = vsub.s32 %v757, %v759
    %v761 = vrot.slane %v739, %v760
    %v763 = vunpack.c.l.s4 1966171168
    %v764 = vunpack.c.0.s8 %v763
    %v765 = vlaneseq
    %v766 = vshrl.u32 %v765, 7
    %v767 = vsub.s32 %v764, %v766
    %v768 = vrot.slane %v740, %v767
    %v769 = vcombine.high %v747, %v747
    %v770 = vcombine.high %v754, %v754
    %v771 = vcombine.high %v761, %v761
    %v772 = vunpack.i.l.s16 %v407
    %v773 = vunpack.i.h.s16 %v407
    %v774 = vunpack.i.l.s16 %v421
    %v775 = vunpack.i.h.s16 %v421
    %v776 = vunpack.i.l.s16 %v429
    %v777 = vunpack.i.h.s16 %v429
    %v778 = vunpack.i.l.s16 %v431
    %v779 = vunpack.i.h.s16 %v431
    %v780 = vunpack.i.l.s16 %v414
    %v781 = vunpack.i.h.s16 %v414
    %v782 = vunpack.i.l.s16 %v428
    %v783 = vunpack.i.h.s16 %v428
    %v784 = vunpack.i.l.s16 %v430
    %v785 = vunpack.i.h.s16 %v430
    %v786 = vunpack.i.l.s16 %v432
    %v787 = vunpack.i.h.s16 %v432
    %v788 = vunpack.i.l.s16 %v456
    %v789 = vunpack.i.h.s16 %v456
    %v790 = vunpack.i.l.s16 %v470
    %v791 = vunpack.i.h.s16 %v470
    %v792 = vunpack.i.l.s16 %v478
    %v793 = vunpack.i.h.s16 %v478
    %v794 = vunpack.i.l.s16 %v480
    %v795 = vunpack.i.h.s16 %v480
    %v796 = vunpack.i.l.s16 %v463
    %v797 = vunpack.i.h.s16 %v463
    %v798 = vunpack.i.l.s16 %v477
    %v799 = vunpack.i.h.s16 %v477
    %v800 = vunpack.i.l.s16 %v479
    %v801 = vunpack.i.l.s16 %v504
    %v802 = vunpack.i.h.s16 %v504
    %v803 = vunpack.i.l.s16 %v518
    %v804 = vunpack.i.h.s16 %v518
    %v805 = vunpack.i.l.s16 %v526
    %v806 = vunpack.i.h.s16 %v526
    %v807 = vunpack.i.l.s16 %v528
    %v808 = vunpack.i.h.s16 %v528
    %v809 = vunpack.i.l.s16 %v511
    %v810 = vunpack.i.h.s16 %v511
    %v811 = vunpack.i.l.s16 %v525
    %v812 = vunpack.i.h.s16 %v525
    %v813 = vunpack.i.l.s16 %v527
    %v814 = vunpack.i.h.s16 %v527
    %v815 = vunpack.i.l.s16 %v529
    %v816 = vunpack.i.h.s16 %v529
    %v817 = vunpack.i.l.s16 %v553
    %v818 = vunpack.i.h.s16 %v553
    %v819 = vunpack.i.l.s16 %v567
    %v820 = vunpack.i.h.s16 %v567
    %v821 = vunpack.i.l.s16 %v575
    %v822 = vunpack.i.h.s16 %v575
    %v823 = vunpack.i.l.s16 %v577
    %v824 = vunpack.i.h.s16 %v577
    %v825 = vunpack.i.l.s16 %v560
    %v826 = vunpack.i.h.s16 %v560
    %v827 = vunpack.i.l.s16 %v574
    %v828 = vunpack.i.h.s16 %v574
    %v829 = vunpack.i.l.s16 %v576
    %v830 = vunpack.i.l.s16 %v601
    %v831 = vunpack.i.h.s16 %v601
    %v832 = vunpack.i.l.s16 %v615
    %v833 = vunpack.i.h.s16 %v615
    %v834 = vunpack.i.l.s16 %v623
    %v835 = vunpack.i.h.s16 %v623
    %v836 = vunpack.i.l.s16 %v625
    %v837 = vunpack.i.h.s16 %v625
    %v838 = vunpack.i.l.s16 %v608
    %v839 = vunpack.i.h.s16 %v608
    %v840 = vunpack.i.l.s16 %v622
    %v841 = vunpack.i.h.s16 %v622
    %v842 = vunpack.i.l.s16 %v624
    %v843 = vunpack.i.h.s16 %v624
    %v844 = vunpack.i.l.s16 %v626
    %v845 = vunpack.i.h.s16 %v626
    %v846 = vunpack.i.l.s16 %v650
    %v847 = vunpack.i.h.s16 %v650
    %v848 = vunpack.i.l.s16 %v664
    %v849 = vunpack.i.h.s16 %v664
    %v850 = vunpack.i.l.s16 %v672
    %v851 = vunpack.i.h.s16 %v672
    %v852 = vunpack.i.l.s16 %v674
    %v853 = vunpack.i.h.s16 %v674
    %v854 = vunpack.i.l.s16 %v657
    %v855 = vunpack.i.h.s16 %v657
    %v856 = vunpack.i.l.s16 %v671
    %v857 = vunpack.i.h.s16 %v671
    %v858 = vunpack.i.l.s16 %v673
    %v859 = vunpack.i.l.s16 %v698
    %v860 = vunpack.i.h.s16 %v698
    %v861 = vunpack.i.l.s16 %v712
    %v862 = vunpack.i.h.s16 %v712
    %v863 = vunpack.i.l.s16 %v720
    %v864 = vunpack.i.h.s16 %v720
    %v865 = vunpack.i.l.s16 %v722
    %v866 = vunpack.i.h.s16 %v722
    %v867 = vunpack.i.l.s16 %v705
    %v868 = vunpack.i.h.s16 %v705
    %v869 = vunpack.i.l.s16 %v719
    %v870 = vunpack.i.h.s16 %v719
    %v871 = vunpack.i.l.s16 %v721
    %v872 = vunpack.i.h.s16 %v721
    %v873 = vunpack.i.l.s16 %v723
    %v874 = vunpack.i.h.s16 %v723
    %v875 = vunpack.i.l.s16 %v747
    %v876 = vunpack.i.h.s16 %v747
    %v877 = vunpack.i.l.s16 %v761
    %v878 = vunpack.i.h.s16 %v761
    %v879 = vunpack.i.l.s16 %v769
    %v880 = vunpack.i.h.s16 %v769
    %v881 = vunpack.i.l.s16 %v771
    %v882 = vunpack.i.h.s16 %v771
    %v883 = vunpack.i.l.s16 %v754
    %v884 = vunpack.i.h.s16 %v754
    %v885 = vunpack.i.l.s16 %v768
    %v886 = vunpack.i.h.s16 %v768
    %v887 = vunpack.i.l.s16 %v770
    %v888 = vpack.i.b16 %v773, %v772
    %v889 = vpack.i.b16 %v775, %v774
    %v890 = vpack.i.b16 %v777, %v776
    %v891 = vpack.i.b16 %v779, %v778
    %v892 = vpack.i.b16 %v781, %v780
    %v893 = vpack.i.b16 %v783, %v782
    %v894 = vpack.i.b16 %v785, %v784
    %v895 = vpack.i.b16 %v787, %v786
    %v896 = vpack.i.b16 %v789, %v788
    %v897 = vpack.i.b16 %v791, %v790
    %v898 = vpack.i.b16 %v793, %v792
    %v899 = vpack.i.b16 %v795, %v794
    %v900 = vpack.i.b16 %v797, %v796
    %v901 = vpack.i.b16 %v799, %v798
    %v902 = vpack.i.b16 %v801, %v800
    %v903 = vpack.i.b16 %v803, %v802
    %v904 = vpack.i.b16 %v805, %v804
    %v905 = vpack.i.b16 %v807, %v806
    %v906 = vpack.i.b16 %v809, %v808
    %v907 = vpack.i.b16 %v811, %v810
    %v908 = vpack.i.b16 %v813, %v812
    %v909 = vpack.i.b16 %v815, %v814
    %v910 = vpack.i.b16 %v817, %v816
    %v911 = vpack.i.b16 %v819, %v818
    %v912 = vpack.i.b16 %v821, %v820
    %v913 = vpack.i.b16 %v823, %v822
    %v914 = vpack.i.b16 %v825, %v824
    %v915 = vpack.i.b16 %v827, %v826
    %v916 = vpack.i.b16 %v829, %v828
    %v917 = vpack.i.b16 %v831, %v830
    %v918 = vpack.i.b16 %v833, %v832
    %v919 = vpack.i.b16 %v835, %v834
    %v920 = vpack.i.b16 %v837, %v836
    %v921 = vpack.i.b16 %v839, %v838
    %v922 = vpack.i.b16 %v841, %v840
    %v923 = vpack.i.b16 %v843, %v842
    %v924 = vpack.i.b16 %v845, %v844
    %v925 = vpack.i.b16 %v847, %v846
    %v926 = vpack.i.b16 %v849, %v848
    %v927 = vpack.i.b16 %v851, %v850
    %v928 = vpack.i.b16 %v853, %v852
    %v929 = vpack.i.b16 %v855, %v854
    %v930 = vpack.i.b16 %v857, %v856
    %v931 = vpack.i.b16 %v859, %v858
    %v932 = vpack.i.b16 %v861, %v860
    %v933 = vpack.i.b16 %v863, %v862
    %v934 = vpack.i.b16 %v865, %v864
    %v935 = vpack.i.b16 %v867, %v866
    %v936 = vpack.i.b16 %v869, %v868
    %v937 = vpack.i.b16 %v871, %v870
    %v938 = vpack.i.b16 %v873, %v872
    %v939 = vpack.i.b16 %v875, %v874
    %v940 = vpack.i.b16 %v877, %v876
    %v941 = vpack.i.b16 %v879, %v878
    %v942 = vpack.i.b16 %v881, %v880
    %v943 = vpack.i.b16 %v883, %v882
    %v944 = vpack.i.b16 %v885, %v884
    %v945 = vpack.i.b16 %v887, %v886
    %v946 = vcombine.low %v888, %v889
    %v947 = vcombine.low %v890, %v891
    %v948 = vcombine.low %v892, %v893
    %v949 = vcombine.low %v894, %v895
    %v951 = vunpack.c.l.s4 1966171168
    %v952 = vunpack.c.0.s8 %v951
    %v953 = vlaneseq
    %v954 = vshrl.u32 %v953, 7
    %v955 = vsub.s32 %v952, %v954
    %v956 = vrot.slane %v946, %v955
    %v958 = vunpack.c.l.s4 1966171168
    %v959 = vunpack.c.0.s8 %v958
    %v960 = vlaneseq
    %v961 = vshrl.u32 %v960, 7
    %v962 = vsub.s32 %v959, %v961
    %v963 = vrot.slane %v947, %v962
    %v965 = vunpack.c.l.s4 1966171168
    %v966 = vunpack.c.0.s8 %v965
    %v967 = vlaneseq
    %v968 = vshrl.u32 %v967, 7
    %v969 = vsub.s32 %v966, %v968
    %v970 = vrot.slane %v948, %v969
    %v972 = vunpack.c.l.s4 1966171168
    %v973 = vunpack.c.0.s8 %v972
    %v974 = vlaneseq
    %v975 = vshrl.u32 %v974, 7
    %v976 = vsub.s32 %v973, %v975
    %v977 = vrot.slane %v949, %v976
    %v978 = vcombine.low %v956, %v963
    %v979 = vcombine.low %v970, %v977
    %v981 = vunpack.c.l.s4 1966171168
    %v982 = vunpack.c.0.s8 %v981
    %v983 = vlaneseq
    %v984 = vshrl.u32 %v983, 7
    %v985 = vsub.s32 %v982, %v984
    %v986 = vrot.slane %v978, %v985
    %v988 = vunpack.c.l.s4 1966171168
    %v989 = vunpack.c.0.s8 %v988
    %v990 = vlaneseq
    %v991 = vshrl.u32 %v990, 7
    %v992 = vsub.s32 %v989, %v991
    %v993 = vrot.slane %v979, %v992
    %v994 = vcombine.low %v986, %v993
    %v995 = vcombine.low %v896, %v897
    %v996 = vcombine.low %v898, %v899
    %v997 = vcombine.low %v900, %v901
    %v998 = vcombine.low %v902, %v903
    %v1000 = vunpack.c.l.s4 1966171168
    %v1001 = vunpack.c.0.s8 %v1000
    %v1002 = vlaneseq
    %v1003 = vshrl.u32 %v1002, 7
    %v1004 = vsub.s32 %v1001, %v1003
    %v1005 = vrot.slane %v995, %v1004
    %v1007 = vunpack.c.l.s4 1966171168
    %v1008 = vunpack.c.0.s8 %v1007
    %v1009 = vlaneseq
    %v1010 = vshrl.u32 %v1009, 7
    %v1011 = vsub.s32 %v1008, %v1010
    %v1012 = vrot.slane %v996, %v1011
    %v1014 = vunpack.c.l.s4 1966171168
    %v1015 = vunpack.c.0.s8 %v1014
    %v1016 = vlaneseq
    %v1017 = vshrl.u32 %v1016, 7
    %v1018 = vsub.s32 %v1015, %v1017
    %v1019 = vrot.slane %v997, %v1018
    %v1021 = vunpack.c.l.s4 1966171168
    %v1022 = vunpack.c.0.s8 %v1021
    %v1023 = vlaneseq
    %v1024 = vshrl.u32 %v1023, 7
    %v1025 = vsub.s32 %v1022, %v1024
    %v1026 = vrot.slane %v998, %v1025
    %v1027 = vcombine.low %v1005, %v1012
    %v1028 = vcombine.low %v1019, %v1026
    %v1030 = vunpack.c.l.s4 1966171168
    %v1031 = vunpack.c.0.s8 %v1030
    %v1032 = vlaneseq
    %v1033 = vshrl.u32 %v1032, 7
    %v1034 = vsub.s32 %v1031, %v1033
    %v1035 = vrot.slane %v1027, %v1034
    %v1037 = vunpack.c.l.s4 1966171168
    %v1038 = vunpack.c.0.s8 %v1037
    %v1039 = vlaneseq
    %v1040 = vshrl.u32 %v1039, 7
    %v1041 = vsub.s32 %v1038, %v1040
    %v1042 = vrot.slane %v1028, %v1041
    %v1043 = vcombine.low %v1035, %v1042
    %v1044 = vcombine.low %v904, %v905
    %v1045 = vcombine.low %v906, %v907
    %v1046 = vcombine.low %v908, %v909
    %v1047 = vcombine.low %v910, %v911
    %v1049 = vunpack.c.l.s4 1966171168
    %v1050 = vunpack.c.0.s8 %v1049
    %v1051 = vlaneseq
    %v1052 = vshrl.u32 %v1051, 7
    %v1053 = vsub.s32 %v1050, %v1052
    %v1054 = vrot.slane %v1044, %v1053
    %v1056 = vunpack.c.l.s4 1966171168
    %v1057 = vunpack.c.0.s8 %v1056
    %v1058 = vlaneseq
    %v1059 = vshrl.u32 %v1058, 7
    %v1060 = vsub.s32 %v1057, %v1059
    %v1061 = vrot.slane %v1045, %v1060
    %v1063 = vunpack.c.l.s4 1966171168
    %v1064 = vunpack.c.0.s8 %v1063
    %v1065 = vlaneseq
    %v1066 = vshrl.u32 %v1065, 7
    %v1067 = vsub.s32 %v1064, %v1066
    %v1068 = vrot.slane %v1046, %v1067
    %v1070 = vunpack.c.l.s4 1966171168
    %v1071 = vunpack.c.0.s8 %v1070
    %v1072 = vlaneseq
    %v1073 = vshrl.u32 %v1072, 7
    %v1074 = vsub.s32 %v1071, %v1073
    %v1075 = vrot.slane %v1047, %v1074
    %v1076 = vcombine.low %v1054, %v1061
    %v1077 = vcombine.low %v1068, %v1075
    %v1079 = vunpack.c.l.s4 1966171168
    %v1080 = vunpack.c.0.s8 %v1079
    %v1081 = vlaneseq
    %v1082 = vshrl.u32 %v1081, 7
    %v1083 = vsub.s32 %v1080, %v1082
    %v1084 = vrot.slane %v1076, %v1083
    %v1086 = vunpack.c.l.s4 1966171168
    %v1087 = vunpack.c.0.s8 %v1086
    %v1088 = vlaneseq
    %v1089 = vshrl.u32 %v1088, 7
    %v1090 = vsub.s32 %v1087, %v1089
    %v1091 = vrot.slane %v1077, %v1090
    %v1092 = vcombine.low %v1084, %v1091
    %v1093 = vcombine.low %v912, %v913
    %v1094 = vcombine.low %v914, %v915
    %v1095 = vcombine.low %v916, %v917
    %v1096 = vcombine.low %v918, %v919
    %v1098 = vunpack.c.l.s4 1966171168
    %v1099 = vunpack.c.0.s8 %v1098
    %v1100 = vlaneseq
    %v1101 = vshrl.u32 %v1100, 7
    %v1102 = vsub.s32 %v1099, %v1101
    %v1103 = vrot.slane %v1093, %v1102
    %v1105 = vunpack.c.l.s4 1966171168
    %v1106 = vunpack.c.0.s8 %v1105
    %v1107 = vlaneseq
    %v1108 = vshrl.u32 %v1107, 7
    %v1109 = vsub.s32 %v1106, %v1108
    %v1110 = vrot.slane %v1094, %v1109
    %v1112 = vunpack.c.l.s4 1966171168
    %v1113 = vunpack.c.0.s8 %v1112
    %v1114 = vlaneseq
    %v1115 = vshrl.u32 %v1114, 7
    %v1116 = vsub.s32 %v1113, %v1115
    %v1117 = vrot.slane %v1095, %v1116
    %v1119 = vunpack.c.l.s4 1966171168
    %v1120 = vunpack.c.0.s8 %v1119
    %v1121 = vlaneseq
    %v1122 = vshrl.u32 %v1121, 7
    %v1123 = vsub.s32 %v1120, %v1122
    %v1124 = vrot.slane %v1096, %v1123
    %v1125 = vcombine.low %v1103, %v1110
    %v1126 = vcombine.low %v1117, %v1124
    %v1128 = vunpack.c.l.s4 1966171168
    %v1129 = vunpack.c.0.s8 %v1128
    %v1130 = vlaneseq
    %v1131 = vshrl.u32 %v1130, 7
    %v1132 = vsub.s32 %v1129, %v1131
    %v1133 = vrot.slane %v1125, %v1132
    %v1135 = vunpack.c.l.s4 1966171168
    %v1136 = vunpack.c.0.s8 %v1135
    %v1137 = vlaneseq
    %v1138 = vshrl.u32 %v1137, 7
    %v1139 = vsub.s32 %v1136, %v1138
    %v1140 = vrot.slane %v1126, %v1139
    %v1141 = vcombine.low %v1133, %v1140
    %v1142 = vcombine.low %v920, %v921
    %v1143 = vcombine.low %v922, %v923
    %v1144 = vcombine.low %v924, %v925
    %v1145 = vcombine.low %v926, %v927
    %v1147 = vunpack.c.l.s4 1966171168
    %v1148 = vunpack.c.0.s8 %v1147
    %v1149 = vlaneseq
    %v1150 = vshrl.u32 %v1149, 7
    %v1151 = vsub.s32 %v1148, %v1150
    %v1152 = vrot.slane %v1142, %v1151
    %v1154 = vunpack.c.l.s4 1966171168
    %v1155 = vunpack.c.0.s8 %v1154
    %v1156 = vlaneseq
    %v1157 = vshrl.u32 %v1156, 7
    %v1158 = vsub.s32 %v1155, %v1157
    %v1159 = vrot.slane %v1143, %v1158
    %v1161 = vunpack.c.l.s4 1966171168
    %v1162 = vunpack.c.0.s8 %v1161
    %v1163 = vlaneseq
    %v1164 = vshrl.u32 %v1163, 7
    %v1165 = vsub.s32 %v1162, %v1164
    %v1166 = vrot.slane %v1144, %v1165
    %v1168 = vunpack.c.l.s4 1966171168
    %v1169 = vunpack.c.0.s8 %v1168
    %v1170 = vlaneseq
    %v1171 = vshrl.u32 %v1170, 7
    %v1172 = vsub.s32 %v1169, %v1171
    %v1173 = vrot.slane %v1145, %v1172
    %v1174 = vcombine.low %v1152, %v1159
    %v1175 = vcombine.low %v1166, %v1173
    %v1177 = vunpack.c.l.s4 1966171168
    %v1178 = vunpack.c.0.s8 %v1177
    %v1179 = vlaneseq
    %v1180 = vshrl.u32 %v1179, 7
    %v1181 = vsub.s32 %v1178, %v1180
    %v1182 = vrot.slane %v1174, %v1181
    %v1184 = vunpack.c.l.s4 1966171168
    %v1185 = vunpack.c.0.s8 %v1184
    %v1186 = vlaneseq
    %v1187 = vshrl.u32 %v1186, 7
    %v1188 = vsub.s32 %v1185, %v1187
    %v1189 = vrot.slane %v1175, %v1188
    %v1190 = vcombine.low %v1182, %v1189
    %v1191 = vcombine.low %v928, %v929
    %v1192 = vcombine.low %v930, %v931
    %v1193 = vcombine.low %v932, %v933
    %v1194 = vcombine.low %v934, %v935
    %v1196 = vunpack.c.l.s4 1966171168
    %v1197 = vunpack.c.0.s8 %v1196
    %v1198 = vlaneseq
    %v1199 = vshrl.u32 %v1198, 7
    %v1200 = vsub.s32 %v1197, %v1199
    %v1201 = vrot.slane %v1191, %v1200
    %v1203 = vunpack.c.l.s4 1966171168
    %v1204 = vunpack.c.0.s8 %v1203
    %v1205 = vlaneseq
    %v1206 = vshrl.u32 %v1205, 7
    %v1207 = vsub.s32 %v1204, %v1206
    %v1208 = vrot.slane %v1192, %v1207
    %v1210 = vunpack.c.l.s4 1966171168
    %v1211 = vunpack.c.0.s8 %v1210
    %v1212 = vlaneseq
    %v1213 = vshrl.u32 %v1212, 7
    %v1214 = vsub.s32 %v1211, %v1213
    %v1215 = vrot.slane %v1193, %v1214
    %v1217 = vunpack.c.l.s4 1966171168
    %v1218 = vunpack.c.0.s8 %v1217
    %v1219 = vlaneseq
    %v1220 = vshrl.u32 %v1219, 7
    %v1221 = vsub.s32 %v1218, %v1220
    %v1222 = vrot.slane %v1194, %v1221
    %v1223 = vcombine.low %v1201, %v1208
    %v1224 = vcombine.low %v1215, %v1222
    %v1226 = vunpack.c.l.s4 1966171168
    %v1227 = vunpack.c.0.s8 %v1226
    %v1228 = vlaneseq
    %v1229 = vshrl.u32 %v1228, 7
    %v1230 = vsub.s32 %v1227, %v1229
    %v1231 = vrot.slane %v1223, %v1230
    %v1233 = vunpack.c.l.s4 1966171168
    %v1234 = vunpack.c.0.s8 %v1233
    %v1235 = vlaneseq
    %v1236 = vshrl.u32 %v1235, 7
    %v1237 = vsub.s32 %v1234, %v1236
    %v1238 = vrot.slane %v1224, %v1237
    %v1239 = vcombine.low %v1231, %v1238
    %v1240 = vcombine.low %v936, %v937
    %v1241 = vcombine.low %v938, %v939
    %v1242 = vcombine.low %v940, %v941
    %v1243 = vcombine.low %v942, %v943
    %v1245 = vunpack.c.l.s4 1966171168
    %v1246 = vunpack.c.0.s8 %v1245
    %v1247 = vlaneseq
    %v1248 = vshrl.u32 %v1247, 7
    %v1249 = vsub.s32 %v1246, %v1248
    %v1250 = vrot.slane %v1240, %v1249
    %v1252 = vunpack.c.l.s4 1966171168
    %v1253 = vunpack.c.0.s8 %v1252
    %v1254 = vlaneseq
    %v1255 = vshrl.u32 %v1254, 7
    %v1256 = vsub.s32 %v1253, %v1255
    %v1257 = vrot.slane %v1241, %v1256
    %v1259 = vunpack.c.l.s4 1966171168
    %v1260 = vunpack.c.0.s8 %v1259
    %v1261 = vlaneseq
    %v1262 = vshrl.u32 %v1261, 7
    %v1263 = vsub.s32 %v1260, %v1262
    %v1264 = vrot.slane %v1242, %v1263
    %v1266 = vunpack.c.l.s4 1966171168
    %v1267 = vunpack.c.0.s8 %v1266
    %v1268 = vlaneseq
    %v1269 = vshrl.u32 %v1268, 7
    %v1270 = vsub.s32 %v1267, %v1269
    %v1271 = vrot.slane %v1243, %v1270
    %v1272 = vcombine.low %v1250, %v1257
    %v1273 = vcombine.low %v1264, %v1271
    %v1275 = vunpack.c.l.s4 1966171168
    %v1276 = vunpack.c.0.s8 %v1275
    %v1277 = vlaneseq
    %v1278 = vshrl.u32 %v1277, 7
    %v1279 = vsub.s32 %v1276, %v1278
    %v1280 = vrot.slane %v1272, %v1279
    %v1282 = vunpack.c.l.s4 1966171168
    %v1283 = vunpack.c.0.s8 %v1282
    %v1284 = vlaneseq
    %v1285 = vshrl.u32 %v1284, 7
    %v1286 = vsub.s32 %v1283, %v1285
    %v1287 = vrot.slane %v1273, %v1286
    %v1288 = vcombine.low %v1280, %v1287
    %v1289 = vcombine.low %v944, %v945
    %v1291 = vunpack.c.l.s4 1966171168
    %v1292 = vunpack.c.0.s8 %v1291
    %v1293 = vlaneseq
    %v1294 = vshrl.u32 %v1293, 7
    %v1295 = vsub.s32 %v1292, %v1294
    %v1296 = vrot.slane %v1289, %v1295
    %v1298 = vunpack.c.l.s4 1966171168
    %v1299 = vunpack.c.0.s8 %v1298
    %v1300 = vlaneseq
    %v1301 = vshrl.u32 %v1300, 7
    %v1302 = vsub.s32 %v1299, %v1301
    %v1303 = vrot.slane %v1296, %v1302
    %v1315 = vunpack.c.l.b16 %v34
    %v1316 = vunpack.c.l.b16 %v35
    %v1317 = vunpack.c.l.b16 %v36
    %v1318 = vunpack.c.l.b16 %v37
    %v1319 = vunpack.c.l.b16 %v38
    %v1320 = vunpack.c.l.b16 %v39
    %v1321 = vunpack.c.l.b16 %v40
    %v1322 = vunpack.c.l.b16 %v41
    %v1323 = vunpack.c.l.b16 %v42
    %v1324 = vunpack.c.l.b16 %v43
    %v1325 = vunpack.c.l.b16 %v44
    %v1326 = vpack.c.b16 %v1316, %v1315
    %v1327 = vpack.c.b16 %v1318, %v1317
    %v1328 = vpack.c.b16 %v1320, %v1319
    %v1329 = vpack.c.b16 %v1322, %v1321
    %v1330 = vpack.c.b16 %v1324, %v1323
    %v1331 = vpack.c.b16 %v1325, %v1325
    %vm1337 = vcmask 687104
    %v1339 = vsel %vm1337, %v994, 0
    %v1342 = vsel %vm1337, %v1043, 0
    %v1345 = vsel %vm1337, %v1092, 0
    %v1348 = vsel %vm1337, %v1141, 0
    %v1351 = vsel %vm1337, %v1190, 0
    %v1354 = vsel %vm1337, %v1239, 0
    %v1357 = vsel %vm1337, %v1288, 0
    %v1360 = vsel %vm1337, %v1303, 0
    %vm1362 = vcmask 1041408
    %v1364 = vsel %vm1362, %v1331, 0
    %1366 = vmatprep.subr.bf16.mxu0 0
    %1367 = vmatpush1.bf16.msra.mxu0 %v1326
    %1368 = vmatprep.subr.bf16.mxu0 0
    %1369 = vmatpush1.bf16.msra.mxu0 %v1327
    %1370 = vmatprep.subr.bf16.mxu0 0
    %1371 = vmatpush1.bf16.msra.mxu0 %v1328
    %1372 = vmatprep.subr.bf16.mxu0 0
    %1373 = vmatpush1.bf16.msra.mxu0 %v1329
    %1374 = vmatprep.subr.bf16.mxu0 0
    %1375 = vmatpush1.bf16.msra.mxu0 %v1330
    %1376 = vmatprep.subr.bf16.mxu0 0
    %1377 = vmatpush1.bf16.msra.mxu0 %v1364
    %1378 = vmatprep.subr.bf16.mxu0 0
    %1379 = vmatpush1.bf16.msra.mxu0 0
    %1380 = vmatprep.subr.bf16.mxu0 0
    %1381 = vmatpush1.bf16.msra.mxu0 0
    %1382 = vmatprep.subr.bf16.mxu0 0
    %1383 = vmatpush1.bf16.msra.mxu0 0
    %1384 = vmatprep.subr.bf16.mxu0 0
    %1385 = vmatpush1.bf16.msra.mxu0 0
    %1386 = vmatprep.subr.bf16.mxu0 0
    %1387 = vmatpush1.bf16.msra.mxu0 0
    %1388 = vmatprep.subr.bf16.mxu0 0
    %1389 = vmatpush1.bf16.msra.mxu0 0
    %1390 = vmatprep.subr.bf16.mxu0 0
    %1391 = vmatpush1.bf16.msra.mxu0 0
    %1392 = vmatprep.subr.bf16.mxu0 0
    %1393 = vmatpush1.bf16.msra.mxu0 0
    %1394 = vmatprep.subr.bf16.mxu0 0
    %1395 = vmatpush1.bf16.msra.mxu0 0
    %1396 = vmatprep.subr.bf16.mxu0 0
    %1397 = vmatpush1.bf16.msra.mxu0 0
    %1398 = vmatprep.mubr.bf16.mxu0 0
    %1399 = vmatmul.mubr.bf16.gmra.mrb[0].mxu0 %v1339
    %v1400 = vpop.f32.mrb[0].mxu0
    %v1401 = vadd.f32 0.0, %v1400
    %v1402 = vpop.f32.mrb[0].mxu0
    %v1403 = vpop.f32.mrb[0].mxu0
    %v1404 = vadd.f32 0.0, %v1403
    %v1405 = vpop.f32.mrb[0].mxu0
    %1406 = vmatprep.mubr.bf16.mxu0 0
    %1407 = vmatmul.mubr.bf16.gmra.mrb[0].mxu0 %v1342
    %v1408 = vpop.f32.mrb[0].mxu0
    %v1409 = vadd.f32 0.0, %v1408
    %v1410 = vpop.f32.mrb[0].mxu0
    %v1411 = vpop.f32.mrb[0].mxu0
    %v1412 = vadd.f32 0.0, %v1411
    %v1413 = vpop.f32.mrb[0].mxu0
    %1414 = vmatprep.mubr.bf16.mxu0 0
    %1415 = vmatmul.mubr.bf16.gmra.mrb[0].mxu0 %v1345
    %v1416 = vpop.f32.mrb[0].mxu0
    %v1417 = vadd.f32 0.0, %v1416
    %v1418 = vpop.f32.mrb[0].mxu0
    %v1419 = vpop.f32.mrb[0].mxu0
    %v1420 = vadd.f32 0.0, %v1419
    %v1421 = vpop.f32.mrb[0].mxu0
    %1422 = vmatprep.mubr.bf16.mxu0 0
    %1423 = vmatmul.mubr.bf16.gmra.mrb[0].mxu0 %v1348
    %v1424 = vpop.f32.mrb[0].mxu0
    %v1425 = vadd.f32 0.0, %v1424
    %v1426 = vpop.f32.mrb[0].mxu0
    %v1427 = vpop.f32.mrb[0].mxu0
    %v1428 = vadd.f32 0.0, %v1427
    %v1429 = vpop.f32.mrb[0].mxu0
    %1430 = vmatprep.mubr.bf16.mxu0 0
    %1431 = vmatmul.mubr.bf16.gmra.mrb[0].mxu0 %v1351
    %v1432 = vpop.f32.mrb[0].mxu0
    %v1433 = vadd.f32 0.0, %v1432
    %v1434 = vpop.f32.mrb[0].mxu0
    %v1435 = vpop.f32.mrb[0].mxu0
    %v1436 = vadd.f32 0.0, %v1435
    %v1437 = vpop.f32.mrb[0].mxu0
    %1438 = vmatprep.mubr.bf16.mxu0 0
    %1439 = vmatmul.mubr.bf16.gmra.mrb[0].mxu0 %v1354
    %v1440 = vpop.f32.mrb[0].mxu0
    %v1441 = vadd.f32 0.0, %v1440
    %v1442 = vpop.f32.mrb[0].mxu0
    %v1443 = vpop.f32.mrb[0].mxu0
    %v1444 = vadd.f32 0.0, %v1443
    %v1445 = vpop.f32.mrb[0].mxu0
    %1446 = vmatprep.mubr.bf16.mxu0 0
    %1447 = vmatmul.mubr.bf16.gmra.mrb[0].mxu0 %v1357
    %v1448 = vpop.f32.mrb[0].mxu0
    %v1449 = vadd.f32 0.0, %v1448
    %v1450 = vpop.f32.mrb[0].mxu0
    %v1451 = vpop.f32.mrb[0].mxu0
    %v1452 = vadd.f32 0.0, %v1451
    %v1453 = vpop.f32.mrb[0].mxu0
    %1454 = vmatprep.mubr.bf16.mxu0 0
    %1455 = vmatmul.mubr.bf16.gmra.mrb[0].mxu0 %v1360
    %v1456 = vpop.f32.mrb[0].mxu0
    %v1457 = vadd.f32 0.0, %v1456
    %v1458 = vpop.f32.mrb[0].mxu0
    %v1459 = vpop.f32.mrb[0].mxu0
    %v1460 = vpop.f32.mrb[0].mxu0
    %1461 = vdwg.mxu0
    %v1477 = vcombine.high %v1401, %v1401
    %v1479 = vunpack.c.l.s4 1966171168
    %v1480 = vunpack.c.0.s8 %v1479
    %v1481 = vlaneseq
    %v1482 = vshrl.u32 %v1481, 7
    %v1483 = vsub.s32 %v1480, %v1482
    %v1484 = vrot.slane %v1401, %v1483
    %v1486 = vunpack.c.l.s4 1966171168
    %v1487 = vunpack.c.0.s8 %v1486
    %v1488 = vlaneseq
    %v1489 = vshrl.u32 %v1488, 7
    %v1490 = vsub.s32 %v1487, %v1489
    %v1491 = vrot.slane %v1477, %v1490
    %v1492 = vcombine.high %v1484, %v1484
    %v1493 = vcombine.high %v1491, %v1491
    %v1495 = vunpack.c.l.s4 1966171168
    %v1496 = vunpack.c.0.s8 %v1495
    %v1497 = vlaneseq
    %v1498 = vshrl.u32 %v1497, 7
    %v1499 = vsub.s32 %v1496, %v1498
    %v1500 = vrot.slane %v1484, %v1499
    %v1502 = vunpack.c.l.s4 1966171168
    %v1503 = vunpack.c.0.s8 %v1502
    %v1504 = vlaneseq
    %v1505 = vshrl.u32 %v1504, 7
    %v1506 = vsub.s32 %v1503, %v1505
    %v1507 = vrot.slane %v1491, %v1506
    %v1509 = vunpack.c.l.s4 1966171168
    %v1510 = vunpack.c.0.s8 %v1509
    %v1511 = vlaneseq
    %v1512 = vshrl.u32 %v1511, 7
    %v1513 = vsub.s32 %v1510, %v1512
    %v1514 = vrot.slane %v1492, %v1513
    %v1516 = vunpack.c.l.s4 1966171168
    %v1517 = vunpack.c.0.s8 %v1516
    %v1518 = vlaneseq
    %v1519 = vshrl.u32 %v1518, 7
    %v1520 = vsub.s32 %v1517, %v1519
    %v1521 = vrot.slane %v1493, %v1520
    %v1522 = vcombine.high %v1500, %v1500
    %v1523 = vcombine.high %v1507, %v1507
    %v1524 = vcombine.high %v1514, %v1514
    %v1525 = vcombine.high %v1521, %v1521
    %v1526 = vcombine.high %v1404, %v1404
    %v1528 = vunpack.c.l.s4 1966171168
    %v1529 = vunpack.c.0.s8 %v1528
    %v1530 = vlaneseq
    %v1531 = vshrl.u32 %v1530, 7
    %v1532 = vsub.s32 %v1529, %v1531
    %v1533 = vrot.slane %v1404, %v1532
    %v1535 = vunpack.c.l.s4 1966171168
    %v1536 = vunpack.c.0.s8 %v1535
    %v1537 = vlaneseq
    %v1538 = vshrl.u32 %v1537, 7
    %v1539 = vsub.s32 %v1536, %v1538
    %v1540 = vrot.slane %v1526, %v1539
    %v1541 = vcombine.high %v1533, %v1533
    %v1542 = vcombine.high %v1540, %v1540
    %v1544 = vunpack.c.l.s4 1966171168
    %v1545 = vunpack.c.0.s8 %v1544
    %v1546 = vlaneseq
    %v1547 = vshrl.u32 %v1546, 7
    %v1548 = vsub.s32 %v1545, %v1547
    %v1549 = vrot.slane %v1533, %v1548
    %v1551 = vunpack.c.l.s4 1966171168
    %v1552 = vunpack.c.0.s8 %v1551
    %v1553 = vlaneseq
    %v1554 = vshrl.u32 %v1553, 7
    %v1555 = vsub.s32 %v1552, %v1554
    %v1556 = vrot.slane %v1540, %v1555
    %v1558 = vunpack.c.l.s4 1966171168
    %v1559 = vunpack.c.0.s8 %v1558
    %v1560 = vlaneseq
    %v1561 = vshrl.u32 %v1560, 7
    %v1562 = vsub.s32 %v1559, %v1561
    %v1563 = vrot.slane %v1541, %v1562
    %v1565 = vunpack.c.l.s4 1966171168
    %v1566 = vunpack.c.0.s8 %v1565
    %v1567 = vlaneseq
    %v1568 = vshrl.u32 %v1567, 7
    %v1569 = vsub.s32 %v1566, %v1568
    %v1570 = vrot.slane %v1542, %v1569
    %v1571 = vcombine.high %v1549, %v1549
    %v1572 = vcombine.high %v1556, %v1556
    %v1573 = vcombine.high %v1563, %v1563
    %v1574 = vcombine.high %v1570, %v1570
    %v1575 = vcombine.high %v1409, %v1409
    %v1577 = vunpack.c.l.s4 1966171168
    %v1578 = vunpack.c.0.s8 %v1577
    %v1579 = vlaneseq
    %v1580 = vshrl.u32 %v1579, 7
    %v1581 = vsub.s32 %v1578, %v1580
    %v1582 = vrot.slane %v1409, %v1581
    %v1584 = vunpack.c.l.s4 1966171168
    %v1585 = vunpack.c.0.s8 %v1584
    %v1586 = vlaneseq
    %v1587 = vshrl.u32 %v1586, 7
    %v1588 = vsub.s32 %v1585, %v1587
    %v1589 = vrot.slane %v1575, %v1588
    %v1590 = vcombine.high %v1582, %v1582
    %v1591 = vcombine.high %v1589, %v1589
    %v1593 = vunpack.c.l.s4 1966171168
    %v1594 = vunpack.c.0.s8 %v1593
    %v1595 = vlaneseq
    %v1596 = vshrl.u32 %v1595, 7
    %v1597 = vsub.s32 %v1594, %v1596
    %v1598 = vrot.slane %v1582, %v1597
    %v1600 = vunpack.c.l.s4 1966171168
    %v1601 = vunpack.c.0.s8 %v1600
    %v1602 = vlaneseq
    %v1603 = vshrl.u32 %v1602, 7
    %v1604 = vsub.s32 %v1601, %v1603
    %v1605 = vrot.slane %v1589, %v1604
    %v1607 = vunpack.c.l.s4 1966171168
    %v1608 = vunpack.c.0.s8 %v1607
    %v1609 = vlaneseq
    %v1610 = vshrl.u32 %v1609, 7
    %v1611 = vsub.s32 %v1608, %v1610
    %v1612 = vrot.slane %v1590, %v1611
    %v1614 = vunpack.c.l.s4 1966171168
    %v1615 = vunpack.c.0.s8 %v1614
    %v1616 = vlaneseq
    %v1617 = vshrl.u32 %v1616, 7
    %v1618 = vsub.s32 %v1615, %v1617
    %v1619 = vrot.slane %v1591, %v1618
    %v1620 = vcombine.high %v1598, %v1598
    %v1621 = vcombine.high %v1605, %v1605
    %v1622 = vcombine.high %v1612, %v1612
    %v1623 = vcombine.high %v1619, %v1619
    %v1624 = vcombine.high %v1412, %v1412
    %v1626 = vunpack.c.l.s4 1966171168
    %v1627 = vunpack.c.0.s8 %v1626
    %v1628 = vlaneseq
    %v1629 = vshrl.u32 %v1628, 7
    %v1630 = vsub.s32 %v1627, %v1629
    %v1631 = vrot.slane %v1412, %v1630
    %v1633 = vunpack.c.l.s4 1966171168
    %v1634 = vunpack.c.0.s8 %v1633
    %v1635 = vlaneseq
    %v1636 = vshrl.u32 %v1635, 7
    %v1637 = vsub.s32 %v1634, %v1636
    %v1638 = vrot.slane %v1624, %v1637
    %v1639 = vcombine.high %v1631, %v1631
    %v1640 = vcombine.high %v1638, %v1638
    %v1642 = vunpack.c.l.s4 1966171168
    %v1643 = vunpack.c.0.s8 %v1642
    %v1644 = vlaneseq
    %v1645 = vshrl.u32 %v1644, 7
    %v1646 = vsub.s32 %v1643, %v1645
    %v1647 = vrot.slane %v1631, %v1646
    %v1649 = vunpack.c.l.s4 1966171168
    %v1650 = vunpack.c.0.s8 %v1649
    %v1651 = vlaneseq
    %v1652 = vshrl.u32 %v1651, 7
    %v1653 = vsub.s32 %v1650, %v1652
    %v1654 = vrot.slane %v1638, %v1653
    %v1656 = vunpack.c.l.s4 1966171168
    %v1657 = vunpack.c.0.s8 %v1656
    %v1658 = vlaneseq
    %v1659 = vshrl.u32 %v1658, 7
    %v1660 = vsub.s32 %v1657, %v1659
    %v1661 = vrot.slane %v1639, %v1660
    %v1663 = vunpack.c.l.s4 1966171168
    %v1664 = vunpack.c.0.s8 %v1663
    %v1665 = vlaneseq
    %v1666 = vshrl.u32 %v1665, 7
    %v1667 = vsub.s32 %v1664, %v1666
    %v1668 = vrot.slane %v1640, %v1667
    %v1669 = vcombine.high %v1647, %v1647
    %v1670 = vcombine.high %v1654, %v1654
    %v1671 = vcombine.high %v1661, %v1661
    %v1672 = vcombine.high %v1668, %v1668
    %v1673 = vcombine.high %v1417, %v1417
    %v1675 = vunpack.c.l.s4 1966171168
    %v1676 = vunpack.c.0.s8 %v1675
    %v1677 = vlaneseq
    %v1678 = vshrl.u32 %v1677, 7
    %v1679 = vsub.s32 %v1676, %v1678
    %v1680 = vrot.slane %v1417, %v1679
    %v1682 = vunpack.c.l.s4 1966171168
    %v1683 = vunpack.c.0.s8 %v1682
    %v1684 = vlaneseq
    %v1685 = vshrl.u32 %v1684, 7
    %v1686 = vsub.s32 %v1683, %v1685
    %v1687 = vrot.slane %v1673, %v1686
    %v1688 = vcombine.high %v1680, %v1680
    %v1689 = vcombine.high %v1687, %v1687
    %v1691 = vunpack.c.l.s4 1966171168
    %v1692 = vunpack.c.0.s8 %v1691
    %v1693 = vlaneseq
    %v1694 = vshrl.u32 %v1693, 7
    %v1695 = vsub.s32 %v1692, %v1694
    %v1696 = vrot.slane %v1680, %v1695
    %v1698 = vunpack.c.l.s4 1966171168
    %v1699 = vunpack.c.0.s8 %v1698
    %v1700 = vlaneseq
    %v1701 = vshrl.u32 %v1700, 7
    %v1702 = vsub.s32 %v1699, %v1701
    %v1703 = vrot.slane %v1687, %v1702
    %v1705 = vunpack.c.l.s4 1966171168
    %v1706 = vunpack.c.0.s8 %v1705
    %v1707 = vlaneseq
    %v1708 = vshrl.u32 %v1707, 7
    %v1709 = vsub.s32 %v1706, %v1708
    %v1710 = vrot.slane %v1688, %v1709
    %v1712 = vunpack.c.l.s4 1966171168
    %v1713 = vunpack.c.0.s8 %v1712
    %v1714 = vlaneseq
    %v1715 = vshrl.u32 %v1714, 7
    %v1716 = vsub.s32 %v1713, %v1715
    %v1717 = vrot.slane %v1689, %v1716
    %v1718 = vcombine.high %v1696, %v1696
    %v1719 = vcombine.high %v1703, %v1703
    %v1720 = vcombine.high %v1710, %v1710
    %v1721 = vcombine.high %v1717, %v1717
    %v1722 = vcombine.high %v1420, %v1420
    %v1724 = vunpack.c.l.s4 1966171168
    %v1725 = vunpack.c.0.s8 %v1724
    %v1726 = vlaneseq
    %v1727 = vshrl.u32 %v1726, 7
    %v1728 = vsub.s32 %v1725, %v1727
    %v1729 = vrot.slane %v1420, %v1728
    %v1731 = vunpack.c.l.s4 1966171168
    %v1732 = vunpack.c.0.s8 %v1731
    %v1733 = vlaneseq
    %v1734 = vshrl.u32 %v1733, 7
    %v1735 = vsub.s32 %v1732, %v1734
    %v1736 = vrot.slane %v1722, %v1735
    %v1737 = vcombine.high %v1729, %v1729
    %v1738 = vcombine.high %v1736, %v1736
    %v1740 = vunpack.c.l.s4 1966171168
    %v1741 = vunpack.c.0.s8 %v1740
    %v1742 = vlaneseq
    %v1743 = vshrl.u32 %v1742, 7
    %v1744 = vsub.s32 %v1741, %v1743
    %v1745 = vrot.slane %v1729, %v1744
    %v1747 = vunpack.c.l.s4 1966171168
    %v1748 = vunpack.c.0.s8 %v1747
    %v1749 = vlaneseq
    %v1750 = vshrl.u32 %v1749, 7
    %v1751 = vsub.s32 %v1748, %v1750
    %v1752 = vrot.slane %v1736, %v1751
    %v1754 = vunpack.c.l.s4 1966171168
    %v1755 = vunpack.c.0.s8 %v1754
    %v1756 = vlaneseq
    %v1757 = vshrl.u32 %v1756, 7
    %v1758 = vsub.s32 %v1755, %v1757
    %v1759 = vrot.slane %v1737, %v1758
    %v1761 = vunpack.c.l.s4 1966171168
    %v1762 = vunpack.c.0.s8 %v1761
    %v1763 = vlaneseq
    %v1764 = vshrl.u32 %v1763, 7
    %v1765 = vsub.s32 %v1762, %v1764
    %v1766 = vrot.slane %v1738, %v1765
    %v1767 = vcombine.high %v1745, %v1745
    %v1768 = vcombine.high %v1752, %v1752
    %v1769 = vcombine.high %v1759, %v1759
    %v1770 = vcombine.high %v1766, %v1766
    %v1771 = vcombine.high %v1425, %v1425
    %v1773 = vunpack.c.l.s4 1966171168
    %v1774 = vunpack.c.0.s8 %v1773
    %v1775 = vlaneseq
    %v1776 = vshrl.u32 %v1775, 7
    %v1777 = vsub.s32 %v1774, %v1776
    %v1778 = vrot.slane %v1425, %v1777
    %v1780 = vunpack.c.l.s4 1966171168
    %v1781 = vunpack.c.0.s8 %v1780
    %v1782 = vlaneseq
    %v1783 = vshrl.u32 %v1782, 7
    %v1784 = vsub.s32 %v1781, %v1783
    %v1785 = vrot.slane %v1771, %v1784
    %v1786 = vcombine.high %v1778, %v1778
    %v1787 = vcombine.high %v1785, %v1785
    %v1789 = vunpack.c.l.s4 1966171168
    %v1790 = vunpack.c.0.s8 %v1789
    %v1791 = vlaneseq
    %v1792 = vshrl.u32 %v1791, 7
    %v1793 = vsub.s32 %v1790, %v1792
    %v1794 = vrot.slane %v1778, %v1793
    %v1796 = vunpack.c.l.s4 1966171168
    %v1797 = vunpack.c.0.s8 %v1796
    %v1798 = vlaneseq
    %v1799 = vshrl.u32 %v1798, 7
    %v1800 = vsub.s32 %v1797, %v1799
    %v1801 = vrot.slane %v1785, %v1800
    %v1803 = vunpack.c.l.s4 1966171168
    %v1804 = vunpack.c.0.s8 %v1803
    %v1805 = vlaneseq
    %v1806 = vshrl.u32 %v1805, 7
    %v1807 = vsub.s32 %v1804, %v1806
    %v1808 = vrot.slane %v1786, %v1807
    %v1810 = vunpack.c.l.s4 1966171168
    %v1811 = vunpack.c.0.s8 %v1810
    %v1812 = vlaneseq
    %v1813 = vshrl.u32 %v1812, 7
    %v1814 = vsub.s32 %v1811, %v1813
    %v1815 = vrot.slane %v1787, %v1814
    %v1816 = vcombine.high %v1794, %v1794
    %v1817 = vcombine.high %v1801, %v1801
    %v1818 = vcombine.high %v1808, %v1808
    %v1819 = vcombine.high %v1815, %v1815
    %v1820 = vcombine.high %v1428, %v1428
    %v1822 = vunpack.c.l.s4 1966171168
    %v1823 = vunpack.c.0.s8 %v1822
    %v1824 = vlaneseq
    %v1825 = vshrl.u32 %v1824, 7
    %v1826 = vsub.s32 %v1823, %v1825
    %v1827 = vrot.slane %v1428, %v1826
    %v1829 = vunpack.c.l.s4 1966171168
    %v1830 = vunpack.c.0.s8 %v1829
    %v1831 = vlaneseq
    %v1832 = vshrl.u32 %v1831, 7
    %v1833 = vsub.s32 %v1830, %v1832
    %v1834 = vrot.slane %v1820, %v1833
    %v1835 = vcombine.high %v1827, %v1827
    %v1836 = vcombine.high %v1834, %v1834
    %v1838 = vunpack.c.l.s4 1966171168
    %v1839 = vunpack.c.0.s8 %v1838
    %v1840 = vlaneseq
    %v1841 = vshrl.u32 %v1840, 7
    %v1842 = vsub.s32 %v1839, %v1841
    %v1843 = vrot.slane %v1827, %v1842
    %v1845 = vunpack.c.l.s4 1966171168
    %v1846 = vunpack.c.0.s8 %v1845
    %v1847 = vlaneseq
    %v1848 = vshrl.u32 %v1847, 7
    %v1849 = vsub.s32 %v1846, %v1848
    %v1850 = vrot.slane %v1834, %v1849
    %v1852 = vunpack.c.l.s4 1966171168
    %v1853 = vunpack.c.0.s8 %v1852
    %v1854 = vlaneseq
    %v1855 = vshrl.u32 %v1854, 7
    %v1856 = vsub.s32 %v1853, %v1855
    %v1857 = vrot.slane %v1835, %v1856
    %v1859 = vunpack.c.l.s4 1966171168
    %v1860 = vunpack.c.0.s8 %v1859
    %v1861 = vlaneseq
    %v1862 = vshrl.u32 %v1861, 7
    %v1863 = vsub.s32 %v1860, %v1862
    %v1864 = vrot.slane %v1836, %v1863
    %v1865 = vcombine.high %v1843, %v1843
    %v1866 = vcombine.high %v1850, %v1850
    %v1867 = vcombine.high %v1857, %v1857
    %v1868 = vcombine.high %v1864, %v1864
    %v1869 = vcombine.high %v1433, %v1433
    %v1871 = vunpack.c.l.s4 1966171168
    %v1872 = vunpack.c.0.s8 %v1871
    %v1873 = vlaneseq
    %v1874 = vshrl.u32 %v1873, 7
    %v1875 = vsub.s32 %v1872, %v1874
    %v1876 = vrot.slane %v1433, %v1875
    %v1878 = vunpack.c.l.s4 1966171168
    %v1879 = vunpack.c.0.s8 %v1878
    %v1880 = vlaneseq
    %v1881 = vshrl.u32 %v1880, 7
    %v1882 = vsub.s32 %v1879, %v1881
    %v1883 = vrot.slane %v1869, %v1882
    %v1884 = vcombine.high %v1876, %v1876
    %v1885 = vcombine.high %v1883, %v1883
    %v1887 = vunpack.c.l.s4 1966171168
    %v1888 = vunpack.c.0.s8 %v1887
    %v1889 = vlaneseq
    %v1890 = vshrl.u32 %v1889, 7
    %v1891 = vsub.s32 %v1888, %v1890
    %v1892 = vrot.slane %v1876, %v1891
    %v1894 = vunpack.c.l.s4 1966171168
    %v1895 = vunpack.c.0.s8 %v1894
    %v1896 = vlaneseq
    %v1897 = vshrl.u32 %v1896, 7
    %v1898 = vsub.s32 %v1895, %v1897
    %v1899 = vrot.slane %v1883, %v1898
    %v1901 = vunpack.c.l.s4 1966171168
    %v1902 = vunpack.c.0.s8 %v1901
    %v1903 = vlaneseq
    %v1904 = vshrl.u32 %v1903, 7
    %v1905 = vsub.s32 %v1902, %v1904
    %v1906 = vrot.slane %v1884, %v1905
    %v1908 = vunpack.c.l.s4 1966171168
    %v1909 = vunpack.c.0.s8 %v1908
    %v1910 = vlaneseq
    %v1911 = vshrl.u32 %v1910, 7
    %v1912 = vsub.s32 %v1909, %v1911
    %v1913 = vrot.slane %v1885, %v1912
    %v1914 = vcombine.high %v1892, %v1892
    %v1915 = vcombine.high %v1899, %v1899
    %v1916 = vcombine.high %v1906, %v1906
    %v1917 = vcombine.high %v1913, %v1913
    %v1918 = vcombine.high %v1436, %v1436
    %v1920 = vunpack.c.l.s4 1966171168
    %v1921 = vunpack.c.0.s8 %v1920
    %v1922 = vlaneseq
    %v1923 = vshrl.u32 %v1922, 7
    %v1924 = vsub.s32 %v1921, %v1923
    %v1925 = vrot.slane %v1436, %v1924
    %v1927 = vunpack.c.l.s4 1966171168
    %v1928 = vunpack.c.0.s8 %v1927
    %v1929 = vlaneseq
    %v1930 = vshrl.u32 %v1929, 7
    %v1931 = vsub.s32 %v1928, %v1930
    %v1932 = vrot.slane %v1918, %v1931
    %v1933 = vcombine.high %v1925, %v1925
    %v1934 = vcombine.high %v1932, %v1932
    %v1936 = vunpack.c.l.s4 1966171168
    %v1937 = vunpack.c.0.s8 %v1936
    %v1938 = vlaneseq
    %v1939 = vshrl.u32 %v1938, 7
    %v1940 = vsub.s32 %v1937, %v1939
    %v1941 = vrot.slane %v1925, %v1940
    %v1943 = vunpack.c.l.s4 1966171168
    %v1944 = vunpack.c.0.s8 %v1943
    %v1945 = vlaneseq
    %v1946 = vshrl.u32 %v1945, 7
    %v1947 = vsub.s32 %v1944, %v1946
    %v1948 = vrot.slane %v1932, %v1947
    %v1950 = vunpack.c.l.s4 1966171168
    %v1951 = vunpack.c.0.s8 %v1950
    %v1952 = vlaneseq
    %v1953 = vshrl.u32 %v1952, 7
    %v1954 = vsub.s32 %v1951, %v1953
    %v1955 = vrot.slane %v1933, %v1954
    %v1957 = vunpack.c.l.s4 1966171168
    %v1958 = vunpack.c.0.s8 %v1957
    %v1959 = vlaneseq
    %v1960 = vshrl.u32 %v1959, 7
    %v1961 = vsub.s32 %v1958, %v1960
    %v1962 = vrot.slane %v1934, %v1961
    %v1963 = vcombine.high %v1941, %v1941
    %v1964 = vcombine.high %v1948, %v1948
    %v1965 = vcombine.high %v1955, %v1955
    %v1966 = vcombine.high %v1962, %v1962
    %v1967 = vcombine.high %v1441, %v1441
    %v1969 = vunpack.c.l.s4 1966171168
    %v1970 = vunpack.c.0.s8 %v1969
    %v1971 = vlaneseq
    %v1972 = vshrl.u32 %v1971, 7
    %v1973 = vsub.s32 %v1970, %v1972
    %v1974 = vrot.slane %v1441, %v1973
    %v1976 = vunpack.c.l.s4 1966171168
    %v1977 = vunpack.c.0.s8 %v1976
    %v1978 = vlaneseq
    %v1979 = vshrl.u32 %v1978, 7
    %v1980 = vsub.s32 %v1977, %v1979
    %v1981 = vrot.slane %v1967, %v1980
    %v1982 = vcombine.high %v1974, %v1974
    %v1983 = vcombine.high %v1981, %v1981
    %v1985 = vunpack.c.l.s4 1966171168
    %v1986 = vunpack.c.0.s8 %v1985
    %v1987 = vlaneseq
    %v1988 = vshrl.u32 %v1987, 7
    %v1989 = vsub.s32 %v1986, %v1988
    %v1990 = vrot.slane %v1974, %v1989
    %v1992 = vunpack.c.l.s4 1966171168
    %v1993 = vunpack.c.0.s8 %v1992
    %v1994 = vlaneseq
    %v1995 = vshrl.u32 %v1994, 7
    %v1996 = vsub.s32 %v1993, %v1995
    %v1997 = vrot.slane %v1981, %v1996
    %v1999 = vunpack.c.l.s4 1966171168
    %v2000 = vunpack.c.0.s8 %v1999
    %v2001 = vlaneseq
    %v2002 = vshrl.u32 %v2001, 7
    %v2003 = vsub.s32 %v2000, %v2002
    %v2004 = vrot.slane %v1982, %v2003
    %v2006 = vunpack.c.l.s4 1966171168
    %v2007 = vunpack.c.0.s8 %v2006
    %v2008 = vlaneseq
    %v2009 = vshrl.u32 %v2008, 7
    %v2010 = vsub.s32 %v2007, %v2009
    %v2011 = vrot.slane %v1983, %v2010
    %v2012 = vcombine.high %v1990, %v1990
    %v2013 = vcombine.high %v1997, %v1997
    %v2014 = vcombine.high %v2004, %v2004
    %v2015 = vcombine.high %v2011, %v2011
    %v2016 = vcombine.high %v1444, %v1444
    %v2018 = vunpack.c.l.s4 1966171168
    %v2019 = vunpack.c.0.s8 %v2018
    %v2020 = vlaneseq
    %v2021 = vshrl.u32 %v2020, 7
    %v2022 = vsub.s32 %v2019, %v2021
    %v2023 = vrot.slane %v1444, %v2022
    %v2025 = vunpack.c.l.s4 1966171168
    %v2026 = vunpack.c.0.s8 %v2025
    %v2027 = vlaneseq
    %v2028 = vshrl.u32 %v2027, 7
    %v2029 = vsub.s32 %v2026, %v2028
    %v2030 = vrot.slane %v2016, %v2029
    %v2031 = vcombine.high %v2023, %v2023
    %v2032 = vcombine.high %v2030, %v2030
    %v2034 = vunpack.c.l.s4 1966171168
    %v2035 = vunpack.c.0.s8 %v2034
    %v2036 = vlaneseq
    %v2037 = vshrl.u32 %v2036, 7
    %v2038 = vsub.s32 %v2035, %v2037
    %v2039 = vrot.slane %v2023, %v2038
    %v2041 = vunpack.c.l.s4 1966171168
    %v2042 = vunpack.c.0.s8 %v2041
    %v2043 = vlaneseq
    %v2044 = vshrl.u32 %v2043, 7
    %v2045 = vsub.s32 %v2042, %v2044
    %v2046 = vrot.slane %v2030, %v2045
    %v2048 = vunpack.c.l.s4 1966171168
    %v2049 = vunpack.c.0.s8 %v2048
    %v2050 = vlaneseq
    %v2051 = vshrl.u32 %v2050, 7
    %v2052 = vsub.s32 %v2049, %v2051
    %v2053 = vrot.slane %v2031, %v2052
    %v2055 = vunpack.c.l.s4 1966171168
    %v2056 = vunpack.c.0.s8 %v2055
    %v2057 = vlaneseq
    %v2058 = vshrl.u32 %v2057, 7
    %v2059 = vsub.s32 %v2056, %v2058
    %v2060 = vrot.slane %v2032, %v2059
    %v2061 = vcombine.high %v2039, %v2039
    %v2062 = vcombine.high %v2046, %v2046
    %v2063 = vcombine.high %v2053, %v2053
    %v2064 = vcombine.high %v2060, %v2060
    %v2065 = vcombine.high %v1449, %v1449
    %v2067 = vunpack.c.l.s4 1966171168
    %v2068 = vunpack.c.0.s8 %v2067
    %v2069 = vlaneseq
    %v2070 = vshrl.u32 %v2069, 7
    %v2071 = vsub.s32 %v2068, %v2070
    %v2072 = vrot.slane %v1449, %v2071
    %v2074 = vunpack.c.l.s4 1966171168
    %v2075 = vunpack.c.0.s8 %v2074
    %v2076 = vlaneseq
    %v2077 = vshrl.u32 %v2076, 7
    %v2078 = vsub.s32 %v2075, %v2077
    %v2079 = vrot.slane %v2065, %v2078
    %v2080 = vcombine.high %v2072, %v2072
    %v2081 = vcombine.high %v2079, %v2079
    %v2083 = vunpack.c.l.s4 1966171168
    %v2084 = vunpack.c.0.s8 %v2083
    %v2085 = vlaneseq
    %v2086 = vshrl.u32 %v2085, 7
    %v2087 = vsub.s32 %v2084, %v2086
    %v2088 = vrot.slane %v2072, %v2087
    %v2090 = vunpack.c.l.s4 1966171168
    %v2091 = vunpack.c.0.s8 %v2090
    %v2092 = vlaneseq
    %v2093 = vshrl.u32 %v2092, 7
    %v2094 = vsub.s32 %v2091, %v2093
    %v2095 = vrot.slane %v2079, %v2094
    %v2097 = vunpack.c.l.s4 1966171168
    %v2098 = vunpack.c.0.s8 %v2097
    %v2099 = vlaneseq
    %v2100 = vshrl.u32 %v2099, 7
    %v2101 = vsub.s32 %v2098, %v2100
    %v2102 = vrot.slane %v2080, %v2101
    %v2104 = vunpack.c.l.s4 1966171168
    %v2105 = vunpack.c.0.s8 %v2104
    %v2106 = vlaneseq
    %v2107 = vshrl.u32 %v2106, 7
    %v2108 = vsub.s32 %v2105, %v2107
    %v2109 = vrot.slane %v2081, %v2108
    %v2110 = vcombine.high %v2088, %v2088
    %v2111 = vcombine.high %v2095, %v2095
    %v2112 = vcombine.high %v2102, %v2102
    %v2113 = vcombine.high %v2109, %v2109
    %v2114 = vcombine.high %v1452, %v1452
    %v2116 = vunpack.c.l.s4 1966171168
    %v2117 = vunpack.c.0.s8 %v2116
    %v2118 = vlaneseq
    %v2119 = vshrl.u32 %v2118, 7
    %v2120 = vsub.s32 %v2117, %v2119
    %v2121 = vrot.slane %v1452, %v2120
    %v2123 = vunpack.c.l.s4 1966171168
    %v2124 = vunpack.c.0.s8 %v2123
    %v2125 = vlaneseq
    %v2126 = vshrl.u32 %v2125, 7
    %v2127 = vsub.s32 %v2124, %v2126
    %v2128 = vrot.slane %v2114, %v2127
    %v2129 = vcombine.high %v2121, %v2121
    %v2130 = vcombine.high %v2128, %v2128
    %v2132 = vunpack.c.l.s4 1966171168
    %v2133 = vunpack.c.0.s8 %v2132
    %v2134 = vlaneseq
    %v2135 = vshrl.u32 %v2134, 7
    %v2136 = vsub.s32 %v2133, %v2135
    %v2137 = vrot.slane %v2121, %v2136
    %v2139 = vunpack.c.l.s4 1966171168
    %v2140 = vunpack.c.0.s8 %v2139
    %v2141 = vlaneseq
    %v2142 = vshrl.u32 %v2141, 7
    %v2143 = vsub.s32 %v2140, %v2142
    %v2144 = vrot.slane %v2128, %v2143
    %v2146 = vunpack.c.l.s4 1966171168
    %v2147 = vunpack.c.0.s8 %v2146
    %v2148 = vlaneseq
    %v2149 = vshrl.u32 %v2148, 7
    %v2150 = vsub.s32 %v2147, %v2149
    %v2151 = vrot.slane %v2129, %v2150
    %v2153 = vunpack.c.l.s4 1966171168
    %v2154 = vunpack.c.0.s8 %v2153
    %v2155 = vlaneseq
    %v2156 = vshrl.u32 %v2155, 7
    %v2157 = vsub.s32 %v2154, %v2156
    %v2158 = vrot.slane %v2130, %v2157
    %v2159 = vcombine.high %v2137, %v2137
    %v2160 = vcombine.high %v2144, %v2144
    %v2161 = vcombine.high %v2151, %v2151
    %v2162 = vcombine.high %v2158, %v2158
    %v2164 = vunpack.c.l.s4 1966171168
    %v2165 = vunpack.c.0.s8 %v2164
    %v2166 = vlaneseq
    %v2167 = vshrl.u32 %v2166, 7
    %v2168 = vsub.s32 %v2165, %v2167
    %v2169 = vrot.slane %v1457, %v2168
    %v2170 = vcombine.high %v2169, %v2169
    %v2172 = vunpack.c.l.s4 1966171168
    %v2173 = vunpack.c.0.s8 %v2172
    %v2174 = vlaneseq
    %v2175 = vshrl.u32 %v2174, 7
    %v2176 = vsub.s32 %v2173, %v2175
    %v2177 = vrot.slane %v2169, %v2176
    %v2179 = vunpack.c.l.s4 1966171168
    %v2180 = vunpack.c.0.s8 %v2179
    %v2181 = vlaneseq
    %v2182 = vshrl.u32 %v2181, 7
    %v2183 = vsub.s32 %v2180, %v2182
    %v2184 = vrot.slane %v2170, %v2183
    %v2185 = vcombine.high %v2177, %v2177
    %v2186 = vcombine.high %v2184, %v2184
    %v2187 = vcombine.low %v1500, %v1514
    %v2188 = vcombine.low %v1522, %v1524
    %v2189 = vcombine.low %v1507, %v1521
    %v2190 = vcombine.low %v1523, %v1525
    %v2192 = vunpack.c.l.s4 1966171168
    %v2193 = vunpack.c.0.s8 %v2192
    %v2194 = vlaneseq
    %v2195 = vshrl.u32 %v2194, 7
    %v2196 = vsub.s32 %v2193, %v2195
    %v2197 = vrot.slane %v2187, %v2196
    %v2199 = vunpack.c.l.s4 1966171168
    %v2200 = vunpack.c.0.s8 %v2199
    %v2201 = vlaneseq
    %v2202 = vshrl.u32 %v2201, 7
    %v2203 = vsub.s32 %v2200, %v2202
    %v2204 = vrot.slane %v2188, %v2203
    %v2206 = vunpack.c.l.s4 1966171168
    %v2207 = vunpack.c.0.s8 %v2206
    %v2208 = vlaneseq
    %v2209 = vshrl.u32 %v2208, 7
    %v2210 = vsub.s32 %v2207, %v2209
    %v2211 = vrot.slane %v2189, %v2210
    %v2213 = vunpack.c.l.s4 1966171168
    %v2214 = vunpack.c.0.s8 %v2213
    %v2215 = vlaneseq
    %v2216 = vshrl.u32 %v2215, 7
    %v2217 = vsub.s32 %v2214, %v2216
    %v2218 = vrot.slane %v2190, %v2217
    %v2219 = vcombine.low %v2197, %v2204
    %v2220 = vcombine.low %v2211, %v2218
    %v2222 = vunpack.c.l.s4 1966171168
    %v2223 = vunpack.c.0.s8 %v2222
    %v2224 = vlaneseq
    %v2225 = vshrl.u32 %v2224, 7
    %v2226 = vsub.s32 %v2223, %v2225
    %v2227 = vrot.slane %v2219, %v2226
    %v2229 = vunpack.c.l.s4 1966171168
    %v2230 = vunpack.c.0.s8 %v2229
    %v2231 = vlaneseq
    %v2232 = vshrl.u32 %v2231, 7
    %v2233 = vsub.s32 %v2230, %v2232
    %v2234 = vrot.slane %v2220, %v2233
    %v2235 = vcombine.low %v2227, %v2234
    %v2236 = vcombine.low %v1549, %v1563
    %v2237 = vcombine.low %v1571, %v1573
    %v2238 = vcombine.low %v1556, %v1570
    %v2239 = vcombine.low %v1572, %v1574
    %v2241 = vunpack.c.l.s4 1966171168
    %v2242 = vunpack.c.0.s8 %v2241
    %v2243 = vlaneseq
    %v2244 = vshrl.u32 %v2243, 7
    %v2245 = vsub.s32 %v2242, %v2244
    %v2246 = vrot.slane %v2236, %v2245
    %v2248 = vunpack.c.l.s4 1966171168
    %v2249 = vunpack.c.0.s8 %v2248
    %v2250 = vlaneseq
    %v2251 = vshrl.u32 %v2250, 7
    %v2252 = vsub.s32 %v2249, %v2251
    %v2253 = vrot.slane %v2237, %v2252
    %v2255 = vunpack.c.l.s4 1966171168
    %v2256 = vunpack.c.0.s8 %v2255
    %v2257 = vlaneseq
    %v2258 = vshrl.u32 %v2257, 7
    %v2259 = vsub.s32 %v2256, %v2258
    %v2260 = vrot.slane %v2238, %v2259
    %v2262 = vunpack.c.l.s4 1966171168
    %v2263 = vunpack.c.0.s8 %v2262
    %v2264 = vlaneseq
    %v2265 = vshrl.u32 %v2264, 7
    %v2266 = vsub.s32 %v2263, %v2265
    %v2267 = vrot.slane %v2239, %v2266
    %v2268 = vcombine.low %v2246, %v2253
    %v2269 = vcombine.low %v2260, %v2267
    %v2271 = vunpack.c.l.s4 1966171168
    %v2272 = vunpack.c.0.s8 %v2271
    %v2273 = vlaneseq
    %v2274 = vshrl.u32 %v2273, 7
    %v2275 = vsub.s32 %v2272, %v2274
    %v2276 = vrot.slane %v2268, %v2275
    %v2278 = vunpack.c.l.s4 1966171168
    %v2279 = vunpack.c.0.s8 %v2278
    %v2280 = vlaneseq
    %v2281 = vshrl.u32 %v2280, 7
    %v2282 = vsub.s32 %v2279, %v2281
    %v2283 = vrot.slane %v2269, %v2282
    %v2284 = vcombine.low %v2276, %v2283
    %v2285 = vcombine.low %v1598, %v1612
    %v2286 = vcombine.low %v1620, %v1622
    %v2287 = vcombine.low %v1605, %v1619
    %v2288 = vcombine.low %v1621, %v1623
    %v2290 = vunpack.c.l.s4 1966171168
    %v2291 = vunpack.c.0.s8 %v2290
    %v2292 = vlaneseq
    %v2293 = vshrl.u32 %v2292, 7
    %v2294 = vsub.s32 %v2291, %v2293
    %v2295 = vrot.slane %v2285, %v2294
    %v2297 = vunpack.c.l.s4 1966171168
    %v2298 = vunpack.c.0.s8 %v2297
    %v2299 = vlaneseq
    %v2300 = vshrl.u32 %v2299, 7
    %v2301 = vsub.s32 %v2298, %v2300
    %v2302 = vrot.slane %v2286, %v2301
    %v2304 = vunpack.c.l.s4 1966171168
    %v2305 = vunpack.c.0.s8 %v2304
    %v2306 = vlaneseq
    %v2307 = vshrl.u32 %v2306, 7
    %v2308 = vsub.s32 %v2305, %v2307
    %v2309 = vrot.slane %v2287, %v2308
    %v2311 = vunpack.c.l.s4 1966171168
    %v2312 = vunpack.c.0.s8 %v2311
    %v2313 = vlaneseq
    %v2314 = vshrl.u32 %v2313, 7
    %v2315 = vsub.s32 %v2312, %v2314
    %v2316 = vrot.slane %v2288, %v2315
    %v2317 = vcombine.low %v2295, %v2302
    %v2318 = vcombine.low %v2309, %v2316
    %v2320 = vunpack.c.l.s4 1966171168
    %v2321 = vunpack.c.0.s8 %v2320
    %v2322 = vlaneseq
    %v2323 = vshrl.u32 %v2322, 7
    %v2324 = vsub.s32 %v2321, %v2323
    %v2325 = vrot.slane %v2317, %v2324
    %v2327 = vunpack.c.l.s4 1966171168
    %v2328 = vunpack.c.0.s8 %v2327
    %v2329 = vlaneseq
    %v2330 = vshrl.u32 %v2329, 7
    %v2331 = vsub.s32 %v2328, %v2330
    %v2332 = vrot.slane %v2318, %v2331
    %v2333 = vcombine.low %v2325, %v2332
    %v2334 = vcombine.low %v1647, %v1661
    %v2335 = vcombine.low %v1669, %v1671
    %v2337 = vunpack.c.l.s4 1966171168
    %v2338 = vunpack.c.0.s8 %v2337
    %v2339 = vlaneseq
    %v2340 = vshrl.u32 %v2339, 7
    %v2341 = vsub.s32 %v2338, %v2340
    %v2342 = vrot.slane %v2334, %v2341
    %v2344 = vunpack.c.l.s4 1966171168
    %v2345 = vunpack.c.0.s8 %v2344
    %v2346 = vlaneseq
    %v2347 = vshrl.u32 %v2346, 7
    %v2348 = vsub.s32 %v2345, %v2347
    %v2349 = vrot.slane %v2335, %v2348
    %v2351 = vunpack.c.l.s4 1966171168
    %v2352 = vunpack.c.0.s8 %v2351
    %v2353 = vlaneseq
    %v2354 = vshrl.u32 %v2353, 7
    %v2355 = vsub.s32 %v2352, %v2354
    %v2356 = vrot.slane %v1654, %v2355
    %v2357 = vcombine.low %v2342, %v2349
    %v2359 = vunpack.c.l.s4 1966171168
    %v2360 = vunpack.c.0.s8 %v2359
    %v2361 = vlaneseq
    %v2362 = vshrl.u32 %v2361, 7
    %v2363 = vsub.s32 %v2360, %v2362
    %v2364 = vrot.slane %v2357, %v2363
    %v2366 = vunpack.c.l.s4 1966171168
    %v2367 = vunpack.c.0.s8 %v2366
    %v2368 = vlaneseq
    %v2369 = vshrl.u32 %v2368, 7
    %v2370 = vsub.s32 %v2367, %v2369
    %v2371 = vrot.slane %v2356, %v2370
    %v2372 = vcombine.low %v2364, %v2371
    %v2373 = vcombine.low %v1668, %v1670
    %v2374 = vcombine.low %v1672, %v1696
    %v2375 = vcombine.low %v1710, %v1718
    %v2376 = vcombine.low %v1720, %v1703
    %v2378 = vunpack.c.l.s4 1966171168
    %v2379 = vunpack.c.0.s8 %v2378
    %v2380 = vlaneseq
    %v2381 = vshrl.u32 %v2380, 7
    %v2382 = vsub.s32 %v2379, %v2381
    %v2383 = vrot.slane %v2373, %v2382
    %v2385 = vunpack.c.l.s4 1966171168
    %v2386 = vunpack.c.0.s8 %v2385
    %v2387 = vlaneseq
    %v2388 = vshrl.u32 %v2387, 7
    %v2389 = vsub.s32 %v2386, %v2388
    %v2390 = vrot.slane %v2374, %v2389
    %v2392 = vunpack.c.l.s4 1966171168
    %v2393 = vunpack.c.0.s8 %v2392
    %v2394 = vlaneseq
    %v2395 = vshrl.u32 %v2394, 7
    %v2396 = vsub.s32 %v2393, %v2395
    %v2397 = vrot.slane %v2375, %v2396
    %v2399 = vunpack.c.l.s4 1966171168
    %v2400 = vunpack.c.0.s8 %v2399
    %v2401 = vlaneseq
    %v2402 = vshrl.u32 %v2401, 7
    %v2403 = vsub.s32 %v2400, %v2402
    %v2404 = vrot.slane %v2376, %v2403
    %v2405 = vcombine.low %v2383, %v2390
    %v2406 = vcombine.low %v2397, %v2404
    %v2408 = vunpack.c.l.s4 1966171168
    %v2409 = vunpack.c.0.s8 %v2408
    %v2410 = vlaneseq
    %v2411 = vshrl.u32 %v2410, 7
    %v2412 = vsub.s32 %v2409, %v2411
    %v2413 = vrot.slane %v2405, %v2412
    %v2415 = vunpack.c.l.s4 1966171168
    %v2416 = vunpack.c.0.s8 %v2415
    %v2417 = vlaneseq
    %v2418 = vshrl.u32 %v2417, 7
    %v2419 = vsub.s32 %v2416, %v2418
    %v2420 = vrot.slane %v2406, %v2419
    %v2421 = vcombine.low %v2413, %v2420
    %v2422 = vcombine.low %v1717, %v1719
    %v2423 = vcombine.low %v1721, %v1745
    %v2424 = vcombine.low %v1759, %v1767
    %v2425 = vcombine.low %v1769, %v1752
    %v2427 = vunpack.c.l.s4 1966171168
    %v2428 = vunpack.c.0.s8 %v2427
    %v2429 = vlaneseq
    %v2430 = vshrl.u32 %v2429, 7
    %v2431 = vsub.s32 %v2428, %v2430
    %v2432 = vrot.slane %v2422, %v2431
    %v2434 = vunpack.c.l.s4 1966171168
    %v2435 = vunpack.c.0.s8 %v2434
    %v2436 = vlaneseq
    %v2437 = vshrl.u32 %v2436, 7
    %v2438 = vsub.s32 %v2435, %v2437
    %v2439 = vrot.slane %v2423, %v2438
    %v2441 = vunpack.c.l.s4 1966171168
    %v2442 = vunpack.c.0.s8 %v2441
    %v2443 = vlaneseq
    %v2444 = vshrl.u32 %v2443, 7
    %v2445 = vsub.s32 %v2442, %v2444
    %v2446 = vrot.slane %v2424, %v2445
    %v2448 = vunpack.c.l.s4 1966171168
    %v2449 = vunpack.c.0.s8 %v2448
    %v2450 = vlaneseq
    %v2451 = vshrl.u32 %v2450, 7
    %v2452 = vsub.s32 %v2449, %v2451
    %v2453 = vrot.slane %v2425, %v2452
    %v2454 = vcombine.low %v2432, %v2439
    %v2455 = vcombine.low %v2446, %v2453
    %v2457 = vunpack.c.l.s4 1966171168
    %v2458 = vunpack.c.0.s8 %v2457
    %v2459 = vlaneseq
    %v2460 = vshrl.u32 %v2459, 7
    %v2461 = vsub.s32 %v2458, %v2460
    %v2462 = vrot.slane %v2454, %v2461
    %v2464 = vunpack.c.l.s4 1966171168
    %v2465 = vunpack.c.0.s8 %v2464
    %v2466 = vlaneseq
    %v2467 = vshrl.u32 %v2466, 7
    %v2468 = vsub.s32 %v2465, %v2467
    %v2469 = vrot.slane %v2455, %v2468
    %v2470 = vcombine.low %v2462, %v2469
    %v2471 = vcombine.low %v1766, %v1768
    %v2472 = vcombine.low %v1770, %v1794
    %v2473 = vcombine.low %v1808, %v1816
    %v2474 = vcombine.low %v1818, %v1801
    %v2476 = vunpack.c.l.s4 1966171168
    %v2477 = vunpack.c.0.s8 %v2476
    %v2478 = vlaneseq
    %v2479 = vshrl.u32 %v2478, 7
    %v2480 = vsub.s32 %v2477, %v2479
    %v2481 = vrot.slane %v2471, %v2480
    %v2483 = vunpack.c.l.s4 1966171168
    %v2484 = vunpack.c.0.s8 %v2483
    %v2485 = vlaneseq
    %v2486 = vshrl.u32 %v2485, 7
    %v2487 = vsub.s32 %v2484, %v2486
    %v2488 = vrot.slane %v2472, %v2487
    %v2490 = vunpack.c.l.s4 1966171168
    %v2491 = vunpack.c.0.s8 %v2490
    %v2492 = vlaneseq
    %v2493 = vshrl.u32 %v2492, 7
    %v2494 = vsub.s32 %v2491, %v2493
    %v2495 = vrot.slane %v2473, %v2494
    %v2497 = vunpack.c.l.s4 1966171168
    %v2498 = vunpack.c.0.s8 %v2497
    %v2499 = vlaneseq
    %v2500 = vshrl.u32 %v2499, 7
    %v2501 = vsub.s32 %v2498, %v2500
    %v2502 = vrot.slane %v2474, %v2501
    %v2503 = vcombine.low %v2481, %v2488
    %v2504 = vcombine.low %v2495, %v2502
    %v2506 = vunpack.c.l.s4 1966171168
    %v2507 = vunpack.c.0.s8 %v2506
    %v2508 = vlaneseq
    %v2509 = vshrl.u32 %v2508, 7
    %v2510 = vsub.s32 %v2507, %v2509
    %v2511 = vrot.slane %v2503, %v2510
    %v2513 = vunpack.c.l.s4 1966171168
    %v2514 = vunpack.c.0.s8 %v2513
    %v2515 = vlaneseq
    %v2516 = vshrl.u32 %v2515, 7
    %v2517 = vsub.s32 %v2514, %v2516
    %v2518 = vrot.slane %v2504, %v2517
    %v2519 = vcombine.low %v2511, %v2518
    %v2520 = vcombine.low %v1815, %v1817
    %v2521 = vcombine.low %v1819, %v1843
    %v2523 = vunpack.c.l.s4 1966171168
    %v2524 = vunpack.c.0.s8 %v2523
    %v2525 = vlaneseq
    %v2526 = vshrl.u32 %v2525, 7
    %v2527 = vsub.s32 %v2524, %v2526
    %v2528 = vrot.slane %v2520, %v2527
    %v2530 = vunpack.c.l.s4 1966171168
    %v2531 = vunpack.c.0.s8 %v2530
    %v2532 = vlaneseq
    %v2533 = vshrl.u32 %v2532, 7
    %v2534 = vsub.s32 %v2531, %v2533
    %v2535 = vrot.slane %v2521, %v2534
    %v2537 = vunpack.c.l.s4 1966171168
    %v2538 = vunpack.c.0.s8 %v2537
    %v2539 = vlaneseq
    %v2540 = vshrl.u32 %v2539, 7
    %v2541 = vsub.s32 %v2538, %v2540
    %v2542 = vrot.slane %v1857, %v2541
    %v2543 = vcombine.low %v2528, %v2535
    %v2545 = vunpack.c.l.s4 1966171168
    %v2546 = vunpack.c.0.s8 %v2545
    %v2547 = vlaneseq
    %v2548 = vshrl.u32 %v2547, 7
    %v2549 = vsub.s32 %v2546, %v2548
    %v2550 = vrot.slane %v2543, %v2549
    %v2552 = vunpack.c.l.s4 1966171168
    %v2553 = vunpack.c.0.s8 %v2552
    %v2554 = vlaneseq
    %v2555 = vshrl.u32 %v2554, 7
    %v2556 = vsub.s32 %v2553, %v2555
    %v2557 = vrot.slane %v2542, %v2556
    %v2558 = vcombine.low %v2550, %v2557
    %v2559 = vcombine.low %v1865, %v1867
    %v2560 = vcombine.low %v1850, %v1864
    %v2561 = vcombine.low %v1866, %v1868
    %v2562 = vcombine.low %v1892, %v1906
    %v2564 = vunpack.c.l.s4 1966171168
    %v2565 = vunpack.c.0.s8 %v2564
    %v2566 = vlaneseq
    %v2567 = vshrl.u32 %v2566, 7
    %v2568 = vsub.s32 %v2565, %v2567
    %v2569 = vrot.slane %v2559, %v2568
    %v2571 = vunpack.c.l.s4 1966171168
    %v2572 = vunpack.c.0.s8 %v2571
    %v2573 = vlaneseq
    %v2574 = vshrl.u32 %v2573, 7
    %v2575 = vsub.s32 %v2572, %v2574
    %v2576 = vrot.slane %v2560, %v2575
    %v2578 = vunpack.c.l.s4 1966171168
    %v2579 = vunpack.c.0.s8 %v2578
    %v2580 = vlaneseq
    %v2581 = vshrl.u32 %v2580, 7
    %v2582 = vsub.s32 %v2579, %v2581
    %v2583 = vrot.slane %v2561, %v2582
    %v2585 = vunpack.c.l.s4 1966171168
    %v2586 = vunpack.c.0.s8 %v2585
    %v2587 = vlaneseq
    %v2588 = vshrl.u32 %v2587, 7
    %v2589 = vsub.s32 %v2586, %v2588
    %v2590 = vrot.slane %v2562, %v2589
    %v2591 = vcombine.low %v2569, %v2576
    %v2592 = vcombine.low %v2583, %v2590
    %v2594 = vunpack.c.l.s4 1966171168
    %v2595 = vunpack.c.0.s8 %v2594
    %v2596 = vlaneseq
    %v2597 = vshrl.u32 %v2596, 7
    %v2598 = vsub.s32 %v2595, %v2597
    %v2599 = vrot.slane %v2591, %v2598
    %v2601 = vunpack.c.l.s4 1966171168
    %v2602 = vunpack.c.0.s8 %v2601
    %v2603 = vlaneseq
    %v2604 = vshrl.u32 %v2603, 7
    %v2605 = vsub.s32 %v2602, %v2604
    %v2606 = vrot.slane %v2592, %v2605
    %v2607 = vcombine.low %v2599, %v2606
    %v2608 = vcombine.low %v1914, %v1916
    %v2609 = vcombine.low %v1899, %v1913
    %v2610 = vcombine.low %v1915, %v1917
    %v2611 = vcombine.low %v1941, %v1955
    %v2613 = vunpack.c.l.s4 1966171168
    %v2614 = vunpack.c.0.s8 %v2613
    %v2615 = vlaneseq
    %v2616 = vshrl.u32 %v2615, 7
    %v2617 = vsub.s32 %v2614, %v2616
    %v2618 = vrot.slane %v2608, %v2617
    %v2620 = vunpack.c.l.s4 1966171168
    %v2621 = vunpack.c.0.s8 %v2620
    %v2622 = vlaneseq
    %v2623 = vshrl.u32 %v2622, 7
    %v2624 = vsub.s32 %v2621, %v2623
    %v2625 = vrot.slane %v2609, %v2624
    %v2627 = vunpack.c.l.s4 1966171168
    %v2628 = vunpack.c.0.s8 %v2627
    %v2629 = vlaneseq
    %v2630 = vshrl.u32 %v2629, 7
    %v2631 = vsub.s32 %v2628, %v2630
    %v2632 = vrot.slane %v2610, %v2631
    %v2634 = vunpack.c.l.s4 1966171168
    %v2635 = vunpack.c.0.s8 %v2634
    %v2636 = vlaneseq
    %v2637 = vshrl.u32 %v2636, 7
    %v2638 = vsub.s32 %v2635, %v2637
    %v2639 = vrot.slane %v2611, %v2638
    %v2640 = vcombine.low %v2618, %v2625
    %v2641 = vcombine.low %v2632, %v2639
    %v2643 = vunpack.c.l.s4 1966171168
    %v2644 = vunpack.c.0.s8 %v2643
    %v2645 = vlaneseq
    %v2646 = vshrl.u32 %v2645, 7
    %v2647 = vsub.s32 %v2644, %v2646
    %v2648 = vrot.slane %v2640, %v2647
    %v2650 = vunpack.c.l.s4 1966171168
    %v2651 = vunpack.c.0.s8 %v2650
    %v2652 = vlaneseq
    %v2653 = vshrl.u32 %v2652, 7
    %v2654 = vsub.s32 %v2651, %v2653
    %v2655 = vrot.slane %v2641, %v2654
    %v2656 = vcombine.low %v2648, %v2655
    %v2657 = vcombine.low %v1963, %v1965
    %v2658 = vcombine.low %v1948, %v1962
    %v2659 = vcombine.low %v1964, %v1966
    %v2660 = vcombine.low %v1990, %v2004
    %v2662 = vunpack.c.l.s4 1966171168
    %v2663 = vunpack.c.0.s8 %v2662
    %v2664 = vlaneseq
    %v2665 = vshrl.u32 %v2664, 7
    %v2666 = vsub.s32 %v2663, %v2665
    %v2667 = vrot.slane %v2657, %v2666
    %v2669 = vunpack.c.l.s4 1966171168
    %v2670 = vunpack.c.0.s8 %v2669
    %v2671 = vlaneseq
    %v2672 = vshrl.u32 %v2671, 7
    %v2673 = vsub.s32 %v2670, %v2672
    %v2674 = vrot.slane %v2658, %v2673
    %v2676 = vunpack.c.l.s4 1966171168
    %v2677 = vunpack.c.0.s8 %v2676
    %v2678 = vlaneseq
    %v2679 = vshrl.u32 %v2678, 7
    %v2680 = vsub.s32 %v2677, %v2679
    %v2681 = vrot.slane %v2659, %v2680
    %v2683 = vunpack.c.l.s4 1966171168
    %v2684 = vunpack.c.0.s8 %v2683
    %v2685 = vlaneseq
    %v2686 = vshrl.u32 %v2685, 7
    %v2687 = vsub.s32 %v2684, %v2686
    %v2688 = vrot.slane %v2660, %v2687
    %v2689 = vcombine.low %v2667, %v2674
    %v2690 = vcombine.low %v2681, %v2688
    %v2692 = vunpack.c.l.s4 1966171168
    %v2693 = vunpack.c.0.s8 %v2692
    %v2694 = vlaneseq
    %v2695 = vshrl.u32 %v2694, 7
    %v2696 = vsub.s32 %v2693, %v2695
    %v2697 = vrot.slane %v2689, %v2696
    %v2699 = vunpack.c.l.s4 1966171168
    %v2700 = vunpack.c.0.s8 %v2699
    %v2701 = vlaneseq
    %v2702 = vshrl.u32 %v2701, 7
    %v2703 = vsub.s32 %v2700, %v2702
    %v2704 = vrot.slane %v2690, %v2703
    %v2705 = vcombine.low %v2697, %v2704
    %v2706 = vcombine.low %v2012, %v2014
    %v2707 = vcombine.low %v1997, %v2011
    %v2709 = vunpack.c.l.s4 1966171168
    %v2710 = vunpack.c.0.s8 %v2709
    %v2711 = vlaneseq
    %v2712 = vshrl.u32 %v2711, 7
    %v2713 = vsub.s32 %v2710, %v2712
    %v2714 = vrot.slane %v2706, %v2713
    %v2716 = vunpack.c.l.s4 1966171168
    %v2717 = vunpack.c.0.s8 %v2716
    %v2718 = vlaneseq
    %v2719 = vshrl.u32 %v2718, 7
    %v2720 = vsub.s32 %v2717, %v2719
    %v2721 = vrot.slane %v2707, %v2720
    %v2723 = vunpack.c.l.s4 1966171168
    %v2724 = vunpack.c.0.s8 %v2723
    %v2725 = vlaneseq
    %v2726 = vshrl.u32 %v2725, 7
    %v2727 = vsub.s32 %v2724, %v2726
    %v2728 = vrot.slane %v2013, %v2727
    %v2729 = vcombine.low %v2714, %v2721
    %v2731 = vunpack.c.l.s4 1966171168
    %v2732 = vunpack.c.0.s8 %v2731
    %v2733 = vlaneseq
    %v2734 = vshrl.u32 %v2733, 7
    %v2735 = vsub.s32 %v2732, %v2734
    %v2736 = vrot.slane %v2729, %v2735
    %v2738 = vunpack.c.l.s4 1966171168
    %v2739 = vunpack.c.0.s8 %v2738
    %v2740 = vlaneseq
    %v2741 = vshrl.u32 %v2740, 7
    %v2742 = vsub.s32 %v2739, %v2741
    %v2743 = vrot.slane %v2728, %v2742
    %v2744 = vcombine.low %v2736, %v2743
    %v2745 = vcombine.low %v2015, %v2039
    %v2746 = vcombine.low %v2053, %v2061
    %v2747 = vcombine.low %v2063, %v2046
    %v2748 = vcombine.low %v2060, %v2062
    %v2750 = vunpack.c.l.s4 1966171168
    %v2751 = vunpack.c.0.s8 %v2750
    %v2752 = vlaneseq
    %v2753 = vshrl.u32 %v2752, 7
    %v2754 = vsub.s32 %v2751, %v2753
    %v2755 = vrot.slane %v2745, %v2754
    %v2757 = vunpack.c.l.s4 1966171168
    %v2758 = vunpack.c.0.s8 %v2757
    %v2759 = vlaneseq
    %v2760 = vshrl.u32 %v2759, 7
    %v2761 = vsub.s32 %v2758, %v2760
    %v2762 = vrot.slane %v2746, %v2761
    %v2764 = vunpack.c.l.s4 1966171168
    %v2765 = vunpack.c.0.s8 %v2764
    %v2766 = vlaneseq
    %v2767 = vshrl.u32 %v2766, 7
    %v2768 = vsub.s32 %v2765, %v2767
    %v2769 = vrot.slane %v2747, %v2768
    %v2771 = vunpack.c.l.s4 1966171168
    %v2772 = vunpack.c.0.s8 %v2771
    %v2773 = vlaneseq
    %v2774 = vshrl.u32 %v2773, 7
    %v2775 = vsub.s32 %v2772, %v2774
    %v2776 = vrot.slane %v2748, %v2775
    %v2777 = vcombine.low %v2755, %v2762
    %v2778 = vcombine.low %v2769, %v2776
    %v2780 = vunpack.c.l.s4 1966171168
    %v2781 = vunpack.c.0.s8 %v2780
    %v2782 = vlaneseq
    %v2783 = vshrl.u32 %v2782, 7
    %v2784 = vsub.s32 %v2781, %v2783
    %v2785 = vrot.slane %v2777, %v2784
    %v2787 = vunpack.c.l.s4 1966171168
    %v2788 = vunpack.c.0.s8 %v2787
    %v2789 = vlaneseq
    %v2790 = vshrl.u32 %v2789, 7
    %v2791 = vsub.s32 %v2788, %v2790
    %v2792 = vrot.slane %v2778, %v2791
    %v2793 = vcombine.low %v2785, %v2792
    %v2794 = vcombine.low %v2064, %v2088
    %v2795 = vcombine.low %v2102, %v2110
    %v2796 = vcombine.low %v2112, %v2095
    %v2797 = vcombine.low %v2109, %v2111
    %v2799 = vunpack.c.l.s4 1966171168
    %v2800 = vunpack.c.0.s8 %v2799
    %v2801 = vlaneseq
    %v2802 = vshrl.u32 %v2801, 7
    %v2803 = vsub.s32 %v2800, %v2802
    %v2804 = vrot.slane %v2794, %v2803
    %v2806 = vunpack.c.l.s4 1966171168
    %v2807 = vunpack.c.0.s8 %v2806
    %v2808 = vlaneseq
    %v2809 = vshrl.u32 %v2808, 7
    %v2810 = vsub.s32 %v2807, %v2809
    %v2811 = vrot.slane %v2795, %v2810
    %v2813 = vunpack.c.l.s4 1966171168
    %v2814 = vunpack.c.0.s8 %v2813
    %v2815 = vlaneseq
    %v2816 = vshrl.u32 %v2815, 7
    %v2817 = vsub.s32 %v2814, %v2816
    %v2818 = vrot.slane %v2796, %v2817
    %v2820 = vunpack.c.l.s4 1966171168
    %v2821 = vunpack.c.0.s8 %v2820
    %v2822 = vlaneseq
    %v2823 = vshrl.u32 %v2822, 7
    %v2824 = vsub.s32 %v2821, %v2823
    %v2825 = vrot.slane %v2797, %v2824
    %v2826 = vcombine.low %v2804, %v2811
    %v2827 = vcombine.low %v2818, %v2825
    %v2829 = vunpack.c.l.s4 1966171168
    %v2830 = vunpack.c.0.s8 %v2829
    %v2831 = vlaneseq
    %v2832 = vshrl.u32 %v2831, 7
    %v2833 = vsub.s32 %v2830, %v2832
    %v2834 = vrot.slane %v2826, %v2833
    %v2836 = vunpack.c.l.s4 1966171168
    %v2837 = vunpack.c.0.s8 %v2836
    %v2838 = vlaneseq
    %v2839 = vshrl.u32 %v2838, 7
    %v2840 = vsub.s32 %v2837, %v2839
    %v2841 = vrot.slane %v2827, %v2840
    %v2842 = vcombine.low %v2834, %v2841
    %v2843 = vcombine.low %v2113, %v2137
    %v2844 = vcombine.low %v2151, %v2159
    %v2845 = vcombine.low %v2161, %v2144
    %v2846 = vcombine.low %v2158, %v2160
    %v2848 = vunpack.c.l.s4 1966171168
    %v2849 = vunpack.c.0.s8 %v2848
    %v2850 = vlaneseq
    %v2851 = vshrl.u32 %v2850, 7
    %v2852 = vsub.s32 %v2849, %v2851
    %v2853 = vrot.slane %v2843, %v2852
    %v2855 = vunpack.c.l.s4 1966171168
    %v2856 = vunpack.c.0.s8 %v2855
    %v2857 = vlaneseq
    %v2858 = vshrl.u32 %v2857, 7
    %v2859 = vsub.s32 %v2856, %v2858
    %v2860 = vrot.slane %v2844, %v2859
    %v2862 = vunpack.c.l.s4 1966171168
    %v2863 = vunpack.c.0.s8 %v2862
    %v2864 = vlaneseq
    %v2865 = vshrl.u32 %v2864, 7
    %v2866 = vsub.s32 %v2863, %v2865
    %v2867 = vrot.slane %v2845, %v2866
    %v2869 = vunpack.c.l.s4 1966171168
    %v2870 = vunpack.c.0.s8 %v2869
    %v2871 = vlaneseq
    %v2872 = vshrl.u32 %v2871, 7
    %v2873 = vsub.s32 %v2870, %v2872
    %v2874 = vrot.slane %v2846, %v2873
    %v2875 = vcombine.low %v2853, %v2860
    %v2876 = vcombine.low %v2867, %v2874
    %v2878 = vunpack.c.l.s4 1966171168
    %v2879 = vunpack.c.0.s8 %v2878
    %v2880 = vlaneseq
    %v2881 = vshrl.u32 %v2880, 7
    %v2882 = vsub.s32 %v2879, %v2881
    %v2883 = vrot.slane %v2875, %v2882
    %v2885 = vunpack.c.l.s4 1966171168
    %v2886 = vunpack.c.0.s8 %v2885
    %v2887 = vlaneseq
    %v2888 = vshrl.u32 %v2887, 7
    %v2889 = vsub.s32 %v2886, %v2888
    %v2890 = vrot.slane %v2876, %v2889
    %v2891 = vcombine.low %v2883, %v2890
    %v2892 = vcombine.low %v2162, %v2177
    %v2893 = vcombine.low %v2184, %v2185
    %v2895 = vunpack.c.l.s4 1966171168
    %v2896 = vunpack.c.0.s8 %v2895
    %v2897 = vlaneseq
    %v2898 = vshrl.u32 %v2897, 7
    %v2899 = vsub.s32 %v2896, %v2898
    %v2900 = vrot.slane %v2892, %v2899
    %v2902 = vunpack.c.l.s4 1966171168
    %v2903 = vunpack.c.0.s8 %v2902
    %v2904 = vlaneseq
    %v2905 = vshrl.u32 %v2904, 7
    %v2906 = vsub.s32 %v2903, %v2905
    %v2907 = vrot.slane %v2893, %v2906
    %v2909 = vunpack.c.l.s4 1966171168
    %v2910 = vunpack.c.0.s8 %v2909
    %v2911 = vlaneseq
    %v2912 = vshrl.u32 %v2911, 7
    %v2913 = vsub.s32 %v2910, %v2912
    %v2914 = vrot.slane %v2186, %v2913
    %v2915 = vcombine.low %v2900, %v2907
    %v2917 = vunpack.c.l.s4 1966171168
    %v2918 = vunpack.c.0.s8 %v2917
    %v2919 = vlaneseq
    %v2920 = vshrl.u32 %v2919, 7
    %v2921 = vsub.s32 %v2918, %v2920
    %v2922 = vrot.slane %v2915, %v2921
    %v2924 = vunpack.c.l.s4 1966171168
    %v2925 = vunpack.c.0.s8 %v2924
    %v2926 = vlaneseq
    %v2927 = vshrl.u32 %v2926, 7
    %v2928 = vsub.s32 %v2925, %v2927
    %v2929 = vrot.slane %v2914, %v2928
    %v2930 = vcombine.low %v2922, %v2929
    %vm2947 = vcmask 130048
    %v2948 = vsel %vm2947, %v2235, -inf
    %v2949 = vsel %vm2947, %v2284, -inf
    %v2950 = vmax.f32 %v2948, %v2949
    %v2951 = vsel %vm2947, %v2333, -inf
    %v2952 = vmax.f32 %v2950, %v2951
    %vm2953 = vcmask 126976
    %v2954 = vsel %vm2953, %v2372, -inf
    %v2955 = vmax.f32 %v2952, %v2954
    %v2956 = vrot.slane %v2955, 4
    %v2957 = vmax.f32 %v2955, %v2956
    %v2958 = vrot.slane %v2957, 2
    %v2959 = vmax.f32 %v2957, %v2958
    %v2960 = vrot.slane %v2959, 1
    %v2961 = vmax.f32 %v2959, %v2960
    %v2962 = vsel %vm2947, %v2421, -inf
    %v2963 = vsel %vm2947, %v2470, -inf
    %v2964 = vmax.f32 %v2962, %v2963
    %v2965 = vsel %vm2947, %v2519, -inf
    %v2966 = vmax.f32 %v2964, %v2965
    %v2967 = vsel %vm2953, %v2558, -inf
    %v2968 = vmax.f32 %v2966, %v2967
    %v2969 = vrot.slane %v2968, 4
    %v2970 = vmax.f32 %v2968, %v2969
    %v2971 = vrot.slane %v2970, 2
    %v2972 = vmax.f32 %v2970, %v2971
    %v2973 = vrot.slane %v2972, 1
    %v2974 = vmax.f32 %v2972, %v2973
    %v2975 = vsel %vm2947, %v2607, -inf
    %v2976 = vsel %vm2947, %v2656, -inf
    %v2977 = vmax.f32 %v2975, %v2976
    %v2978 = vsel %vm2947, %v2705, -inf
    %v2979 = vmax.f32 %v2977, %v2978
    %v2980 = vsel %vm2953, %v2744, -inf
    %v2981 = vmax.f32 %v2979, %v2980
    %v2982 = vrot.slane %v2981, 4
    %v2983 = vmax.f32 %v2981, %v2982
    %v2984 = vrot.slane %v2983, 2
    %v2985 = vmax.f32 %v2983, %v2984
    %v2986 = vrot.slane %v2985, 1
    %v2987 = vmax.f32 %v2985, %v2986
    %v2988 = vsel %vm2947, %v2793, -inf
    %v2989 = vsel %vm2947, %v2842, -inf
    %v2990 = vmax.f32 %v2988, %v2989
    %v2991 = vsel %vm2947, %v2891, -inf
    %v2992 = vmax.f32 %v2990, %v2991
    %v2993 = vsel %vm2953, %v2930, -inf
    %v2994 = vmax.f32 %v2992, %v2993
    %v2995 = vrot.slane %v2994, 4
    %v2996 = vmax.f32 %v2994, %v2995
    %v2997 = vrot.slane %v2996, 2
    %v2998 = vmax.f32 %v2996, %v2997
    %v2999 = vrot.slane %v2998, 1
    %v3000 = vmax.f32 %v2998, %v2999
    %v3002 = vlaneseq
    %v3003 = vshrl.u32 %v3002, 7
    %v3004 = vsub.s32 0, %v3003
    %v3005 = vrot.slane %v45, %v3004
    %v3007 = vadd.f32 %v2961, %v3005
    %v3008 = vadd.f32 %v2974, %v3005
    %v3009 = vadd.f32 %v2987, %v3005
    %v3010 = vadd.f32 %v3000, %v3005
    %v3011 = vld [vmem:[%s3] sm:$0xf]
    %v3012 = vld [vmem:[%s3 + $0x4] sm:$0xf]
    %v3013 = vld [vmem:[%s3 + $0x8] sm:$0xf]
    %v3014 = vld [vmem:[%s3 + $0xc] sm:$0xf]
    %v3015 = vld [vmem:[%s3 + $0x10] sm:$0xf]
    %v3016 = vld [vmem:[%s3 + $0x14] sm:$0xf]
    %v3017 = vld [vmem:[%s3 + $0x18] sm:$0xf]
    %v3018 = vld [vmem:[%s3 + $0x1c] sm:$0xf]
    %v3019 = vld [vmem:[%s3 + $0x20] sm:$0xf]
    %v3020 = vld [vmem:[%s3 + $0x24] sm:$0xf]
    %v3021 = vld [vmem:[%s3 + $0x28] sm:$0xf]
    %v3022 = vld [vmem:[%s3 + $0x2c] sm:$0xf]
    %v3023 = vld [vmem:[%s3 + $0x30] sm:$0xf]
    %v3024 = vld [vmem:[%s3 + $0x34] sm:$0xf]
    %v3025 = vld [vmem:[%s3 + $0x38] sm:$0xf]
    %v3026 = vld [vmem:[%s3 + $0x3c] sm:$0xf]
    %v3027 = vld [vmem:[%s3 + $0x40] sm:$0xf]
    %v3028 = vld [vmem:[%s3 + $0x44] sm:$0xf]
    %v3029 = vld [vmem:[%s3 + $0x48] sm:$0xf]
    %v3030 = vld [vmem:[%s3 + $0x4c] sm:$0xf]
    %v3031 = vld [vmem:[%s3 + $0x50] sm:$0xf]
    %v3032 = vld [vmem:[%s4] sm:$0x1]
    %v3033 = vld [vmem:[%s0] sm:$0xf]
    %v3034 = vld [vmem:[%s0 + $0x4] sm:$0xf]
    %v3035 = vld [vmem:[%s0 + $0x8] sm:$0xf]
    %v3036 = vld [vmem:[%s0 + $0xc] sm:$0x1]
    %v3037 = vld [vmem:[%s0 + $0x10] sm:$0xf]
    %v3038 = vld [vmem:[%s0 + $0x14] sm:$0xf]
    %v3039 = vld [vmem:[%s0 + $0x18] sm:$0xf]
    %v3040 = vld [vmem:[%s0 + $0x1c] sm:$0x1]
    %v3041 = vld [vmem:[%s0 + $0x20] sm:$0xf]
    %v3042 = vld [vmem:[%s0 + $0x24] sm:$0xf]
    %v3043 = vld [vmem:[%s0 + $0x28] sm:$0xf]
    %v3044 = vld [vmem:[%s0 + $0x2c] sm:$0x1]
    %v3045 = vld [vmem:[%s0 + $0x30] sm:$0xf]
    %v3046 = vld [vmem:[%s0 + $0x34] sm:$0xf]
    %v3047 = vld [vmem:[%s0 + $0x38] sm:$0xf]
    %v3048 = vld [vmem:[%s0 + $0x3c] sm:$0x1]
    %v3049 = vld [vmem:[%s0] sm:$0xe]
    %v3050 = vld [vmem:[%s0 + $0xc] sm:$0x3]
    %v3051 = vld [vmem:[%s0 + $0x10] sm:$0xe]
    %v3052 = vld [vmem:[%s0 + $0x1c] sm:$0x3]
    %v3053 = vld [vmem:[%s0 + $0x20] sm:$0xe]
    %v3054 = vld [vmem:[%s0 + $0x2c] sm:$0x3]
    %v3055 = vld [vmem:[%s0 + $0x30] sm:$0xe]
    %v3056 = vld [vmem:[%s0 + $0x3c] sm:$0x3]
    %v3057 = vld [vmem:[%s0] sm:$0xc]
    %v3058 = vld [vmem:[%s0 + $0xc] sm:$0x7]
    %v3059 = vld [vmem:[%s0 + $0x10] sm:$0xc]
    %v3060 = vld [vmem:[%s0 + $0x1c] sm:$0x7]
    %v3061 = vld [vmem:[%s0 + $0x20] sm:$0xc]
    %v3062 = vld [vmem:[%s0 + $0x2c] sm:$0x7]
    %v3063 = vld [vmem:[%s0 + $0x30] sm:$0xc]
    %v3064 = vld [vmem:[%s0 + $0x3c] sm:$0x7]
    %v3065 = vld [vmem:[%s0] sm:$0x8]
    %v3066 = vld [vmem:[%s0 + $0xc] sm:$0xf]
    %v3067 = vld [vmem:[%s0 + $0x10] sm:$0x8]
    %v3068 = vld [vmem:[%s0 + $0x1c] sm:$0xf]
    %v3069 = vld [vmem:[%s0 + $0x20] sm:$0x8]
    %v3070 = vld [vmem:[%s0 + $0x2c] sm:$0xf]
    %v3071 = vld [vmem:[%s0 + $0x30] sm:$0x8]
    %v3072 = vld [vmem:[%s0 + $0x3c] sm:$0xf]
    %v3089 = vunpack.c.l.b16 %v3033
    %v3090 = vunpack.c.l.b16 %v3034
    %v3091 = vunpack.c.l.b16 %v3035
    %v3092 = vunpack.c.l.b16 %v3036
    %v3093 = vunpack.c.l.b16 %v3037
    %v3094 = vunpack.c.l.b16 %v3038
    %v3095 = vunpack.c.l.b16 %v3039
    %v3096 = vunpack.c.l.b16 %v3040
    %v3097 = vunpack.c.l.b16 %v3041
    %v3098 = vunpack.c.l.b16 %v3042
    %v3099 = vunpack.c.l.b16 %v3043
    %v3100 = vunpack.c.l.b16 %v3044
    %v3101 = vunpack.c.l.b16 %v3045
    %v3102 = vunpack.c.l.b16 %v3046
    %v3103 = vunpack.c.l.b16 %v3047
    %v3104 = vunpack.c.l.b16 %v3048
    %v3105 = vpack.c.b16 %v3090, %v3089
    %v3106 = vpack.c.b16 %v3092, %v3091
    %v3107 = vpack.c.b16 %v3094, %v3093
    %v3108 = vpack.c.b16 %v3096, %v3095
    %v3109 = vpack.c.b16 %v3098, %v3097
    %v3110 = vpack.c.b16 %v3100, %v3099
    %v3111 = vpack.c.b16 %v3102, %v3101
    %v3112 = vpack.c.b16 %v3104, %v3103
    %v3114 = vshrl.u32 %v3105, 16
    %v3116 = vshll.u32 %v3105, 16
    %v3118 = vrot.slane %v3116, 1
    %v3119 = vor.u32 %v3114, %v3118
    %v3121 = vshll.u32 %v3106, 16
    %v3123 = vrot.slane %v3121, 1
    %v3124 = vsel %vm110, %v3119, %v3123
    %v3125 = vshrl.u32 %v3106, 16
    %v3127 = vor.u32 %v3125, %v3123
    %v3129 = vshrl.u32 %v3107, 16
    %v3131 = vshll.u32 %v3107, 16
    %v3133 = vrot.slane %v3131, 1
    %v3134 = vor.u32 %v3129, %v3133
    %v3136 = vshll.u32 %v3108, 16
    %v3138 = vrot.slane %v3136, 1
    %v3139 = vsel %vm110, %v3134, %v3138
    %v3140 = vshrl.u32 %v3108, 16
    %v3142 = vor.u32 %v3140, %v3138
    %v3144 = vshrl.u32 %v3109, 16
    %v3146 = vshll.u32 %v3109, 16
    %v3148 = vrot.slane %v3146, 1
    %v3149 = vor.u32 %v3144, %v3148
    %v3151 = vshll.u32 %v3110, 16
    %v3153 = vrot.slane %v3151, 1
    %v3154 = vsel %vm110, %v3149, %v3153
    %v3155 = vshrl.u32 %v3110, 16
    %v3157 = vor.u32 %v3155, %v3153
    %v3159 = vshrl.u32 %v3111, 16
    %v3161 = vshll.u32 %v3111, 16
    %v3163 = vrot.slane %v3161, 1
    %v3164 = vor.u32 %v3159, %v3163
    %v3166 = vshll.u32 %v3112, 16
    %v3168 = vrot.slane %v3166, 1
    %v3169 = vsel %vm110, %v3164, %v3168
    %v3170 = vshrl.u32 %v3112, 16
    %v3172 = vor.u32 %v3170, %v3168
    %3173 = vrot.lane.b32.xlu0 %v3124, 21
    %v3174 = vpop.permute.xlu0 %3173
    %3175 = vrot.lane.b32.xlu0 %v3127, 21
    %v3176 = vpop.permute.xlu0 %3175
    %3177 = vrot.lane.b32.xlu0 %v3139, 21
    %v3178 = vpop.permute.xlu0 %3177
    %3179 = vrot.lane.b32.xlu0 %v3142, 21
    %v3180 = vpop.permute.xlu0 %3179
    %3181 = vrot.lane.b32.xlu0 %v3154, 21
    %v3182 = vpop.permute.xlu0 %3181
    %3183 = vrot.lane.b32.xlu0 %v3157, 21
    %v3184 = vpop.permute.xlu0 %3183
    %3185 = vrot.lane.b32.xlu0 %v3169, 21
    %v3186 = vpop.permute.xlu0 %3185
    %3187 = vrot.lane.b32.xlu0 %v3172, 21
    %v3188 = vpop.permute.xlu0 %3187
    %v3197 = vunpack.c.l.b16 %v3049
    %v3198 = vunpack.c.l.b16 %v3050
    %v3199 = vunpack.c.l.b16 %v3051
    %v3200 = vunpack.c.l.b16 %v3052
    %v3201 = vunpack.c.l.b16 %v3053
    %v3202 = vunpack.c.l.b16 %v3054
    %v3203 = vunpack.c.l.b16 %v3055
    %v3204 = vunpack.c.l.b16 %v3056
    %v3205 = vpack.c.b16 %v3090, %v3197
    %v3206 = vpack.c.b16 %v3198, %v3091
    %v3207 = vpack.c.b16 %v3094, %v3199
    %v3208 = vpack.c.b16 %v3200, %v3095
    %v3209 = vpack.c.b16 %v3098, %v3201
    %v3210 = vpack.c.b16 %v3202, %v3099
    %v3211 = vpack.c.b16 %v3102, %v3203
    %v3212 = vpack.c.b16 %v3204, %v3103
    %v3213 = vrot.slane %v3205, 1
    %v3214 = vrot.slane %v3206, 1
    %v3215 = vsel %vm211, %v3213, %v3214
    %v3216 = vrot.slane %v3207, 1
    %v3217 = vrot.slane %v3208, 1
    %v3218 = vsel %vm211, %v3216, %v3217
    %v3219 = vrot.slane %v3209, 1
    %v3220 = vrot.slane %v3210, 1
    %v3221 = vsel %vm211, %v3219, %v3220
    %v3222 = vrot.slane %v3211, 1
    %v3223 = vrot.slane %v3212, 1
    %v3224 = vsel %vm211, %v3222, %v3223
    %3225 = vrot.lane.b32.xlu0 %v3215, 42
    %v3226 = vpop.permute.xlu0 %3225
    %3227 = vrot.lane.b32.xlu0 %v3214, 42
    %v3228 = vpop.permute.xlu0 %3227
    %3229 = vrot.lane.b32.xlu0 %v3218, 42
    %v3230 = vpop.permute.xlu0 %3229
    %3231 = vrot.lane.b32.xlu0 %v3217, 42
    %v3232 = vpop.permute.xlu0 %3231
    %3233 = vrot.lane.b32.xlu0 %v3221, 42
    %v3234 = vpop.permute.xlu0 %3233
    %3235 = vrot.lane.b32.xlu0 %v3220, 42
    %v3236 = vpop.permute.xlu0 %3235
    %3237 = vrot.lane.b32.xlu0 %v3224, 42
    %v3238 = vpop.permute.xlu0 %3237
    %3239 = vrot.lane.b32.xlu0 %v3223, 42
    %v3240 = vpop.permute.xlu0 %3239
    %v3242 = vshrl.u32 %v3205, 16
    %v3244 = vrot.slane %v3242, 1
    %v3245 = vshll.u32 %v3205, 16
    %v3247 = vrot.slane %v3245, 2
    %v3248 = vor.u32 %v3244, %v3247
    %v3250 = vshrl.u32 %v3206, 16
    %v3252 = vrot.slane %v3250, 1
    %v3253 = vshll.u32 %v3206, 16
    %v3255 = vrot.slane %v3253, 2
    %v3256 = vor.u32 %v3252, %v3255
    %v3257 = vsel %vm240, %v3248, %v3256
    %v3259 = vshrl.u32 %v3207, 16
    %v3261 = vrot.slane %v3259, 1
    %v3262 = vshll.u32 %v3207, 16
    %v3264 = vrot.slane %v3262, 2
    %v3265 = vor.u32 %v3261, %v3264
    %v3267 = vshrl.u32 %v3208, 16
    %v3269 = vrot.slane %v3267, 1
    %v3270 = vshll.u32 %v3208, 16
    %v3272 = vrot.slane %v3270, 2
    %v3273 = vor.u32 %v3269, %v3272
    %v3274 = vsel %vm240, %v3265, %v3273
    %v3276 = vshrl.u32 %v3209, 16
    %v3278 = vrot.slane %v3276, 1
    %v3279 = vshll.u32 %v3209, 16
    %v3281 = vrot.slane %v3279, 2
    %v3282 = vor.u32 %v3278, %v3281
    %v3284 = vshrl.u32 %v3210, 16
    %v3286 = vrot.slane %v3284, 1
    %v3287 = vshll.u32 %v3210, 16
    %v3289 = vrot.slane %v3287, 2
    %v3290 = vor.u32 %v3286, %v3289
    %v3291 = vsel %vm240, %v3282, %v3290
    %v3293 = vshrl.u32 %v3211, 16
    %v3295 = vrot.slane %v3293, 1
    %v3296 = vshll.u32 %v3211, 16
    %v3298 = vrot.slane %v3296, 2
    %v3299 = vor.u32 %v3295, %v3298
    %v3301 = vshrl.u32 %v3212, 16
    %v3303 = vrot.slane %v3301, 1
    %v3304 = vshll.u32 %v3212, 16
    %v3306 = vrot.slane %v3304, 2
    %v3307 = vor.u32 %v3303, %v3306
    %v3308 = vsel %vm240, %v3299, %v3307
    %3309 = vrot.lane.b32.xlu0 %v3257, 63
    %v3310 = vpop.permute.xlu0 %3309
    %3311 = vrot.lane.b32.xlu0 %v3256, 63
    %v3312 = vpop.permute.xlu0 %3311
    %3313 = vrot.lane.b32.xlu0 %v3274, 63
    %v3314 = vpop.permute.xlu0 %3313
    %3315 = vrot.lane.b32.xlu0 %v3273, 63
    %v3316 = vpop.permute.xlu0 %3315
    %3317 = vrot.lane.b32.xlu0 %v3291, 63
    %v3318 = vpop.permute.xlu0 %3317
    %3319 = vrot.lane.b32.xlu0 %v3290, 63
    %v3320 = vpop.permute.xlu0 %3319
    %3321 = vrot.lane.b32.xlu0 %v3308, 63
    %v3322 = vpop.permute.xlu0 %3321
    %3323 = vrot.lane.b32.xlu0 %v3307, 63
    %v3324 = vpop.permute.xlu0 %3323
    %v3333 = vunpack.c.l.b16 %v3057
    %v3334 = vunpack.c.l.b16 %v3058
    %v3335 = vunpack.c.l.b16 %v3059
    %v3336 = vunpack.c.l.b16 %v3060
    %v3337 = vunpack.c.l.b16 %v3061
    %v3338 = vunpack.c.l.b16 %v3062
    %v3339 = vunpack.c.l.b16 %v3063
    %v3340 = vunpack.c.l.b16 %v3064
    %v3341 = vpack.c.b16 %v3090, %v3333
    %v3342 = vpack.c.b16 %v3334, %v3091
    %v3343 = vpack.c.b16 %v3094, %v3335
    %v3344 = vpack.c.b16 %v3336, %v3095
    %v3345 = vpack.c.b16 %v3098, %v3337
    %v3346 = vpack.c.b16 %v3338, %v3099
    %v3347 = vpack.c.b16 %v3102, %v3339
    %v3348 = vpack.c.b16 %v3340, %v3103
    %vm3349 = vcmask 1045504
    %v3350 = vrot.slane %v3341, 2
    %v3351 = vrot.slane %v3342, 2
    %v3352 = vsel %vm3349, %v3350, %v3351
    %v3353 = vrot.slane %v3343, 2
    %v3354 = vrot.slane %v3344, 2
    %v3355 = vsel %vm3349, %v3353, %v3354
    %v3356 = vrot.slane %v3345, 2
    %v3357 = vrot.slane %v3346, 2
    %v3358 = vsel %vm3349, %v3356, %v3357
    %v3359 = vrot.slane %v3347, 2
    %v3360 = vrot.slane %v3348, 2
    %v3361 = vsel %vm3349, %v3359, %v3360
    %3362 = vrot.lane.b32.xlu0 %v3352, 84
    %v3363 = vpop.permute.xlu0 %3362
    %3364 = vrot.lane.b32.xlu0 %v3351, 84
    %v3365 = vpop.permute.xlu0 %3364
    %3366 = vrot.lane.b32.xlu0 %v3355, 84
    %v3367 = vpop.permute.xlu0 %3366
    %3368 = vrot.lane.b32.xlu0 %v3354, 84
    %v3369 = vpop.permute.xlu0 %3368
    %3370 = vrot.lane.b32.xlu0 %v3358, 84
    %v3371 = vpop.permute.xlu0 %3370
    %3372 = vrot.lane.b32.xlu0 %v3357, 84
    %v3373 = vpop.permute.xlu0 %3372
    %3374 = vrot.lane.b32.xlu0 %v3361, 84
    %v3375 = vpop.permute.xlu0 %3374
    %3376 = vrot.lane.b32.xlu0 %v3360, 84
    %v3377 = vpop.permute.xlu0 %3376
    %vm3378 = vsmask.f32 5376
    %v3380 = vshrl.u32 %v3341, 16
    %v3382 = vrot.slane %v3380, 2
    %v3383 = vshll.u32 %v3341, 16
    %v3385 = vrot.slane %v3383, 3
    %v3386 = vor.u32 %v3382, %v3385
    %v3388 = vshrl.u32 %v3342, 16
    %v3390 = vrot.slane %v3388, 2
    %v3391 = vshll.u32 %v3342, 16
    %v3393 = vrot.slane %v3391, 3
    %v3394 = vor.u32 %v3390, %v3393
    %v3395 = vsel %vm3378, %v3386, %v3394
    %v3397 = vshrl.u32 %v3343, 16
    %v3399 = vrot.slane %v3397, 2
    %v3400 = vshll.u32 %v3343, 16
    %v3402 = vrot.slane %v3400, 3
    %v3403 = vor.u32 %v3399, %v3402
    %v3405 = vshrl.u32 %v3344, 16
    %v3407 = vrot.slane %v3405, 2
    %v3408 = vshll.u32 %v3344, 16
    %v3410 = vrot.slane %v3408, 3
    %v3411 = vor.u32 %v3407, %v3410
    %v3412 = vsel %vm3378, %v3403, %v3411
    %v3414 = vshrl.u32 %v3345, 16
    %v3416 = vrot.slane %v3414, 2
    %v3417 = vshll.u32 %v3345, 16
    %v3419 = vrot.slane %v3417, 3
    %v3420 = vor.u32 %v3416, %v3419
    %v3422 = vshrl.u32 %v3346, 16
    %v3424 = vrot.slane %v3422, 2
    %v3425 = vshll.u32 %v3346, 16
    %v3427 = vrot.slane %v3425, 3
    %v3428 = vor.u32 %v3424, %v3427
    %v3429 = vsel %vm3378, %v3420, %v3428
    %v3431 = vshrl.u32 %v3347, 16
    %v3433 = vrot.slane %v3431, 2
    %v3434 = vshll.u32 %v3347, 16
    %v3436 = vrot.slane %v3434, 3
    %v3437 = vor.u32 %v3433, %v3436
    %v3439 = vshrl.u32 %v3348, 16
    %v3441 = vrot.slane %v3439, 2
    %v3442 = vshll.u32 %v3348, 16
    %v3444 = vrot.slane %v3442, 3
    %v3445 = vor.u32 %v3441, %v3444
    %v3446 = vsel %vm3378, %v3437, %v3445
    %3447 = vrot.lane.b32.xlu0 %v3395, 105
    %v3448 = vpop.permute.xlu0 %3447
    %3449 = vrot.lane.b32.xlu0 %v3394, 105
    %v3450 = vpop.permute.xlu0 %3449
    %3451 = vrot.lane.b32.xlu0 %v3412, 105
    %v3452 = vpop.permute.xlu0 %3451
    %3453 = vrot.lane.b32.xlu0 %v3411, 105
    %v3454 = vpop.permute.xlu0 %3453
    %3455 = vrot.lane.b32.xlu0 %v3429, 105
    %v3456 = vpop.permute.xlu0 %3455
    %3457 = vrot.lane.b32.xlu0 %v3428, 105
    %v3458 = vpop.permute.xlu0 %3457
    %3459 = vrot.lane.b32.xlu0 %v3446, 105
    %v3460 = vpop.permute.xlu0 %3459
    %3461 = vrot.lane.b32.xlu0 %v3445, 105
    %v3462 = vpop.permute.xlu0 %3461
    %v3471 = vunpack.c.l.b16 %v3065
    %v3472 = vunpack.c.l.b16 %v3066
    %v3473 = vunpack.c.l.b16 %v3067
    %v3474 = vunpack.c.l.b16 %v3068
    %v3475 = vunpack.c.l.b16 %v3069
    %v3476 = vunpack.c.l.b16 %v3070
    %v3477 = vunpack.c.l.b16 %v3071
    %v3478 = vunpack.c.l.b16 %v3072
    %v3479 = vpack.c.b16 %v3090, %v3471
    %v3480 = vpack.c.b16 %v3472, %v3091
    %v3481 = vpack.c.b16 %v3094, %v3473
    %v3482 = vpack.c.b16 %v3474, %v3095
    %v3483 = vpack.c.b16 %v3098, %v3475
    %v3484 = vpack.c.b16 %v3476, %v3099
    %v3485 = vpack.c.b16 %v3102, %v3477
    %v3486 = vpack.c.b16 %v3478, %v3103
    %vm3487 = vcmask 1044480
    %v3488 = vrot.slane %v3479, 3
    %v3489 = vrot.slane %v3480, 3
    %v3490 = vsel %vm3487, %v3488, %v3489
    %v3491 = vrot.slane %v3481, 3
    %v3492 = vrot.slane %v3482, 3
    %v3493 = vsel %vm3487, %v3491, %v3492
    %v3494 = vrot.slane %v3483, 3
    %v3495 = vrot.slane %v3484, 3
    %v3496 = vsel %vm3487, %v3494, %v3495
    %v3497 = vrot.slane %v3485, 3
    %v3498 = vrot.slane %v3486, 3
    %v3499 = vsel %vm3487, %v3497, %v3498
    %3500 = vrot.lane.b32.xlu0 %v3490, 126
    %v3501 = vpop.permute.xlu0 %3500
    %3502 = vrot.lane.b32.xlu0 %v3489, 126
    %v3503 = vpop.permute.xlu0 %3502
    %3504 = vrot.lane.b32.xlu0 %v3493, 126
    %v3505 = vpop.permute.xlu0 %3504
    %3506 = vrot.lane.b32.xlu0 %v3492, 126
    %v3507 = vpop.permute.xlu0 %3506
    %3508 = vrot.lane.b32.xlu0 %v3496, 126
    %v3509 = vpop.permute.xlu0 %3508
    %3510 = vrot.lane.b32.xlu0 %v3495, 126
    %v3511 = vpop.permute.xlu0 %3510
    %3512 = vrot.lane.b32.xlu0 %v3499, 126
    %v3513 = vpop.permute.xlu0 %3512
    %3514 = vrot.lane.b32.xlu0 %v3498, 126
    %v3515 = vpop.permute.xlu0 %3514
    %vm3516 = vsmask.f32 4352
    %v3518 = vshrl.u32 %v3479, 16
    %v3520 = vrot.slane %v3518, 3
    %v3521 = vshll.u32 %v3479, 16
    %v3523 = vrot.slane %v3521, 4
    %v3524 = vor.u32 %v3520, %v3523
    %v3526 = vshrl.u32 %v3480, 16
    %v3528 = vrot.slane %v3526, 3
    %v3529 = vshll.u32 %v3480, 16
    %v3531 = vrot.slane %v3529, 4
    %v3532 = vor.u32 %v3528, %v3531
    %v3533 = vsel %vm3516, %v3524, %v3532
    %v3535 = vshrl.u32 %v3481, 16
    %v3537 = vrot.slane %v3535, 3
    %v3538 = vshll.u32 %v3481, 16
    %v3540 = vrot.slane %v3538, 4
    %v3541 = vor.u32 %v3537, %v3540
    %v3543 = vshrl.u32 %v3482, 16
    %v3545 = vrot.slane %v3543, 3
    %v3546 = vshll.u32 %v3482, 16
    %v3548 = vrot.slane %v3546, 4
    %v3549 = vor.u32 %v3545, %v3548
    %v3550 = vsel %vm3516, %v3541, %v3549
    %v3552 = vshrl.u32 %v3483, 16
    %v3554 = vrot.slane %v3552, 3
    %v3555 = vshll.u32 %v3483, 16
    %v3557 = vrot.slane %v3555, 4
    %v3558 = vor.u32 %v3554, %v3557
    %v3560 = vshrl.u32 %v3484, 16
    %v3562 = vrot.slane %v3560, 3
    %v3563 = vshll.u32 %v3484, 16
    %v3565 = vrot.slane %v3563, 4
    %v3566 = vor.u32 %v3562, %v3565
    %v3567 = vsel %vm3516, %v3558, %v3566
    %v3569 = vshrl.u32 %v3485, 16
    %v3571 = vrot.slane %v3569, 3
    %v3572 = vshll.u32 %v3485, 16
    %v3574 = vrot.slane %v3572, 4
    %v3575 = vor.u32 %v3571, %v3574
    %v3577 = vshrl.u32 %v3486, 16
    %v3579 = vrot.slane %v3577, 3
    %v3580 = vshll.u32 %v3486, 16
    %v3582 = vrot.slane %v3580, 4
    %v3583 = vor.u32 %v3579, %v3582
    %v3584 = vsel %vm3516, %v3575, %v3583
    %3585 = vrot.lane.b32.xlu0 %v3533, 19
    %v3586 = vpop.permute.xlu0 %3585
    %3587 = vrot.lane.b32.xlu0 %v3532, 19
    %v3588 = vpop.permute.xlu0 %3587
    %3589 = vrot.lane.b32.xlu0 %v3550, 19
    %v3590 = vpop.permute.xlu0 %3589
    %3591 = vrot.lane.b32.xlu0 %v3549, 19
    %v3592 = vpop.permute.xlu0 %3591
    %3593 = vrot.lane.b32.xlu0 %v3567, 19
    %v3594 = vpop.permute.xlu0 %3593
    %3595 = vrot.lane.b32.xlu0 %v3566, 19
    %v3596 = vpop.permute.xlu0 %3595
    %3597 = vrot.lane.b32.xlu0 %v3584, 19
    %v3598 = vpop.permute.xlu0 %3597
    %3599 = vrot.lane.b32.xlu0 %v3583, 19
    %v3600 = vpop.permute.xlu0 %3599
    %v3602 = vsel %vm325, %v3105, %v3174
    %v3604 = vsel %vm325, %v3106, %v3176
    %v3606 = vsel %vm325, %v3107, %v3178
    %v3608 = vsel %vm325, %v3108, %v3180
    %v3610 = vsel %vm325, %v3109, %v3182
    %v3612 = vsel %vm325, %v3110, %v3184
    %v3614 = vsel %vm325, %v3111, %v3186
    %v3616 = vsel %vm325, %v3112, %v3188
    %v3618 = vsel %vm342, %v3602, %v3226
    %v3620 = vsel %vm342, %v3604, %v3228
    %v3622 = vsel %vm342, %v3606, %v3230
    %v3624 = vsel %vm342, %v3608, %v3232
    %v3626 = vsel %vm342, %v3610, %v3234
    %v3628 = vsel %vm342, %v3612, %v3236
    %v3630 = vsel %vm342, %v3614, %v3238
    %v3632 = vsel %vm342, %v3616, %v3240
    %v3634 = vsel %vm359, %v3618, %v3310
    %v3636 = vsel %vm359, %v3620, %v3312
    %v3638 = vsel %vm359, %v3622, %v3314
    %v3640 = vsel %vm359, %v3624, %v3316
    %v3642 = vsel %vm359, %v3626, %v3318
    %v3644 = vsel %vm359, %v3628, %v3320
    %v3646 = vsel %vm359, %v3630, %v3322
    %v3648 = vsel %vm359, %v3632, %v3324
    %v3650 = vsel %vm1337, %v3634, %v3363
    %v3652 = vsel %vm1337, %v3636, %v3365
    %v3654 = vsel %vm1337, %v3638, %v3367
    %v3656 = vsel %vm1337, %v3640, %v3369
    %v3658 = vsel %vm1337, %v3642, %v3371
    %v3660 = vsel %vm1337, %v3644, %v3373
    %v3662 = vsel %vm1337, %v3646, %v3375
    %v3664 = vsel %vm1337, %v3648, %v3377
    %vm3665 = vcmask 859136
    %v3667 = vsel %vm3665, %v3650, %v3448
    %v3669 = vsel %vm3665, %v3652, %v3450
    %v3671 = vsel %vm3665, %v3654, %v3452
    %v3673 = vsel %vm3665, %v3656, %v3454
    %v3675 = vsel %vm3665, %v3658, %v3456
    %v3677 = vsel %vm3665, %v3660, %v3458
    %v3679 = vsel %vm3665, %v3662, %v3460
    %v3681 = vsel %vm3665, %v3664, %v3462
    %vm3682 = vcmask 1031168
    %v3684 = vsel %vm3682, %v3667, %v3501
    %v3686 = vsel %vm3682, %v3669, %v3503
    %v3688 = vsel %vm3682, %v3671, %v3505
    %v3690 = vsel %vm3682, %v3673, %v3507
    %v3692 = vsel %vm3682, %v3675, %v3509
    %v3694 = vsel %vm3682, %v3677, %v3511
    %v3696 = vsel %vm3682, %v3679, %v3513
    %v3698 = vsel %vm3682, %v3681, %v3515
    %vm3699 = vcmask 154624
    %v3701 = vsel %vm3699, %v3501, %v3586
    %v3703 = vsel %vm3699, %v3503, %v3588
    %v3705 = vsel %vm3699, %v3505, %v3590
    %v3707 = vsel %vm3699, %v3507, %v3592
    %v3709 = vsel %vm3699, %v3509, %v3594
    %v3711 = vsel %vm3699, %v3511, %v3596
    %v3713 = vsel %vm3699, %v3513, %v3598
    %v3715 = vsel %vm3699, %v3515, %v3600
    %v3732 = vcombine.low %v3684, %v3701
    %v3733 = vcombine.high %v3684, %v3701
    %v3735 = vunpack.c.l.s4 1966171168
    %v3736 = vunpack.c.0.s8 %v3735
    %v3737 = vlaneseq
    %v3738 = vshrl.u32 %v3737, 7
    %v3739 = vsub.s32 %v3736, %v3738
    %v3740 = vrot.slane %v3732, %v3739
    %v3742 = vunpack.c.l.s4 1966171168
    %v3743 = vunpack.c.0.s8 %v3742
    %v3744 = vlaneseq
    %v3745 = vshrl.u32 %v3744, 7
    %v3746 = vsub.s32 %v3743, %v3745
    %v3747 = vrot.slane %v3733, %v3746
    %v3748 = vcombine.high %v3740, %v3740
    %v3749 = vcombine.high %v3747, %v3747
    %v3751 = vunpack.c.l.s4 1966171168
    %v3752 = vunpack.c.0.s8 %v3751
    %v3753 = vlaneseq
    %v3754 = vshrl.u32 %v3753, 7
    %v3755 = vsub.s32 %v3752, %v3754
    %v3756 = vrot.slane %v3740, %v3755
    %v3758 = vunpack.c.l.s4 1966171168
    %v3759 = vunpack.c.0.s8 %v3758
    %v3760 = vlaneseq
    %v3761 = vshrl.u32 %v3760, 7
    %v3762 = vsub.s32 %v3759, %v3761
    %v3763 = vrot.slane %v3747, %v3762
    %v3765 = vunpack.c.l.s4 1966171168
    %v3766 = vunpack.c.0.s8 %v3765
    %v3767 = vlaneseq
    %v3768 = vshrl.u32 %v3767, 7
    %v3769 = vsub.s32 %v3766, %v3768
    %v3770 = vrot.slane %v3748, %v3769
    %v3772 = vunpack.c.l.s4 1966171168
    %v3773 = vunpack.c.0.s8 %v3772
    %v3774 = vlaneseq
    %v3775 = vshrl.u32 %v3774, 7
    %v3776 = vsub.s32 %v3773, %v3775
    %v3777 = vrot.slane %v3749, %v3776
    %v3778 = vcombine.high %v3756, %v3756
    %v3779 = vcombine.high %v3763, %v3763
    %v3780 = vcombine.high %v3770, %v3770
    %v3781 = vcombine.high %v3777, %v3777
    %v3782 = vcombine.low %v3686, %v3703
    %v3783 = vcombine.high %v3686, %v3703
    %v3785 = vunpack.c.l.s4 1966171168
    %v3786 = vunpack.c.0.s8 %v3785
    %v3787 = vlaneseq
    %v3788 = vshrl.u32 %v3787, 7
    %v3789 = vsub.s32 %v3786, %v3788
    %v3790 = vrot.slane %v3782, %v3789
    %v3792 = vunpack.c.l.s4 1966171168
    %v3793 = vunpack.c.0.s8 %v3792
    %v3794 = vlaneseq
    %v3795 = vshrl.u32 %v3794, 7
    %v3796 = vsub.s32 %v3793, %v3795
    %v3797 = vrot.slane %v3783, %v3796
    %v3798 = vcombine.high %v3790, %v3790
    %v3800 = vunpack.c.l.s4 1966171168
    %v3801 = vunpack.c.0.s8 %v3800
    %v3802 = vlaneseq
    %v3803 = vshrl.u32 %v3802, 7
    %v3804 = vsub.s32 %v3801, %v3803
    %v3805 = vrot.slane %v3790, %v3804
    %v3807 = vunpack.c.l.s4 1966171168
    %v3808 = vunpack.c.0.s8 %v3807
    %v3809 = vlaneseq
    %v3810 = vshrl.u32 %v3809, 7
    %v3811 = vsub.s32 %v3808, %v3810
    %v3812 = vrot.slane %v3797, %v3811
    %v3814 = vunpack.c.l.s4 1966171168
    %v3815 = vunpack.c.0.s8 %v3814
    %v3816 = vlaneseq
    %v3817 = vshrl.u32 %v3816, 7
    %v3818 = vsub.s32 %v3815, %v3817
    %v3819 = vrot.slane %v3798, %v3818
    %v3820 = vcombine.high %v3805, %v3805
    %v3821 = vcombine.high %v3819, %v3819
    %v3822 = vcombine.low %v3688, %v3705
    %v3823 = vcombine.high %v3688, %v3705
    %v3825 = vunpack.c.l.s4 1966171168
    %v3826 = vunpack.c.0.s8 %v3825
    %v3827 = vlaneseq
    %v3828 = vshrl.u32 %v3827, 7
    %v3829 = vsub.s32 %v3826, %v3828
    %v3830 = vrot.slane %v3822, %v3829
    %v3832 = vunpack.c.l.s4 1966171168
    %v3833 = vunpack.c.0.s8 %v3832
    %v3834 = vlaneseq
    %v3835 = vshrl.u32 %v3834, 7
    %v3836 = vsub.s32 %v3833, %v3835
    %v3837 = vrot.slane %v3823, %v3836
    %v3838 = vcombine.high %v3830, %v3830
    %v3839 = vcombine.high %v3837, %v3837
    %v3841 = vunpack.c.l.s4 1966171168
    %v3842 = vunpack.c.0.s8 %v3841
    %v3843 = vlaneseq
    %v3844 = vshrl.u32 %v3843, 7
    %v3845 = vsub.s32 %v3842, %v3844
    %v3846 = vrot.slane %v3830, %v3845
    %v3848 = vunpack.c.l.s4 1966171168
    %v3849 = vunpack.c.0.s8 %v3848
    %v3850 = vlaneseq
    %v3851 = vshrl.u32 %v3850, 7
    %v3852 = vsub.s32 %v3849, %v3851
    %v3853 = vrot.slane %v3837, %v3852
    %v3855 = vunpack.c.l.s4 1966171168
    %v3856 = vunpack.c.0.s8 %v3855
    %v3857 = vlaneseq
    %v3858 = vshrl.u32 %v3857, 7
    %v3859 = vsub.s32 %v3856, %v3858
    %v3860 = vrot.slane %v3838, %v3859
    %v3862 = vunpack.c.l.s4 1966171168
    %v3863 = vunpack.c.0.s8 %v3862
    %v3864 = vlaneseq
    %v3865 = vshrl.u32 %v3864, 7
    %v3866 = vsub.s32 %v3863, %v3865
    %v3867 = vrot.slane %v3839, %v3866
    %v3868 = vcombine.high %v3846, %v3846
    %v3869 = vcombine.high %v3853, %v3853
    %v3870 = vcombine.high %v3860, %v3860
    %v3871 = vcombine.high %v3867, %v3867
    %v3872 = vcombine.low %v3690, %v3707
    %v3873 = vcombine.high %v3690, %v3707
    %v3875 = vunpack.c.l.s4 1966171168
    %v3876 = vunpack.c.0.s8 %v3875
    %v3877 = vlaneseq
    %v3878 = vshrl.u32 %v3877, 7
    %v3879 = vsub.s32 %v3876, %v3878
    %v3880 = vrot.slane %v3872, %v3879
    %v3882 = vunpack.c.l.s4 1966171168
    %v3883 = vunpack.c.0.s8 %v3882
    %v3884 = vlaneseq
    %v3885 = vshrl.u32 %v3884, 7
    %v3886 = vsub.s32 %v3883, %v3885
    %v3887 = vrot.slane %v3873, %v3886
    %v3888 = vcombine.high %v3880, %v3880
    %v3890 = vunpack.c.l.s4 1966171168
    %v3891 = vunpack.c.0.s8 %v3890
    %v3892 = vlaneseq
    %v3893 = vshrl.u32 %v3892, 7
    %v3894 = vsub.s32 %v3891, %v3893
    %v3895 = vrot.slane %v3880, %v3894
    %v3897 = vunpack.c.l.s4 1966171168
    %v3898 = vunpack.c.0.s8 %v3897
    %v3899 = vlaneseq
    %v3900 = vshrl.u32 %v3899, 7
    %v3901 = vsub.s32 %v3898, %v3900
    %v3902 = vrot.slane %v3887, %v3901
    %v3904 = vunpack.c.l.s4 1966171168
    %v3905 = vunpack.c.0.s8 %v3904
    %v3906 = vlaneseq
    %v3907 = vshrl.u32 %v3906, 7
    %v3908 = vsub.s32 %v3905, %v3907
    %v3909 = vrot.slane %v3888, %v3908
    %v3910 = vcombine.high %v3895, %v3895
    %v3911 = vcombine.high %v3909, %v3909
    %v3912 = vcombine.low %v3692, %v3709
    %v3913 = vcombine.high %v3692, %v3709
    %v3915 = vunpack.c.l.s4 1966171168
    %v3916 = vunpack.c.0.s8 %v3915
    %v3917 = vlaneseq
    %v3918 = vshrl.u32 %v3917, 7
    %v3919 = vsub.s32 %v3916, %v3918
    %v3920 = vrot.slane %v3912, %v3919
    %v3922 = vunpack.c.l.s4 1966171168
    %v3923 = vunpack.c.0.s8 %v3922
    %v3924 = vlaneseq
    %v3925 = vshrl.u32 %v3924, 7
    %v3926 = vsub.s32 %v3923, %v3925
    %v3927 = vrot.slane %v3913, %v3926
    %v3928 = vcombine.high %v3920, %v3920
    %v3929 = vcombine.high %v3927, %v3927
    %v3931 = vunpack.c.l.s4 1966171168
    %v3932 = vunpack.c.0.s8 %v3931
    %v3933 = vlaneseq
    %v3934 = vshrl.u32 %v3933, 7
    %v3935 = vsub.s32 %v3932, %v3934
    %v3936 = vrot.slane %v3920, %v3935
    %v3938 = vunpack.c.l.s4 1966171168
    %v3939 = vunpack.c.0.s8 %v3938
    %v3940 = vlaneseq
    %v3941 = vshrl.u32 %v3940, 7
    %v3942 = vsub.s32 %v3939, %v3941
    %v3943 = vrot.slane %v3927, %v3942
    %v3945 = vunpack.c.l.s4 1966171168
    %v3946 = vunpack.c.0.s8 %v3945
    %v3947 = vlaneseq
    %v3948 = vshrl.u32 %v3947, 7
    %v3949 = vsub.s32 %v3946, %v3948
    %v3950 = vrot.slane %v3928, %v3949
    %v3952 = vunpack.c.l.s4 1966171168
    %v3953 = vunpack.c.0.s8 %v3952
    %v3954 = vlaneseq
    %v3955 = vshrl.u32 %v3954, 7
    %v3956 = vsub.s32 %v3953, %v3955
    %v3957 = vrot.slane %v3929, %v3956
    %v3958 = vcombine.high %v3936, %v3936
    %v3959 = vcombine.high %v3943, %v3943
    %v3960 = vcombine.high %v3950, %v3950
    %v3961 = vcombine.high %v3957, %v3957
    %v3962 = vcombine.low %v3694, %v3711
    %v3963 = vcombine.high %v3694, %v3711
    %v3965 = vunpack.c.l.s4 1966171168
    %v3966 = vunpack.c.0.s8 %v3965
    %v3967 = vlaneseq
    %v3968 = vshrl.u32 %v3967, 7
    %v3969 = vsub.s32 %v3966, %v3968
    %v3970 = vrot.slane %v3962, %v3969
    %v3972 = vunpack.c.l.s4 1966171168
    %v3973 = vunpack.c.0.s8 %v3972
    %v3974 = vlaneseq
    %v3975 = vshrl.u32 %v3974, 7
    %v3976 = vsub.s32 %v3973, %v3975
    %v3977 = vrot.slane %v3963, %v3976
    %v3978 = vcombine.high %v3970, %v3970
    %v3980 = vunpack.c.l.s4 1966171168
    %v3981 = vunpack.c.0.s8 %v3980
    %v3982 = vlaneseq
    %v3983 = vshrl.u32 %v3982, 7
    %v3984 = vsub.s32 %v3981, %v3983
    %v3985 = vrot.slane %v3970, %v3984
    %v3987 = vunpack.c.l.s4 1966171168
    %v3988 = vunpack.c.0.s8 %v3987
    %v3989 = vlaneseq
    %v3990 = vshrl.u32 %v3989, 7
    %v3991 = vsub.s32 %v3988, %v3990
    %v3992 = vrot.slane %v3977, %v3991
    %v3994 = vunpack.c.l.s4 1966171168
    %v3995 = vunpack.c.0.s8 %v3994
    %v3996 = vlaneseq
    %v3997 = vshrl.u32 %v3996, 7
    %v3998 = vsub.s32 %v3995, %v3997
    %v3999 = vrot.slane %v3978, %v3998
    %v4000 = vcombine.high %v3985, %v3985
    %v4001 = vcombine.high %v3999, %v3999
    %v4002 = vcombine.low %v3696, %v3713
    %v4003 = vcombine.high %v3696, %v3713
    %v4005 = vunpack.c.l.s4 1966171168
    %v4006 = vunpack.c.0.s8 %v4005
    %v4007 = vlaneseq
    %v4008 = vshrl.u32 %v4007, 7
    %v4009 = vsub.s32 %v4006, %v4008
    %v4010 = vrot.slane %v4002, %v4009
    %v4012 = vunpack.c.l.s4 1966171168
    %v4013 = vunpack.c.0.s8 %v4012
    %v4014 = vlaneseq
    %v4015 = vshrl.u32 %v4014, 7
    %v4016 = vsub.s32 %v4013, %v4015
    %v4017 = vrot.slane %v4003, %v4016
    %v4018 = vcombine.high %v4010, %v4010
    %v4019 = vcombine.high %v4017, %v4017
    %v4021 = vunpack.c.l.s4 1966171168
    %v4022 = vunpack.c.0.s8 %v4021
    %v4023 = vlaneseq
    %v4024 = vshrl.u32 %v4023, 7
    %v4025 = vsub.s32 %v4022, %v4024
    %v4026 = vrot.slane %v4010, %v4025
    %v4028 = vunpack.c.l.s4 1966171168
    %v4029 = vunpack.c.0.s8 %v4028
    %v4030 = vlaneseq
    %v4031 = vshrl.u32 %v4030, 7
    %v4032 = vsub.s32 %v4029, %v4031
    %v4033 = vrot.slane %v4017, %v4032
    %v4035 = vunpack.c.l.s4 1966171168
    %v4036 = vunpack.c.0.s8 %v4035
    %v4037 = vlaneseq
    %v4038 = vshrl.u32 %v4037, 7
    %v4039 = vsub.s32 %v4036, %v4038
    %v4040 = vrot.slane %v4018, %v4039
    %v4042 = vunpack.c.l.s4 1966171168
    %v4043 = vunpack.c.0.s8 %v4042
    %v4044 = vlaneseq
    %v4045 = vshrl.u32 %v4044, 7
    %v4046 = vsub.s32 %v4043, %v4045
    %v4047 = vrot.slane %v4019, %v4046
    %v4048 = vcombine.high %v4026, %v4026
    %v4049 = vcombine.high %v4033, %v4033
    %v4050 = vcombine.high %v4040, %v4040
    %v4051 = vcombine.high %v4047, %v4047
    %v4052 = vcombine.low %v3698, %v3715
    %v4053 = vcombine.high %v3698, %v3715
    %v4055 = vunpack.c.l.s4 1966171168
    %v4056 = vunpack.c.0.s8 %v4055
    %v4057 = vlaneseq
    %v4058 = vshrl.u32 %v4057, 7
    %v4059 = vsub.s32 %v4056, %v4058
    %v4060 = vrot.slane %v4052, %v4059
    %v4062 = vunpack.c.l.s4 1966171168
    %v4063 = vunpack.c.0.s8 %v4062
    %v4064 = vlaneseq
    %v4065 = vshrl.u32 %v4064, 7
    %v4066 = vsub.s32 %v4063, %v4065
    %v4067 = vrot.slane %v4053, %v4066
    %v4068 = vcombine.high %v4060, %v4060
    %v4070 = vunpack.c.l.s4 1966171168
    %v4071 = vunpack.c.0.s8 %v4070
    %v4072 = vlaneseq
    %v4073 = vshrl.u32 %v4072, 7
    %v4074 = vsub.s32 %v4071, %v4073
    %v4075 = vrot.slane %v4060, %v4074
    %v4077 = vunpack.c.l.s4 1966171168
    %v4078 = vunpack.c.0.s8 %v4077
    %v4079 = vlaneseq
    %v4080 = vshrl.u32 %v4079, 7
    %v4081 = vsub.s32 %v4078, %v4080
    %v4082 = vrot.slane %v4067, %v4081
    %v4084 = vunpack.c.l.s4 1966171168
    %v4085 = vunpack.c.0.s8 %v4084
    %v4086 = vlaneseq
    %v4087 = vshrl.u32 %v4086, 7
    %v4088 = vsub.s32 %v4085, %v4087
    %v4089 = vrot.slane %v4068, %v4088
    %v4090 = vcombine.high %v4075, %v4075
    %v4091 = vcombine.high %v4089, %v4089
    %v4092 = vunpack.i.l.s16 %v3756
    %v4093 = vunpack.i.h.s16 %v3756
    %v4094 = vunpack.i.l.s16 %v3770
    %v4095 = vunpack.i.h.s16 %v3770
    %v4096 = vunpack.i.l.s16 %v3778
    %v4097 = vunpack.i.h.s16 %v3778
    %v4098 = vunpack.i.l.s16 %v3780
    %v4099 = vunpack.i.h.s16 %v3780
    %v4100 = vunpack.i.l.s16 %v3763
    %v4101 = vunpack.i.h.s16 %v3763
    %v4102 = vunpack.i.l.s16 %v3777
    %v4103 = vunpack.i.h.s16 %v3777
    %v4104 = vunpack.i.l.s16 %v3779
    %v4105 = vunpack.i.h.s16 %v3779
    %v4106 = vunpack.i.l.s16 %v3781
    %v4107 = vunpack.i.h.s16 %v3781
    %v4108 = vunpack.i.l.s16 %v3805
    %v4109 = vunpack.i.h.s16 %v3805
    %v4110 = vunpack.i.l.s16 %v3819
    %v4111 = vunpack.i.h.s16 %v3819
    %v4112 = vunpack.i.l.s16 %v3820
    %v4113 = vunpack.i.h.s16 %v3820
    %v4114 = vunpack.i.l.s16 %v3821
    %v4115 = vunpack.i.h.s16 %v3821
    %v4116 = vunpack.i.l.s16 %v3812
    %v4117 = vunpack.i.l.s16 %v3846
    %v4118 = vunpack.i.h.s16 %v3846
    %v4119 = vunpack.i.l.s16 %v3860
    %v4120 = vunpack.i.h.s16 %v3860
    %v4121 = vunpack.i.l.s16 %v3868
    %v4122 = vunpack.i.h.s16 %v3868
    %v4123 = vunpack.i.l.s16 %v3870
    %v4124 = vunpack.i.h.s16 %v3870
    %v4125 = vunpack.i.l.s16 %v3853
    %v4126 = vunpack.i.h.s16 %v3853
    %v4127 = vunpack.i.l.s16 %v3867
    %v4128 = vunpack.i.h.s16 %v3867
    %v4129 = vunpack.i.l.s16 %v3869
    %v4130 = vunpack.i.h.s16 %v3869
    %v4131 = vunpack.i.l.s16 %v3871
    %v4132 = vunpack.i.h.s16 %v3871
    %v4133 = vunpack.i.l.s16 %v3895
    %v4134 = vunpack.i.h.s16 %v3895
    %v4135 = vunpack.i.l.s16 %v3909
    %v4136 = vunpack.i.h.s16 %v3909
    %v4137 = vunpack.i.l.s16 %v3910
    %v4138 = vunpack.i.h.s16 %v3910
    %v4139 = vunpack.i.l.s16 %v3911
    %v4140 = vunpack.i.h.s16 %v3911
    %v4141 = vunpack.i.l.s16 %v3902
    %v4142 = vunpack.i.l.s16 %v3936
    %v4143 = vunpack.i.h.s16 %v3936
    %v4144 = vunpack.i.l.s16 %v3950
    %v4145 = vunpack.i.h.s16 %v3950
    %v4146 = vunpack.i.l.s16 %v3958
    %v4147 = vunpack.i.h.s16 %v3958
    %v4148 = vunpack.i.l.s16 %v3960
    %v4149 = vunpack.i.h.s16 %v3960
    %v4150 = vunpack.i.l.s16 %v3943
    %v4151 = vunpack.i.h.s16 %v3943
    %v4152 = vunpack.i.l.s16 %v3957
    %v4153 = vunpack.i.h.s16 %v3957
    %v4154 = vunpack.i.l.s16 %v3959
    %v4155 = vunpack.i.h.s16 %v3959
    %v4156 = vunpack.i.l.s16 %v3961
    %v4157 = vunpack.i.h.s16 %v3961
    %v4158 = vunpack.i.l.s16 %v3985
    %v4159 = vunpack.i.h.s16 %v3985
    %v4160 = vunpack.i.l.s16 %v3999
    %v4161 = vunpack.i.h.s16 %v3999
    %v4162 = vunpack.i.l.s16 %v4000
    %v4163 = vunpack.i.h.s16 %v4000
    %v4164 = vunpack.i.l.s16 %v4001
    %v4165 = vunpack.i.h.s16 %v4001
    %v4166 = vunpack.i.l.s16 %v3992
    %v4167 = vunpack.i.l.s16 %v4026
    %v4168 = vunpack.i.h.s16 %v4026
    %v4169 = vunpack.i.l.s16 %v4040
    %v4170 = vunpack.i.h.s16 %v4040
    %v4171 = vunpack.i.l.s16 %v4048
    %v4172 = vunpack.i.h.s16 %v4048
    %v4173 = vunpack.i.l.s16 %v4050
    %v4174 = vunpack.i.h.s16 %v4050
    %v4175 = vunpack.i.l.s16 %v4033
    %v4176 = vunpack.i.h.s16 %v4033
    %v4177 = vunpack.i.l.s16 %v4047
    %v4178 = vunpack.i.h.s16 %v4047
    %v4179 = vunpack.i.l.s16 %v4049
    %v4180 = vunpack.i.h.s16 %v4049
    %v4181 = vunpack.i.l.s16 %v4051
    %v4182 = vunpack.i.h.s16 %v4051
    %v4183 = vunpack.i.l.s16 %v4075
    %v4184 = vunpack.i.h.s16 %v4075
    %v4185 = vunpack.i.l.s16 %v4089
    %v4186 = vunpack.i.h.s16 %v4089
    %v4187 = vunpack.i.l.s16 %v4090
    %v4188 = vunpack.i.h.s16 %v4090
    %v4189 = vunpack.i.l.s16 %v4091
    %v4190 = vunpack.i.h.s16 %v4091
    %v4191 = vunpack.i.l.s16 %v4082
    %v4192 = vpack.i.b16 %v4093, %v4092
    %v4193 = vpack.i.b16 %v4095, %v4094
    %v4194 = vpack.i.b16 %v4097, %v4096
    %v4195 = vpack.i.b16 %v4099, %v4098
    %v4196 = vpack.i.b16 %v4101, %v4100
    %v4197 = vpack.i.b16 %v4103, %v4102
    %v4198 = vpack.i.b16 %v4105, %v4104
    %v4199 = vpack.i.b16 %v4107, %v4106
    %v4200 = vpack.i.b16 %v4109, %v4108
    %v4201 = vpack.i.b16 %v4111, %v4110
    %v4202 = vpack.i.b16 %v4113, %v4112
    %v4203 = vpack.i.b16 %v4115, %v4114
    %v4204 = vpack.i.b16 %v4117, %v4116
    %v4205 = vpack.i.b16 %v4119, %v4118
    %v4206 = vpack.i.b16 %v4121, %v4120
    %v4207 = vpack.i.b16 %v4123, %v4122
    %v4208 = vpack.i.b16 %v4125, %v4124
    %v4209 = vpack.i.b16 %v4127, %v4126
    %v4210 = vpack.i.b16 %v4129, %v4128
    %v4211 = vpack.i.b16 %v4131, %v4130
    %v4212 = vpack.i.b16 %v4133, %v4132
    %v4213 = vpack.i.b16 %v4135, %v4134
    %v4214 = vpack.i.b16 %v4137, %v4136
    %v4215 = vpack.i.b16 %v4139, %v4138
    %v4216 = vpack.i.b16 %v4141, %v4140
    %v4217 = vpack.i.b16 %v4143, %v4142
    %v4218 = vpack.i.b16 %v4145, %v4144
    %v4219 = vpack.i.b16 %v4147, %v4146
    %v4220 = vpack.i.b16 %v4149, %v4148
    %v4221 = vpack.i.b16 %v4151, %v4150
    %v4222 = vpack.i.b16 %v4153, %v4152
    %v4223 = vpack.i.b16 %v4155, %v4154
    %v4224 = vpack.i.b16 %v4157, %v4156
    %v4225 = vpack.i.b16 %v4159, %v4158
    %v4226 = vpack.i.b16 %v4161, %v4160
    %v4227 = vpack.i.b16 %v4163, %v4162
    %v4228 = vpack.i.b16 %v4165, %v4164
    %v4229 = vpack.i.b16 %v4167, %v4166
    %v4230 = vpack.i.b16 %v4169, %v4168
    %v4231 = vpack.i.b16 %v4171, %v4170
    %v4232 = vpack.i.b16 %v4173, %v4172
    %v4233 = vpack.i.b16 %v4175, %v4174
    %v4234 = vpack.i.b16 %v4177, %v4176
    %v4235 = vpack.i.b16 %v4179, %v4178
    %v4236 = vpack.i.b16 %v4181, %v4180
    %v4237 = vpack.i.b16 %v4183, %v4182
    %v4238 = vpack.i.b16 %v4185, %v4184
    %v4239 = vpack.i.b16 %v4187, %v4186
    %v4240 = vpack.i.b16 %v4189, %v4188
    %v4241 = vpack.i.b16 %v4191, %v4190
    %v4242 = vcombine.low %v4192, %v4193
    %v4243 = vcombine.low %v4194, %v4195
    %v4244 = vcombine.low %v4196, %v4197
    %v4245 = vcombine.low %v4198, %v4199
    %v4247 = vunpack.c.l.s4 1966171168
    %v4248 = vunpack.c.0.s8 %v4247
    %v4249 = vlaneseq
    %v4250 = vshrl.u32 %v4249, 7
    %v4251 = vsub.s32 %v4248, %v4250
    %v4252 = vrot.slane %v4242, %v4251
    %v4254 = vunpack.c.l.s4 1966171168
    %v4255 = vunpack.c.0.s8 %v4254
    %v4256 = vlaneseq
    %v4257 = vshrl.u32 %v4256, 7
    %v4258 = vsub.s32 %v4255, %v4257
    %v4259 = vrot.slane %v4243, %v4258
    %v4261 = vunpack.c.l.s4 1966171168
    %v4262 = vunpack.c.0.s8 %v4261
    %v4263 = vlaneseq
    %v4264 = vshrl.u32 %v4263, 7
    %v4265 = vsub.s32 %v4262, %v4264
    %v4266 = vrot.slane %v4244, %v4265
    %v4268 = vunpack.c.l.s4 1966171168
    %v4269 = vunpack.c.0.s8 %v4268
    %v4270 = vlaneseq
    %v4271 = vshrl.u32 %v4270, 7
    %v4272 = vsub.s32 %v4269, %v4271
    %v4273 = vrot.slane %v4245, %v4272
    %v4274 = vcombine.low %v4252, %v4259
    %v4275 = vcombine.high %v4252, %v4259
    %v4276 = vcombine.low %v4266, %v4273
    %v4277 = vcombine.high %v4266, %v4273
    %v4279 = vunpack.c.l.s4 1966171168
    %v4280 = vunpack.c.0.s8 %v4279
    %v4281 = vlaneseq
    %v4282 = vshrl.u32 %v4281, 7
    %v4283 = vsub.s32 %v4280, %v4282
    %v4284 = vrot.slane %v4274, %v4283
    %v4286 = vunpack.c.l.s4 1966171168
    %v4287 = vunpack.c.0.s8 %v4286
    %v4288 = vlaneseq
    %v4289 = vshrl.u32 %v4288, 7
    %v4290 = vsub.s32 %v4287, %v4289
    %v4291 = vrot.slane %v4275, %v4290
    %v4293 = vunpack.c.l.s4 1966171168
    %v4294 = vunpack.c.0.s8 %v4293
    %v4295 = vlaneseq
    %v4296 = vshrl.u32 %v4295, 7
    %v4297 = vsub.s32 %v4294, %v4296
    %v4298 = vrot.slane %v4276, %v4297
    %v4300 = vunpack.c.l.s4 1966171168
    %v4301 = vunpack.c.0.s8 %v4300
    %v4302 = vlaneseq
    %v4303 = vshrl.u32 %v4302, 7
    %v4304 = vsub.s32 %v4301, %v4303
    %v4305 = vrot.slane %v4277, %v4304
    %v4306 = vcombine.low %v4284, %v4298
    %v4307 = vcombine.low %v4291, %v4305
    %v4308 = vcombine.low %v4200, %v4201
    %v4309 = vcombine.low %v4202, %v4203
    %v4310 = vcombine.low %v4204, %v4205
    %v4311 = vcombine.low %v4206, %v4207
    %v4313 = vunpack.c.l.s4 1966171168
    %v4314 = vunpack.c.0.s8 %v4313
    %v4315 = vlaneseq
    %v4316 = vshrl.u32 %v4315, 7
    %v4317 = vsub.s32 %v4314, %v4316
    %v4318 = vrot.slane %v4308, %v4317
    %v4320 = vunpack.c.l.s4 1966171168
    %v4321 = vunpack.c.0.s8 %v4320
    %v4322 = vlaneseq
    %v4323 = vshrl.u32 %v4322, 7
    %v4324 = vsub.s32 %v4321, %v4323
    %v4325 = vrot.slane %v4309, %v4324
    %v4327 = vunpack.c.l.s4 1966171168
    %v4328 = vunpack.c.0.s8 %v4327
    %v4329 = vlaneseq
    %v4330 = vshrl.u32 %v4329, 7
    %v4331 = vsub.s32 %v4328, %v4330
    %v4332 = vrot.slane %v4310, %v4331
    %v4334 = vunpack.c.l.s4 1966171168
    %v4335 = vunpack.c.0.s8 %v4334
    %v4336 = vlaneseq
    %v4337 = vshrl.u32 %v4336, 7
    %v4338 = vsub.s32 %v4335, %v4337
    %v4339 = vrot.slane %v4311, %v4338
    %v4340 = vcombine.low %v4318, %v4325
    %v4341 = vcombine.high %v4318, %v4325
    %v4342 = vcombine.low %v4332, %v4339
    %v4343 = vcombine.high %v4332, %v4339
    %v4345 = vunpack.c.l.s4 1966171168
    %v4346 = vunpack.c.0.s8 %v4345
    %v4347 = vlaneseq
    %v4348 = vshrl.u32 %v4347, 7
    %v4349 = vsub.s32 %v4346, %v4348
    %v4350 = vrot.slane %v4340, %v4349
    %v4352 = vunpack.c.l.s4 1966171168
    %v4353 = vunpack.c.0.s8 %v4352
    %v4354 = vlaneseq
    %v4355 = vshrl.u32 %v4354, 7
    %v4356 = vsub.s32 %v4353, %v4355
    %v4357 = vrot.slane %v4341, %v4356
    %v4359 = vunpack.c.l.s4 1966171168
    %v4360 = vunpack.c.0.s8 %v4359
    %v4361 = vlaneseq
    %v4362 = vshrl.u32 %v4361, 7
    %v4363 = vsub.s32 %v4360, %v4362
    %v4364 = vrot.slane %v4342, %v4363
    %v4366 = vunpack.c.l.s4 1966171168
    %v4367 = vunpack.c.0.s8 %v4366
    %v4368 = vlaneseq
    %v4369 = vshrl.u32 %v4368, 7
    %v4370 = vsub.s32 %v4367, %v4369
    %v4371 = vrot.slane %v4343, %v4370
    %v4372 = vcombine.low %v4350, %v4364
    %v4373 = vcombine.low %v4357, %v4371
    %v4374 = vcombine.low %v4208, %v4209
    %v4375 = vcombine.low %v4210, %v4211
    %v4376 = vcombine.low %v4212, %v4213
    %v4377 = vcombine.low %v4214, %v4215
    %v4379 = vunpack.c.l.s4 1966171168
    %v4380 = vunpack.c.0.s8 %v4379
    %v4381 = vlaneseq
    %v4382 = vshrl.u32 %v4381, 7
    %v4383 = vsub.s32 %v4380, %v4382
    %v4384 = vrot.slane %v4374, %v4383
    %v4386 = vunpack.c.l.s4 1966171168
    %v4387 = vunpack.c.0.s8 %v4386
    %v4388 = vlaneseq
    %v4389 = vshrl.u32 %v4388, 7
    %v4390 = vsub.s32 %v4387, %v4389
    %v4391 = vrot.slane %v4375, %v4390
    %v4393 = vunpack.c.l.s4 1966171168
    %v4394 = vunpack.c.0.s8 %v4393
    %v4395 = vlaneseq
    %v4396 = vshrl.u32 %v4395, 7
    %v4397 = vsub.s32 %v4394, %v4396
    %v4398 = vrot.slane %v4376, %v4397
    %v4400 = vunpack.c.l.s4 1966171168
    %v4401 = vunpack.c.0.s8 %v4400
    %v4402 = vlaneseq
    %v4403 = vshrl.u32 %v4402, 7
    %v4404 = vsub.s32 %v4401, %v4403
    %v4405 = vrot.slane %v4377, %v4404
    %v4406 = vcombine.low %v4384, %v4391
    %v4407 = vcombine.high %v4384, %v4391
    %v4408 = vcombine.low %v4398, %v4405
    %v4409 = vcombine.high %v4398, %v4405
    %v4411 = vunpack.c.l.s4 1966171168
    %v4412 = vunpack.c.0.s8 %v4411
    %v4413 = vlaneseq
    %v4414 = vshrl.u32 %v4413, 7
    %v4415 = vsub.s32 %v4412, %v4414
    %v4416 = vrot.slane %v4406, %v4415
    %v4418 = vunpack.c.l.s4 1966171168
    %v4419 = vunpack.c.0.s8 %v4418
    %v4420 = vlaneseq
    %v4421 = vshrl.u32 %v4420, 7
    %v4422 = vsub.s32 %v4419, %v4421
    %v4423 = vrot.slane %v4407, %v4422
    %v4425 = vunpack.c.l.s4 1966171168
    %v4426 = vunpack.c.0.s8 %v4425
    %v4427 = vlaneseq
    %v4428 = vshrl.u32 %v4427, 7
    %v4429 = vsub.s32 %v4426, %v4428
    %v4430 = vrot.slane %v4408, %v4429
    %v4432 = vunpack.c.l.s4 1966171168
    %v4433 = vunpack.c.0.s8 %v4432
    %v4434 = vlaneseq
    %v4435 = vshrl.u32 %v4434, 7
    %v4436 = vsub.s32 %v4433, %v4435
    %v4437 = vrot.slane %v4409, %v4436
    %v4438 = vcombine.low %v4416, %v4430
    %v4439 = vcombine.low %v4423, %v4437
    %v4440 = vcombine.low %v4216, %v4217
    %v4441 = vcombine.low %v4218, %v4219
    %v4442 = vcombine.low %v4220, %v4221
    %v4443 = vcombine.low %v4222, %v4223
    %v4445 = vunpack.c.l.s4 1966171168
    %v4446 = vunpack.c.0.s8 %v4445
    %v4447 = vlaneseq
    %v4448 = vshrl.u32 %v4447, 7
    %v4449 = vsub.s32 %v4446, %v4448
    %v4450 = vrot.slane %v4440, %v4449
    %v4452 = vunpack.c.l.s4 1966171168
    %v4453 = vunpack.c.0.s8 %v4452
    %v4454 = vlaneseq
    %v4455 = vshrl.u32 %v4454, 7
    %v4456 = vsub.s32 %v4453, %v4455
    %v4457 = vrot.slane %v4441, %v4456
    %v4459 = vunpack.c.l.s4 1966171168
    %v4460 = vunpack.c.0.s8 %v4459
    %v4461 = vlaneseq
    %v4462 = vshrl.u32 %v4461, 7
    %v4463 = vsub.s32 %v4460, %v4462
    %v4464 = vrot.slane %v4442, %v4463
    %v4466 = vunpack.c.l.s4 1966171168
    %v4467 = vunpack.c.0.s8 %v4466
    %v4468 = vlaneseq
    %v4469 = vshrl.u32 %v4468, 7
    %v4470 = vsub.s32 %v4467, %v4469
    %v4471 = vrot.slane %v4443, %v4470
    %v4472 = vcombine.low %v4450, %v4457
    %v4473 = vcombine.high %v4450, %v4457
    %v4474 = vcombine.low %v4464, %v4471
    %v4475 = vcombine.high %v4464, %v4471
    %v4477 = vunpack.c.l.s4 1966171168
    %v4478 = vunpack.c.0.s8 %v4477
    %v4479 = vlaneseq
    %v4480 = vshrl.u32 %v4479, 7
    %v4481 = vsub.s32 %v4478, %v4480
    %v4482 = vrot.slane %v4472, %v4481
    %v4484 = vunpack.c.l.s4 1966171168
    %v4485 = vunpack.c.0.s8 %v4484
    %v4486 = vlaneseq
    %v4487 = vshrl.u32 %v4486, 7
    %v4488 = vsub.s32 %v4485, %v4487
    %v4489 = vrot.slane %v4473, %v4488
    %v4491 = vunpack.c.l.s4 1966171168
    %v4492 = vunpack.c.0.s8 %v4491
    %v4493 = vlaneseq
    %v4494 = vshrl.u32 %v4493, 7
    %v4495 = vsub.s32 %v4492, %v4494
    %v4496 = vrot.slane %v4474, %v4495
    %v4498 = vunpack.c.l.s4 1966171168
    %v4499 = vunpack.c.0.s8 %v4498
    %v4500 = vlaneseq
    %v4501 = vshrl.u32 %v4500, 7
    %v4502 = vsub.s32 %v4499, %v4501
    %v4503 = vrot.slane %v4475, %v4502
    %v4504 = vcombine.low %v4482, %v4496
    %v4505 = vcombine.low %v4489, %v4503
    %v4506 = vcombine.low %v4224, %v4225
    %v4507 = vcombine.low %v4226, %v4227
    %v4508 = vcombine.low %v4228, %v4229
    %v4509 = vcombine.low %v4230, %v4231
    %v4511 = vunpack.c.l.s4 1966171168
    %v4512 = vunpack.c.0.s8 %v4511
    %v4513 = vlaneseq
    %v4514 = vshrl.u32 %v4513, 7
    %v4515 = vsub.s32 %v4512, %v4514
    %v4516 = vrot.slane %v4506, %v4515
    %v4518 = vunpack.c.l.s4 1966171168
    %v4519 = vunpack.c.0.s8 %v4518
    %v4520 = vlaneseq
    %v4521 = vshrl.u32 %v4520, 7
    %v4522 = vsub.s32 %v4519, %v4521
    %v4523 = vrot.slane %v4507, %v4522
    %v4525 = vunpack.c.l.s4 1966171168
    %v4526 = vunpack.c.0.s8 %v4525
    %v4527 = vlaneseq
    %v4528 = vshrl.u32 %v4527, 7
    %v4529 = vsub.s32 %v4526, %v4528
    %v4530 = vrot.slane %v4508, %v4529
    %v4532 = vunpack.c.l.s4 1966171168
    %v4533 = vunpack.c.0.s8 %v4532
    %v4534 = vlaneseq
    %v4535 = vshrl.u32 %v4534, 7
    %v4536 = vsub.s32 %v4533, %v4535
    %v4537 = vrot.slane %v4509, %v4536
    %v4538 = vcombine.low %v4516, %v4523
    %v4539 = vcombine.high %v4516, %v4523
    %v4540 = vcombine.low %v4530, %v4537
    %v4541 = vcombine.high %v4530, %v4537
    %v4543 = vunpack.c.l.s4 1966171168
    %v4544 = vunpack.c.0.s8 %v4543
    %v4545 = vlaneseq
    %v4546 = vshrl.u32 %v4545, 7
    %v4547 = vsub.s32 %v4544, %v4546
    %v4548 = vrot.slane %v4538, %v4547
    %v4550 = vunpack.c.l.s4 1966171168
    %v4551 = vunpack.c.0.s8 %v4550
    %v4552 = vlaneseq
    %v4553 = vshrl.u32 %v4552, 7
    %v4554 = vsub.s32 %v4551, %v4553
    %v4555 = vrot.slane %v4539, %v4554
    %v4557 = vunpack.c.l.s4 1966171168
    %v4558 = vunpack.c.0.s8 %v4557
    %v4559 = vlaneseq
    %v4560 = vshrl.u32 %v4559, 7
    %v4561 = vsub.s32 %v4558, %v4560
    %v4562 = vrot.slane %v4540, %v4561
    %v4564 = vunpack.c.l.s4 1966171168
    %v4565 = vunpack.c.0.s8 %v4564
    %v4566 = vlaneseq
    %v4567 = vshrl.u32 %v4566, 7
    %v4568 = vsub.s32 %v4565, %v4567
    %v4569 = vrot.slane %v4541, %v4568
    %v4570 = vcombine.low %v4548, %v4562
    %v4571 = vcombine.low %v4555, %v4569
    %v4572 = vcombine.low %v4232, %v4233
    %v4573 = vcombine.low %v4234, %v4235
    %v4574 = vcombine.low %v4236, %v4237
    %v4575 = vcombine.low %v4238, %v4239
    %v4577 = vunpack.c.l.s4 1966171168
    %v4578 = vunpack.c.0.s8 %v4577
    %v4579 = vlaneseq
    %v4580 = vshrl.u32 %v4579, 7
    %v4581 = vsub.s32 %v4578, %v4580
    %v4582 = vrot.slane %v4572, %v4581
    %v4584 = vunpack.c.l.s4 1966171168
    %v4585 = vunpack.c.0.s8 %v4584
    %v4586 = vlaneseq
    %v4587 = vshrl.u32 %v4586, 7
    %v4588 = vsub.s32 %v4585, %v4587
    %v4589 = vrot.slane %v4573, %v4588
    %v4591 = vunpack.c.l.s4 1966171168
    %v4592 = vunpack.c.0.s8 %v4591
    %v4593 = vlaneseq
    %v4594 = vshrl.u32 %v4593, 7
    %v4595 = vsub.s32 %v4592, %v4594
    %v4596 = vrot.slane %v4574, %v4595
    %v4598 = vunpack.c.l.s4 1966171168
    %v4599 = vunpack.c.0.s8 %v4598
    %v4600 = vlaneseq
    %v4601 = vshrl.u32 %v4600, 7
    %v4602 = vsub.s32 %v4599, %v4601
    %v4603 = vrot.slane %v4575, %v4602
    %v4604 = vcombine.low %v4582, %v4589
    %v4605 = vcombine.high %v4582, %v4589
    %v4606 = vcombine.low %v4596, %v4603
    %v4607 = vcombine.high %v4596, %v4603
    %v4609 = vunpack.c.l.s4 1966171168
    %v4610 = vunpack.c.0.s8 %v4609
    %v4611 = vlaneseq
    %v4612 = vshrl.u32 %v4611, 7
    %v4613 = vsub.s32 %v4610, %v4612
    %v4614 = vrot.slane %v4604, %v4613
    %v4616 = vunpack.c.l.s4 1966171168
    %v4617 = vunpack.c.0.s8 %v4616
    %v4618 = vlaneseq
    %v4619 = vshrl.u32 %v4618, 7
    %v4620 = vsub.s32 %v4617, %v4619
    %v4621 = vrot.slane %v4605, %v4620
    %v4623 = vunpack.c.l.s4 1966171168
    %v4624 = vunpack.c.0.s8 %v4623
    %v4625 = vlaneseq
    %v4626 = vshrl.u32 %v4625, 7
    %v4627 = vsub.s32 %v4624, %v4626
    %v4628 = vrot.slane %v4606, %v4627
    %v4630 = vunpack.c.l.s4 1966171168
    %v4631 = vunpack.c.0.s8 %v4630
    %v4632 = vlaneseq
    %v4633 = vshrl.u32 %v4632, 7
    %v4634 = vsub.s32 %v4631, %v4633
    %v4635 = vrot.slane %v4607, %v4634
    %v4636 = vcombine.low %v4614, %v4628
    %v4637 = vcombine.low %v4621, %v4635
    %v4638 = vcombine.low %v4240, %v4241
    %v4640 = vunpack.c.l.s4 1966171168
    %v4641 = vunpack.c.0.s8 %v4640
    %v4642 = vlaneseq
    %v4643 = vshrl.u32 %v4642, 7
    %v4644 = vsub.s32 %v4641, %v4643
    %v4645 = vrot.slane %v4638, %v4644
    %v4646 = vcombine.high %v4645, %v4645
    %v4648 = vunpack.c.l.s4 1966171168
    %v4649 = vunpack.c.0.s8 %v4648
    %v4650 = vlaneseq
    %v4651 = vshrl.u32 %v4650, 7
    %v4652 = vsub.s32 %v4649, %v4651
    %v4653 = vrot.slane %v4645, %v4652
    %v4655 = vunpack.c.l.s4 1966171168
    %v4656 = vunpack.c.0.s8 %v4655
    %v4657 = vlaneseq
    %v4658 = vshrl.u32 %v4657, 7
    %v4659 = vsub.s32 %v4656, %v4658
    %v4660 = vrot.slane %v4646, %v4659
    %v4689 = vunpack.c.l.b16 %v3011
    %v4690 = vunpack.c.l.b16 %v3012
    %v4691 = vunpack.c.l.b16 %v3013
    %v4692 = vunpack.c.l.b16 %v3014
    %v4693 = vunpack.c.l.b16 %v3015
    %v4694 = vunpack.c.l.b16 %v3016
    %v4695 = vunpack.c.l.b16 %v3017
    %v4696 = vunpack.c.l.b16 %v3018
    %v4697 = vunpack.c.l.b16 %v3019
    %v4698 = vunpack.c.l.b16 %v3020
    %v4699 = vunpack.c.l.b16 %v3021
    %v4700 = vunpack.c.l.b16 %v3022
    %v4701 = vunpack.c.l.b16 %v3023
    %v4702 = vunpack.c.l.b16 %v3024
    %v4703 = vunpack.c.l.b16 %v3025
    %v4704 = vunpack.c.l.b16 %v3026
    %v4705 = vunpack.c.l.b16 %v3027
    %v4706 = vunpack.c.l.b16 %v3028
    %v4707 = vunpack.c.l.b16 %v3029
    %v4708 = vunpack.c.l.b16 %v3030
    %v4709 = vunpack.c.l.b16 %v3031
    %v4710 = vpack.c.b16 %v4690, %v4689
    %v4711 = vpack.c.b16 %v4692, %v4691
    %v4712 = vpack.c.b16 %v4694, %v4693
    %v4713 = vpack.c.b16 %v4696, %v4695
    %v4714 = vpack.c.b16 %v4698, %v4697
    %v4715 = vpack.c.b16 %v4700, %v4699
    %v4716 = vpack.c.b16 %v4702, %v4701
    %v4717 = vpack.c.b16 %v4704, %v4703
    %v4718 = vpack.c.b16 %v4706, %v4705
    %v4719 = vpack.c.b16 %v4708, %v4707
    %v4720 = vpack.c.b16 %v4709, %v4709
    %vm4731 = vcmask 326656
    %v4733 = vsel %vm4731, %v4307, 0
    %v4736 = vsel %vm4731, %v4373, 0
    %v4739 = vsel %vm4731, %v4439, 0
    %v4742 = vsel %vm4731, %v4505, 0
    %v4745 = vsel %vm4731, %v4571, 0
    %v4748 = vsel %vm4731, %v4637, 0
    %v4751 = vsel %vm4731, %v4660, 0
    %vm4753 = vcmask 1043456
    %v4755 = vsel %vm4753, %v4720, 0
    %4757 = vmatprep.subr.bf16.mxu0 0
    %4758 = vmatpush1.bf16.msra.mxu0 %v4710
    %4759 = vmatprep.subr.bf16.mxu0 0
    %4760 = vmatpush1.bf16.msra.mxu0 %v4711
    %4761 = vmatprep.subr.bf16.mxu0 0
    %4762 = vmatpush1.bf16.msra.mxu0 %v4712
    %4763 = vmatprep.subr.bf16.mxu0 0
    %4764 = vmatpush1.bf16.msra.mxu0 %v4713
    %4765 = vmatprep.subr.bf16.mxu0 0
    %4766 = vmatpush1.bf16.msra.mxu0 %v4714
    %4767 = vmatprep.subr.bf16.mxu0 0
    %4768 = vmatpush1.bf16.msra.mxu0 %v4715
    %4769 = vmatprep.subr.bf16.mxu0 0
    %4770 = vmatpush1.bf16.msra.mxu0 %v4716
    %4771 = vmatprep.subr.bf16.mxu0 0
    %4772 = vmatpush1.bf16.msra.mxu0 %v4717
    %4773 = vmatprep.subr.bf16.mxu0 0
    %4774 = vmatpush1.bf16.msra.mxu0 %v4718
    %4775 = vmatprep.subr.bf16.mxu0 0
    %4776 = vmatpush1.bf16.msra.mxu0 %v4719
    %4777 = vmatprep.subr.bf16.mxu0 0
    %4778 = vmatpush1.bf16.msra.mxu0 %v4755
    %4779 = vmatprep.subr.bf16.mxu0 0
    %4780 = vmatpush1.bf16.msra.mxu0 0
    %4781 = vmatprep.subr.bf16.mxu0 0
    %4782 = vmatpush1.bf16.msra.mxu0 0
    %4783 = vmatprep.subr.bf16.mxu0 0
    %4784 = vmatpush1.bf16.msra.mxu0 0
    %4785 = vmatprep.subr.bf16.mxu0 0
    %4786 = vmatpush1.bf16.msra.mxu0 0
    %4787 = vmatprep.subr.bf16.mxu0 0
    %4788 = vmatpush1.bf16.msra.mxu0 0
    %4789 = vmatprep.mubr.bf16.mxu0 %v4733
    %4790 = vmatmul.mubr.bf16.gmra.mrb[0].mxu0 %v4306
    %v4791 = vpop.f32.mrb[0].mxu0
    %v4792 = vadd.f32 0.0, %v4791
    %v4793 = vpop.f32.mrb[0].mxu0
    %v4794 = vpop.f32.mrb[0].mxu0
    %v4795 = vadd.f32 0.0, %v4794
    %v4796 = vpop.f32.mrb[0].mxu0
    %4797 = vmatprep.mubr.bf16.mxu0 %v4736
    %4798 = vmatmul.mubr.bf16.gmra.mrb[0].mxu0 %v4372
    %v4799 = vpop.f32.mrb[0].mxu0
    %v4800 = vadd.f32 0.0, %v4799
    %v4801 = vpop.f32.mrb[0].mxu0
    %v4802 = vpop.f32.mrb[0].mxu0
    %v4803 = vadd.f32 0.0, %v4802
    %v4804 = vpop.f32.mrb[0].mxu0
    %4805 = vmatprep.mubr.bf16.mxu0 %v4739
    %4806 = vmatmul.mubr.bf16.gmra.mrb[0].mxu0 %v4438
    %v4807 = vpop.f32.mrb[0].mxu0
    %v4808 = vadd.f32 0.0, %v4807
    %v4809 = vpop.f32.mrb[0].mxu0
    %v4810 = vpop.f32.mrb[0].mxu0
    %v4811 = vadd.f32 0.0, %v4810
    %v4812 = vpop.f32.mrb[0].mxu0
    %4813 = vmatprep.mubr.bf16.mxu0 %v4742
    %4814 = vmatmul.mubr.bf16.gmra.mrb[0].mxu0 %v4504
    %v4815 = vpop.f32.mrb[0].mxu0
    %v4816 = vadd.f32 0.0, %v4815
    %v4817 = vpop.f32.mrb[0].mxu0
    %v4818 = vpop.f32.mrb[0].mxu0
    %v4819 = vadd.f32 0.0, %v4818
    %v4820 = vpop.f32.mrb[0].mxu0
    %4821 = vmatprep.mubr.bf16.mxu0 %v4745
    %4822 = vmatmul.mubr.bf16.gmra.mrb[0].mxu0 %v4570
    %v4823 = vpop.f32.mrb[0].mxu0
    %v4824 = vadd.f32 0.0, %v4823
    %v4825 = vpop.f32.mrb[0].mxu0
    %v4826 = vpop.f32.mrb[0].mxu0
    %v4827 = vadd.f32 0.0, %v4826
    %v4828 = vpop.f32.mrb[0].mxu0
    %4829 = vmatprep.mubr.bf16.mxu0 %v4748
    %4830 = vmatmul.mubr.bf16.gmra.mrb[0].mxu0 %v4636
    %v4831 = vpop.f32.mrb[0].mxu0
    %v4832 = vadd.f32 0.0, %v4831
    %v4833 = vpop.f32.mrb[0].mxu0
    %v4834 = vpop.f32.mrb[0].mxu0
    %v4835 = vadd.f32 0.0, %v4834
    %v4836 = vpop.f32.mrb[0].mxu0
    %4837 = vmatprep.mubr.bf16.mxu0 %v4751
    %4838 = vmatmul.mubr.bf16.gmra.mrb[0].mxu0 %v4653
    %v4839 = vpop.f32.mrb[0].mxu0
    %v4840 = vadd.f32 0.0, %v4839
    %v4841 = vpop.f32.mrb[0].mxu0
    %v4842 = vpop.f32.mrb[0].mxu0
    %v4843 = vpop.f32.mrb[0].mxu0
    %4844 = vdwg.mxu0
    %v4858 = vcombine.high %v4792, %v4792
    %v4860 = vunpack.c.l.s4 1966171168
    %v4861 = vunpack.c.0.s8 %v4860
    %v4862 = vlaneseq
    %v4863 = vshrl.u32 %v4862, 7
    %v4864 = vsub.s32 %v4861, %v4863
    %v4865 = vrot.slane %v4792, %v4864
    %v4867 = vunpack.c.l.s4 1966171168
    %v4868 = vunpack.c.0.s8 %v4867
    %v4869 = vlaneseq
    %v4870 = vshrl.u32 %v4869, 7
    %v4871 = vsub.s32 %v4868, %v4870
    %v4872 = vrot.slane %v4858, %v4871
    %v4873 = vcombine.high %v4865, %v4865
    %v4874 = vcombine.high %v4872, %v4872
    %v4876 = vunpack.c.l.s4 1966171168
    %v4877 = vunpack.c.0.s8 %v4876
    %v4878 = vlaneseq
    %v4879 = vshrl.u32 %v4878, 7
    %v4880 = vsub.s32 %v4877, %v4879
    %v4881 = vrot.slane %v4865, %v4880
    %v4883 = vunpack.c.l.s4 1966171168
    %v4884 = vunpack.c.0.s8 %v4883
    %v4885 = vlaneseq
    %v4886 = vshrl.u32 %v4885, 7
    %v4887 = vsub.s32 %v4884, %v4886
    %v4888 = vrot.slane %v4872, %v4887
    %v4890 = vunpack.c.l.s4 1966171168
    %v4891 = vunpack.c.0.s8 %v4890
    %v4892 = vlaneseq
    %v4893 = vshrl.u32 %v4892, 7
    %v4894 = vsub.s32 %v4891, %v4893
    %v4895 = vrot.slane %v4873, %v4894
    %v4897 = vunpack.c.l.s4 1966171168
    %v4898 = vunpack.c.0.s8 %v4897
    %v4899 = vlaneseq
    %v4900 = vshrl.u32 %v4899, 7
    %v4901 = vsub.s32 %v4898, %v4900
    %v4902 = vrot.slane %v4874, %v4901
    %v4903 = vcombine.high %v4881, %v4881
    %v4904 = vcombine.high %v4888, %v4888
    %v4905 = vcombine.high %v4895, %v4895
    %v4906 = vcombine.high %v4902, %v4902
    %v4907 = vcombine.high %v4795, %v4795
    %v4909 = vunpack.c.l.s4 1966171168
    %v4910 = vunpack.c.0.s8 %v4909
    %v4911 = vlaneseq
    %v4912 = vshrl.u32 %v4911, 7
    %v4913 = vsub.s32 %v4910, %v4912
    %v4914 = vrot.slane %v4795, %v4913
    %v4916 = vunpack.c.l.s4 1966171168
    %v4917 = vunpack.c.0.s8 %v4916
    %v4918 = vlaneseq
    %v4919 = vshrl.u32 %v4918, 7
    %v4920 = vsub.s32 %v4917, %v4919
    %v4921 = vrot.slane %v4907, %v4920
    %v4922 = vcombine.high %v4914, %v4914
    %v4923 = vcombine.high %v4921, %v4921
    %v4925 = vunpack.c.l.s4 1966171168
    %v4926 = vunpack.c.0.s8 %v4925
    %v4927 = vlaneseq
    %v4928 = vshrl.u32 %v4927, 7
    %v4929 = vsub.s32 %v4926, %v4928
    %v4930 = vrot.slane %v4914, %v4929
    %v4932 = vunpack.c.l.s4 1966171168
    %v4933 = vunpack.c.0.s8 %v4932
    %v4934 = vlaneseq
    %v4935 = vshrl.u32 %v4934, 7
    %v4936 = vsub.s32 %v4933, %v4935
    %v4937 = vrot.slane %v4921, %v4936
    %v4939 = vunpack.c.l.s4 1966171168
    %v4940 = vunpack.c.0.s8 %v4939
    %v4941 = vlaneseq
    %v4942 = vshrl.u32 %v4941, 7
    %v4943 = vsub.s32 %v4940, %v4942
    %v4944 = vrot.slane %v4922, %v4943
    %v4946 = vunpack.c.l.s4 1966171168
    %v4947 = vunpack.c.0.s8 %v4946
    %v4948 = vlaneseq
    %v4949 = vshrl.u32 %v4948, 7
    %v4950 = vsub.s32 %v4947, %v4949
    %v4951 = vrot.slane %v4923, %v4950
    %v4952 = vcombine.high %v4930, %v4930
    %v4953 = vcombine.high %v4937, %v4937
    %v4954 = vcombine.high %v4944, %v4944
    %v4955 = vcombine.high %v4951, %v4951
    %v4956 = vcombine.high %v4800, %v4800
    %v4958 = vunpack.c.l.s4 1966171168
    %v4959 = vunpack.c.0.s8 %v4958
    %v4960 = vlaneseq
    %v4961 = vshrl.u32 %v4960, 7
    %v4962 = vsub.s32 %v4959, %v4961
    %v4963 = vrot.slane %v4800, %v4962
    %v4965 = vunpack.c.l.s4 1966171168
    %v4966 = vunpack.c.0.s8 %v4965
    %v4967 = vlaneseq
    %v4968 = vshrl.u32 %v4967, 7
    %v4969 = vsub.s32 %v4966, %v4968
    %v4970 = vrot.slane %v4956, %v4969
    %v4971 = vcombine.high %v4963, %v4963
    %v4972 = vcombine.high %v4970, %v4970
    %v4974 = vunpack.c.l.s4 1966171168
    %v4975 = vunpack.c.0.s8 %v4974
    %v4976 = vlaneseq
    %v4977 = vshrl.u32 %v4976, 7
    %v4978 = vsub.s32 %v4975, %v4977
    %v4979 = vrot.slane %v4963, %v4978
    %v4981 = vunpack.c.l.s4 1966171168
    %v4982 = vunpack.c.0.s8 %v4981
    %v4983 = vlaneseq
    %v4984 = vshrl.u32 %v4983, 7
    %v4985 = vsub.s32 %v4982, %v4984
    %v4986 = vrot.slane %v4970, %v4985
    %v4988 = vunpack.c.l.s4 1966171168
    %v4989 = vunpack.c.0.s8 %v4988
    %v4990 = vlaneseq
    %v4991 = vshrl.u32 %v4990, 7
    %v4992 = vsub.s32 %v4989, %v4991
    %v4993 = vrot.slane %v4971, %v4992
    %v4995 = vunpack.c.l.s4 1966171168
    %v4996 = vunpack.c.0.s8 %v4995
    %v4997 = vlaneseq
    %v4998 = vshrl.u32 %v4997, 7
    %v4999 = vsub.s32 %v4996, %v4998
    %v5000 = vrot.slane %v4972, %v4999
    %v5001 = vcombine.high %v4979, %v4979
    %v5002 = vcombine.high %v4986, %v4986
    %v5003 = vcombine.high %v4993, %v4993
    %v5004 = vcombine.high %v5000, %v5000
    %v5005 = vcombine.high %v4803, %v4803
    %v5007 = vunpack.c.l.s4 1966171168
    %v5008 = vunpack.c.0.s8 %v5007
    %v5009 = vlaneseq
    %v5010 = vshrl.u32 %v5009, 7
    %v5011 = vsub.s32 %v5008, %v5010
    %v5012 = vrot.slane %v4803, %v5011
    %v5014 = vunpack.c.l.s4 1966171168
    %v5015 = vunpack.c.0.s8 %v5014
    %v5016 = vlaneseq
    %v5017 = vshrl.u32 %v5016, 7
    %v5018 = vsub.s32 %v5015, %v5017
    %v5019 = vrot.slane %v5005, %v5018
    %v5020 = vcombine.high %v5012, %v5012
    %v5021 = vcombine.high %v5019, %v5019
    %v5023 = vunpack.c.l.s4 1966171168
    %v5024 = vunpack.c.0.s8 %v5023
    %v5025 = vlaneseq
    %v5026 = vshrl.u32 %v5025, 7
    %v5027 = vsub.s32 %v5024, %v5026
    %v5028 = vrot.slane %v5012, %v5027
    %v5030 = vunpack.c.l.s4 1966171168
    %v5031 = vunpack.c.0.s8 %v5030
    %v5032 = vlaneseq
    %v5033 = vshrl.u32 %v5032, 7
    %v5034 = vsub.s32 %v5031, %v5033
    %v5035 = vrot.slane %v5019, %v5034
    %v5037 = vunpack.c.l.s4 1966171168
    %v5038 = vunpack.c.0.s8 %v5037
    %v5039 = vlaneseq
    %v5040 = vshrl.u32 %v5039, 7
    %v5041 = vsub.s32 %v5038, %v5040
    %v5042 = vrot.slane %v5020, %v5041
    %v5044 = vunpack.c.l.s4 1966171168
    %v5045 = vunpack.c.0.s8 %v5044
    %v5046 = vlaneseq
    %v5047 = vshrl.u32 %v5046, 7
    %v5048 = vsub.s32 %v5045, %v5047
    %v5049 = vrot.slane %v5021, %v5048
    %v5050 = vcombine.high %v5028, %v5028
    %v5051 = vcombine.high %v5035, %v5035
    %v5052 = vcombine.high %v5042, %v5042
    %v5053 = vcombine.high %v5049, %v5049
    %v5054 = vcombine.high %v4808, %v4808
    %v5056 = vunpack.c.l.s4 1966171168
    %v5057 = vunpack.c.0.s8 %v5056
    %v5058 = vlaneseq
    %v5059 = vshrl.u32 %v5058, 7
    %v5060 = vsub.s32 %v5057, %v5059
    %v5061 = vrot.slane %v4808, %v5060
    %v5063 = vunpack.c.l.s4 1966171168
    %v5064 = vunpack.c.0.s8 %v5063
    %v5065 = vlaneseq
    %v5066 = vshrl.u32 %v5065, 7
    %v5067 = vsub.s32 %v5064, %v5066
    %v5068 = vrot.slane %v5054, %v5067
    %v5069 = vcombine.high %v5061, %v5061
    %v5070 = vcombine.high %v5068, %v5068
    %v5072 = vunpack.c.l.s4 1966171168
    %v5073 = vunpack.c.0.s8 %v5072
    %v5074 = vlaneseq
    %v5075 = vshrl.u32 %v5074, 7
    %v5076 = vsub.s32 %v5073, %v5075
    %v5077 = vrot.slane %v5061, %v5076
    %v5079 = vunpack.c.l.s4 1966171168
    %v5080 = vunpack.c.0.s8 %v5079
    %v5081 = vlaneseq
    %v5082 = vshrl.u32 %v5081, 7
    %v5083 = vsub.s32 %v5080, %v5082
    %v5084 = vrot.slane %v5068, %v5083
    %v5086 = vunpack.c.l.s4 1966171168
    %v5087 = vunpack.c.0.s8 %v5086
    %v5088 = vlaneseq
    %v5089 = vshrl.u32 %v5088, 7
    %v5090 = vsub.s32 %v5087, %v5089
    %v5091 = vrot.slane %v5069, %v5090
    %v5093 = vunpack.c.l.s4 1966171168
    %v5094 = vunpack.c.0.s8 %v5093
    %v5095 = vlaneseq
    %v5096 = vshrl.u32 %v5095, 7
    %v5097 = vsub.s32 %v5094, %v5096
    %v5098 = vrot.slane %v5070, %v5097
    %v5099 = vcombine.high %v5077, %v5077
    %v5100 = vcombine.high %v5084, %v5084
    %v5101 = vcombine.high %v5091, %v5091
    %v5102 = vcombine.high %v5098, %v5098
    %v5103 = vcombine.high %v4811, %v4811
    %v5105 = vunpack.c.l.s4 1966171168
    %v5106 = vunpack.c.0.s8 %v5105
    %v5107 = vlaneseq
    %v5108 = vshrl.u32 %v5107, 7
    %v5109 = vsub.s32 %v5106, %v5108
    %v5110 = vrot.slane %v4811, %v5109
    %v5112 = vunpack.c.l.s4 1966171168
    %v5113 = vunpack.c.0.s8 %v5112
    %v5114 = vlaneseq
    %v5115 = vshrl.u32 %v5114, 7
    %v5116 = vsub.s32 %v5113, %v5115
    %v5117 = vrot.slane %v5103, %v5116
    %v5118 = vcombine.high %v5110, %v5110
    %v5119 = vcombine.high %v5117, %v5117
    %v5121 = vunpack.c.l.s4 1966171168
    %v5122 = vunpack.c.0.s8 %v5121
    %v5123 = vlaneseq
    %v5124 = vshrl.u32 %v5123, 7
    %v5125 = vsub.s32 %v5122, %v5124
    %v5126 = vrot.slane %v5110, %v5125
    %v5128 = vunpack.c.l.s4 1966171168
    %v5129 = vunpack.c.0.s8 %v5128
    %v5130 = vlaneseq
    %v5131 = vshrl.u32 %v5130, 7
    %v5132 = vsub.s32 %v5129, %v5131
    %v5133 = vrot.slane %v5117, %v5132
    %v5135 = vunpack.c.l.s4 1966171168
    %v5136 = vunpack.c.0.s8 %v5135
    %v5137 = vlaneseq
    %v5138 = vshrl.u32 %v5137, 7
    %v5139 = vsub.s32 %v5136, %v5138
    %v5140 = vrot.slane %v5118, %v5139
    %v5142 = vunpack.c.l.s4 1966171168
    %v5143 = vunpack.c.0.s8 %v5142
    %v5144 = vlaneseq
    %v5145 = vshrl.u32 %v5144, 7
    %v5146 = vsub.s32 %v5143, %v5145
    %v5147 = vrot.slane %v5119, %v5146
    %v5148 = vcombine.high %v5126, %v5126
    %v5149 = vcombine.high %v5133, %v5133
    %v5150 = vcombine.high %v5140, %v5140
    %v5151 = vcombine.high %v5147, %v5147
    %v5152 = vcombine.high %v4816, %v4816
    %v5154 = vunpack.c.l.s4 1966171168
    %v5155 = vunpack.c.0.s8 %v5154
    %v5156 = vlaneseq
    %v5157 = vshrl.u32 %v5156, 7
    %v5158 = vsub.s32 %v5155, %v5157
    %v5159 = vrot.slane %v4816, %v5158
    %v5161 = vunpack.c.l.s4 1966171168
    %v5162 = vunpack.c.0.s8 %v5161
    %v5163 = vlaneseq
    %v5164 = vshrl.u32 %v5163, 7
    %v5165 = vsub.s32 %v5162, %v5164
    %v5166 = vrot.slane %v5152, %v5165
    %v5167 = vcombine.high %v5159, %v5159
    %v5168 = vcombine.high %v5166, %v5166
    %v5170 = vunpack.c.l.s4 1966171168
    %v5171 = vunpack.c.0.s8 %v5170
    %v5172 = vlaneseq
    %v5173 = vshrl.u32 %v5172, 7
    %v5174 = vsub.s32 %v5171, %v5173
    %v5175 = vrot.slane %v5159, %v5174
    %v5177 = vunpack.c.l.s4 1966171168
    %v5178 = vunpack.c.0.s8 %v5177
    %v5179 = vlaneseq
    %v5180 = vshrl.u32 %v5179, 7
    %v5181 = vsub.s32 %v5178, %v5180
    %v5182 = vrot.slane %v5166, %v5181
    %v5184 = vunpack.c.l.s4 1966171168
    %v5185 = vunpack.c.0.s8 %v5184
    %v5186 = vlaneseq
    %v5187 = vshrl.u32 %v5186, 7
    %v5188 = vsub.s32 %v5185, %v5187
    %v5189 = vrot.slane %v5167, %v5188
    %v5191 = vunpack.c.l.s4 1966171168
    %v5192 = vunpack.c.0.s8 %v5191
    %v5193 = vlaneseq
    %v5194 = vshrl.u32 %v5193, 7
    %v5195 = vsub.s32 %v5192, %v5194
    %v5196 = vrot.slane %v5168, %v5195
    %v5197 = vcombine.high %v5175, %v5175
    %v5198 = vcombine.high %v5182, %v5182
    %v5199 = vcombine.high %v5189, %v5189
    %v5200 = vcombine.high %v5196, %v5196
    %v5201 = vcombine.high %v4819, %v4819
    %v5203 = vunpack.c.l.s4 1966171168
    %v5204 = vunpack.c.0.s8 %v5203
    %v5205 = vlaneseq
    %v5206 = vshrl.u32 %v5205, 7
    %v5207 = vsub.s32 %v5204, %v5206
    %v5208 = vrot.slane %v4819, %v5207
    %v5210 = vunpack.c.l.s4 1966171168
    %v5211 = vunpack.c.0.s8 %v5210
    %v5212 = vlaneseq
    %v5213 = vshrl.u32 %v5212, 7
    %v5214 = vsub.s32 %v5211, %v5213
    %v5215 = vrot.slane %v5201, %v5214
    %v5216 = vcombine.high %v5208, %v5208
    %v5217 = vcombine.high %v5215, %v5215
    %v5219 = vunpack.c.l.s4 1966171168
    %v5220 = vunpack.c.0.s8 %v5219
    %v5221 = vlaneseq
    %v5222 = vshrl.u32 %v5221, 7
    %v5223 = vsub.s32 %v5220, %v5222
    %v5224 = vrot.slane %v5208, %v5223
    %v5226 = vunpack.c.l.s4 1966171168
    %v5227 = vunpack.c.0.s8 %v5226
    %v5228 = vlaneseq
    %v5229 = vshrl.u32 %v5228, 7
    %v5230 = vsub.s32 %v5227, %v5229
    %v5231 = vrot.slane %v5215, %v5230
    %v5233 = vunpack.c.l.s4 1966171168
    %v5234 = vunpack.c.0.s8 %v5233
    %v5235 = vlaneseq
    %v5236 = vshrl.u32 %v5235, 7
    %v5237 = vsub.s32 %v5234, %v5236
    %v5238 = vrot.slane %v5216, %v5237
    %v5240 = vunpack.c.l.s4 1966171168
    %v5241 = vunpack.c.0.s8 %v5240
    %v5242 = vlaneseq
    %v5243 = vshrl.u32 %v5242, 7
    %v5244 = vsub.s32 %v5241, %v5243
    %v5245 = vrot.slane %v5217, %v5244
    %v5246 = vcombine.high %v5224, %v5224
    %v5247 = vcombine.high %v5231, %v5231
    %v5248 = vcombine.high %v5238, %v5238
    %v5249 = vcombine.high %v5245, %v5245
    %v5250 = vcombine.high %v4824, %v4824
    %v5252 = vunpack.c.l.s4 1966171168
    %v5253 = vunpack.c.0.s8 %v5252
    %v5254 = vlaneseq
    %v5255 = vshrl.u32 %v5254, 7
    %v5256 = vsub.s32 %v5253, %v5255
    %v5257 = vrot.slane %v4824, %v5256
    %v5259 = vunpack.c.l.s4 1966171168
    %v5260 = vunpack.c.0.s8 %v5259
    %v5261 = vlaneseq
    %v5262 = vshrl.u32 %v5261, 7
    %v5263 = vsub.s32 %v5260, %v5262
    %v5264 = vrot.slane %v5250, %v5263
    %v5265 = vcombine.high %v5257, %v5257
    %v5266 = vcombine.high %v5264, %v5264
    %v5268 = vunpack.c.l.s4 1966171168
    %v5269 = vunpack.c.0.s8 %v5268
    %v5270 = vlaneseq
    %v5271 = vshrl.u32 %v5270, 7
    %v5272 = vsub.s32 %v5269, %v5271
    %v5273 = vrot.slane %v5257, %v5272
    %v5275 = vunpack.c.l.s4 1966171168
    %v5276 = vunpack.c.0.s8 %v5275
    %v5277 = vlaneseq
    %v5278 = vshrl.u32 %v5277, 7
    %v5279 = vsub.s32 %v5276, %v5278
    %v5280 = vrot.slane %v5264, %v5279
    %v5282 = vunpack.c.l.s4 1966171168
    %v5283 = vunpack.c.0.s8 %v5282
    %v5284 = vlaneseq
    %v5285 = vshrl.u32 %v5284, 7
    %v5286 = vsub.s32 %v5283, %v5285
    %v5287 = vrot.slane %v5265, %v5286
    %v5289 = vunpack.c.l.s4 1966171168
    %v5290 = vunpack.c.0.s8 %v5289
    %v5291 = vlaneseq
    %v5292 = vshrl.u32 %v5291, 7
    %v5293 = vsub.s32 %v5290, %v5292
    %v5294 = vrot.slane %v5266, %v5293
    %v5295 = vcombine.high %v5273, %v5273
    %v5296 = vcombine.high %v5280, %v5280
    %v5297 = vcombine.high %v5287, %v5287
    %v5298 = vcombine.high %v5294, %v5294
    %v5299 = vcombine.high %v4827, %v4827
    %v5301 = vunpack.c.l.s4 1966171168
    %v5302 = vunpack.c.0.s8 %v5301
    %v5303 = vlaneseq
    %v5304 = vshrl.u32 %v5303, 7
    %v5305 = vsub.s32 %v5302, %v5304
    %v5306 = vrot.slane %v4827, %v5305
    %v5308 = vunpack.c.l.s4 1966171168
    %v5309 = vunpack.c.0.s8 %v5308
    %v5310 = vlaneseq
    %v5311 = vshrl.u32 %v5310, 7
    %v5312 = vsub.s32 %v5309, %v5311
    %v5313 = vrot.slane %v5299, %v5312
    %v5314 = vcombine.high %v5306, %v5306
    %v5315 = vcombine.high %v5313, %v5313
    %v5317 = vunpack.c.l.s4 1966171168
    %v5318 = vunpack.c.0.s8 %v5317
    %v5319 = vlaneseq
    %v5320 = vshrl.u32 %v5319, 7
    %v5321 = vsub.s32 %v5318, %v5320
    %v5322 = vrot.slane %v5306, %v5321
    %v5324 = vunpack.c.l.s4 1966171168
    %v5325 = vunpack.c.0.s8 %v5324
    %v5326 = vlaneseq
    %v5327 = vshrl.u32 %v5326, 7
    %v5328 = vsub.s32 %v5325, %v5327
    %v5329 = vrot.slane %v5313, %v5328
    %v5331 = vunpack.c.l.s4 1966171168
    %v5332 = vunpack.c.0.s8 %v5331
    %v5333 = vlaneseq
    %v5334 = vshrl.u32 %v5333, 7
    %v5335 = vsub.s32 %v5332, %v5334
    %v5336 = vrot.slane %v5314, %v5335
    %v5338 = vunpack.c.l.s4 1966171168
    %v5339 = vunpack.c.0.s8 %v5338
    %v5340 = vlaneseq
    %v5341 = vshrl.u32 %v5340, 7
    %v5342 = vsub.s32 %v5339, %v5341
    %v5343 = vrot.slane %v5315, %v5342
    %v5344 = vcombine.high %v5322, %v5322
    %v5345 = vcombine.high %v5329, %v5329
    %v5346 = vcombine.high %v5336, %v5336
    %v5347 = vcombine.high %v5343, %v5343
    %v5348 = vcombine.high %v4832, %v4832
    %v5350 = vunpack.c.l.s4 1966171168
    %v5351 = vunpack.c.0.s8 %v5350
    %v5352 = vlaneseq
    %v5353 = vshrl.u32 %v5352, 7
    %v5354 = vsub.s32 %v5351, %v5353
    %v5355 = vrot.slane %v4832, %v5354
    %v5357 = vunpack.c.l.s4 1966171168
    %v5358 = vunpack.c.0.s8 %v5357
    %v5359 = vlaneseq
    %v5360 = vshrl.u32 %v5359, 7
    %v5361 = vsub.s32 %v5358, %v5360
    %v5362 = vrot.slane %v5348, %v5361
    %v5363 = vcombine.high %v5355, %v5355
    %v5364 = vcombine.high %v5362, %v5362
    %v5366 = vunpack.c.l.s4 1966171168
    %v5367 = vunpack.c.0.s8 %v5366
    %v5368 = vlaneseq
    %v5369 = vshrl.u32 %v5368, 7
    %v5370 = vsub.s32 %v5367, %v5369
    %v5371 = vrot.slane %v5355, %v5370
    %v5373 = vunpack.c.l.s4 1966171168
    %v5374 = vunpack.c.0.s8 %v5373
    %v5375 = vlaneseq
    %v5376 = vshrl.u32 %v5375, 7
    %v5377 = vsub.s32 %v5374, %v5376
    %v5378 = vrot.slane %v5362, %v5377
    %v5380 = vunpack.c.l.s4 1966171168
    %v5381 = vunpack.c.0.s8 %v5380
    %v5382 = vlaneseq
    %v5383 = vshrl.u32 %v5382, 7
    %v5384 = vsub.s32 %v5381, %v5383
    %v5385 = vrot.slane %v5363, %v5384
    %v5387 = vunpack.c.l.s4 1966171168
    %v5388 = vunpack.c.0.s8 %v5387
    %v5389 = vlaneseq
    %v5390 = vshrl.u32 %v5389, 7
    %v5391 = vsub.s32 %v5388, %v5390
    %v5392 = vrot.slane %v5364, %v5391
    %v5393 = vcombine.high %v5371, %v5371
    %v5394 = vcombine.high %v5378, %v5378
    %v5395 = vcombine.high %v5385, %v5385
    %v5396 = vcombine.high %v5392, %v5392
    %v5397 = vcombine.high %v4835, %v4835
    %v5399 = vunpack.c.l.s4 1966171168
    %v5400 = vunpack.c.0.s8 %v5399
    %v5401 = vlaneseq
    %v5402 = vshrl.u32 %v5401, 7
    %v5403 = vsub.s32 %v5400, %v5402
    %v5404 = vrot.slane %v4835, %v5403
    %v5406 = vunpack.c.l.s4 1966171168
    %v5407 = vunpack.c.0.s8 %v5406
    %v5408 = vlaneseq
    %v5409 = vshrl.u32 %v5408, 7
    %v5410 = vsub.s32 %v5407, %v5409
    %v5411 = vrot.slane %v5397, %v5410
    %v5412 = vcombine.high %v5404, %v5404
    %v5413 = vcombine.high %v5411, %v5411
    %v5415 = vunpack.c.l.s4 1966171168
    %v5416 = vunpack.c.0.s8 %v5415
    %v5417 = vlaneseq
    %v5418 = vshrl.u32 %v5417, 7
    %v5419 = vsub.s32 %v5416, %v5418
    %v5420 = vrot.slane %v5404, %v5419
    %v5422 = vunpack.c.l.s4 1966171168
    %v5423 = vunpack.c.0.s8 %v5422
    %v5424 = vlaneseq
    %v5425 = vshrl.u32 %v5424, 7
    %v5426 = vsub.s32 %v5423, %v5425
    %v5427 = vrot.slane %v5411, %v5426
    %v5429 = vunpack.c.l.s4 1966171168
    %v5430 = vunpack.c.0.s8 %v5429
    %v5431 = vlaneseq
    %v5432 = vshrl.u32 %v5431, 7
    %v5433 = vsub.s32 %v5430, %v5432
    %v5434 = vrot.slane %v5412, %v5433
    %v5436 = vunpack.c.l.s4 1966171168
    %v5437 = vunpack.c.0.s8 %v5436
    %v5438 = vlaneseq
    %v5439 = vshrl.u32 %v5438, 7
    %v5440 = vsub.s32 %v5437, %v5439
    %v5441 = vrot.slane %v5413, %v5440
    %v5442 = vcombine.high %v5420, %v5420
    %v5443 = vcombine.high %v5427, %v5427
    %v5444 = vcombine.high %v5434, %v5434
    %v5445 = vcombine.high %v5441, %v5441
    %v5447 = vunpack.c.l.s4 1966171168
    %v5448 = vunpack.c.0.s8 %v5447
    %v5449 = vlaneseq
    %v5450 = vshrl.u32 %v5449, 7
    %v5451 = vsub.s32 %v5448, %v5450
    %v5452 = vrot.slane %v4840, %v5451
    %v5453 = vcombine.high %v5452, %v5452
    %v5455 = vunpack.c.l.s4 1966171168
    %v5456 = vunpack.c.0.s8 %v5455
    %v5457 = vlaneseq
    %v5458 = vshrl.u32 %v5457, 7
    %v5459 = vsub.s32 %v5456, %v5458
    %v5460 = vrot.slane %v5452, %v5459
    %v5462 = vunpack.c.l.s4 1966171168
    %v5463 = vunpack.c.0.s8 %v5462
    %v5464 = vlaneseq
    %v5465 = vshrl.u32 %v5464, 7
    %v5466 = vsub.s32 %v5463, %v5465
    %v5467 = vrot.slane %v5453, %v5466
    %v5468 = vcombine.high %v5460, %v5460
    %v5469 = vcombine.high %v5467, %v5467
    %v5470 = vcombine.low %v4881, %v4895
    %v5471 = vcombine.low %v4903, %v4905
    %v5472 = vcombine.low %v4888, %v4902
    %v5473 = vcombine.low %v4904, %v4906
    %v5475 = vunpack.c.l.s4 1966171168
    %v5476 = vunpack.c.0.s8 %v5475
    %v5477 = vlaneseq
    %v5478 = vshrl.u32 %v5477, 7
    %v5479 = vsub.s32 %v5476, %v5478
    %v5480 = vrot.slane %v5470, %v5479
    %v5482 = vunpack.c.l.s4 1966171168
    %v5483 = vunpack.c.0.s8 %v5482
    %v5484 = vlaneseq
    %v5485 = vshrl.u32 %v5484, 7
    %v5486 = vsub.s32 %v5483, %v5485
    %v5487 = vrot.slane %v5471, %v5486
    %v5489 = vunpack.c.l.s4 1966171168
    %v5490 = vunpack.c.0.s8 %v5489
    %v5491 = vlaneseq
    %v5492 = vshrl.u32 %v5491, 7
    %v5493 = vsub.s32 %v5490, %v5492
    %v5494 = vrot.slane %v5472, %v5493
    %v5496 = vunpack.c.l.s4 1966171168
    %v5497 = vunpack.c.0.s8 %v5496
    %v5498 = vlaneseq
    %v5499 = vshrl.u32 %v5498, 7
    %v5500 = vsub.s32 %v5497, %v5499
    %v5501 = vrot.slane %v5473, %v5500
    %v5502 = vcombine.low %v5480, %v5487
    %v5503 = vcombine.low %v5494, %v5501
    %v5505 = vunpack.c.l.s4 1966171168
    %v5506 = vunpack.c.0.s8 %v5505
    %v5507 = vlaneseq
    %v5508 = vshrl.u32 %v5507, 7
    %v5509 = vsub.s32 %v5506, %v5508
    %v5510 = vrot.slane %v5502, %v5509
    %v5512 = vunpack.c.l.s4 1966171168
    %v5513 = vunpack.c.0.s8 %v5512
    %v5514 = vlaneseq
    %v5515 = vshrl.u32 %v5514, 7
    %v5516 = vsub.s32 %v5513, %v5515
    %v5517 = vrot.slane %v5503, %v5516
    %v5518 = vcombine.low %v5510, %v5517
    %v5519 = vcombine.low %v4930, %v4944
    %v5520 = vcombine.low %v4952, %v4954
    %v5521 = vcombine.low %v4937, %v4951
    %v5522 = vcombine.low %v4953, %v4955
    %v5524 = vunpack.c.l.s4 1966171168
    %v5525 = vunpack.c.0.s8 %v5524
    %v5526 = vlaneseq
    %v5527 = vshrl.u32 %v5526, 7
    %v5528 = vsub.s32 %v5525, %v5527
    %v5529 = vrot.slane %v5519, %v5528
    %v5531 = vunpack.c.l.s4 1966171168
    %v5532 = vunpack.c.0.s8 %v5531
    %v5533 = vlaneseq
    %v5534 = vshrl.u32 %v5533, 7
    %v5535 = vsub.s32 %v5532, %v5534
    %v5536 = vrot.slane %v5520, %v5535
    %v5538 = vunpack.c.l.s4 1966171168
    %v5539 = vunpack.c.0.s8 %v5538
    %v5540 = vlaneseq
    %v5541 = vshrl.u32 %v5540, 7
    %v5542 = vsub.s32 %v5539, %v5541
    %v5543 = vrot.slane %v5521, %v5542
    %v5545 = vunpack.c.l.s4 1966171168
    %v5546 = vunpack.c.0.s8 %v5545
    %v5547 = vlaneseq
    %v5548 = vshrl.u32 %v5547, 7
    %v5549 = vsub.s32 %v5546, %v5548
    %v5550 = vrot.slane %v5522, %v5549
    %v5551 = vcombine.low %v5529, %v5536
    %v5552 = vcombine.low %v5543, %v5550
    %v5554 = vunpack.c.l.s4 1966171168
    %v5555 = vunpack.c.0.s8 %v5554
    %v5556 = vlaneseq
    %v5557 = vshrl.u32 %v5556, 7
    %v5558 = vsub.s32 %v5555, %v5557
    %v5559 = vrot.slane %v5551, %v5558
    %v5561 = vunpack.c.l.s4 1966171168
    %v5562 = vunpack.c.0.s8 %v5561
    %v5563 = vlaneseq
    %v5564 = vshrl.u32 %v5563, 7
    %v5565 = vsub.s32 %v5562, %v5564
    %v5566 = vrot.slane %v5552, %v5565
    %v5567 = vcombine.low %v5559, %v5566
    %v5568 = vcombine.low %v4979, %v4993
    %v5569 = vcombine.low %v5001, %v5003
    %v5570 = vcombine.low %v4986, %v5000
    %v5571 = vcombine.low %v5002, %v5004
    %v5573 = vunpack.c.l.s4 1966171168
    %v5574 = vunpack.c.0.s8 %v5573
    %v5575 = vlaneseq
    %v5576 = vshrl.u32 %v5575, 7
    %v5577 = vsub.s32 %v5574, %v5576
    %v5578 = vrot.slane %v5568, %v5577
    %v5580 = vunpack.c.l.s4 1966171168
    %v5581 = vunpack.c.0.s8 %v5580
    %v5582 = vlaneseq
    %v5583 = vshrl.u32 %v5582, 7
    %v5584 = vsub.s32 %v5581, %v5583
    %v5585 = vrot.slane %v5569, %v5584
    %v5587 = vunpack.c.l.s4 1966171168
    %v5588 = vunpack.c.0.s8 %v5587
    %v5589 = vlaneseq
    %v5590 = vshrl.u32 %v5589, 7
    %v5591 = vsub.s32 %v5588, %v5590
    %v5592 = vrot.slane %v5570, %v5591
    %v5594 = vunpack.c.l.s4 1966171168
    %v5595 = vunpack.c.0.s8 %v5594
    %v5596 = vlaneseq
    %v5597 = vshrl.u32 %v5596, 7
    %v5598 = vsub.s32 %v5595, %v5597
    %v5599 = vrot.slane %v5571, %v5598
    %v5600 = vcombine.low %v5578, %v5585
    %v5601 = vcombine.low %v5592, %v5599
    %v5603 = vunpack.c.l.s4 1966171168
    %v5604 = vunpack.c.0.s8 %v5603
    %v5605 = vlaneseq
    %v5606 = vshrl.u32 %v5605, 7
    %v5607 = vsub.s32 %v5604, %v5606
    %v5608 = vrot.slane %v5600, %v5607
    %v5610 = vunpack.c.l.s4 1966171168
    %v5611 = vunpack.c.0.s8 %v5610
    %v5612 = vlaneseq
    %v5613 = vshrl.u32 %v5612, 7
    %v5614 = vsub.s32 %v5611, %v5613
    %v5615 = vrot.slane %v5601, %v5614
    %v5616 = vcombine.low %v5608, %v5615
    %v5618 = vunpack.c.l.s4 1966171168
    %v5619 = vunpack.c.0.s8 %v5618
    %v5620 = vlaneseq
    %v5621 = vshrl.u32 %v5620, 7
    %v5622 = vsub.s32 %v5619, %v5621
    %v5623 = vrot.slane %v5028, %v5622
    %v5625 = vunpack.c.l.s4 1966171168
    %v5626 = vunpack.c.0.s8 %v5625
    %v5627 = vlaneseq
    %v5628 = vshrl.u32 %v5627, 7
    %v5629 = vsub.s32 %v5626, %v5628
    %v5630 = vrot.slane %v5623, %v5629
    %v5631 = vcombine.low %v5042, %v5050
    %v5632 = vcombine.low %v5052, %v5035
    %v5633 = vcombine.low %v5049, %v5051
    %v5634 = vcombine.low %v5053, %v5077
    %v5636 = vunpack.c.l.s4 1966171168
    %v5637 = vunpack.c.0.s8 %v5636
    %v5638 = vlaneseq
    %v5639 = vshrl.u32 %v5638, 7
    %v5640 = vsub.s32 %v5637, %v5639
    %v5641 = vrot.slane %v5631, %v5640
    %v5643 = vunpack.c.l.s4 1966171168
    %v5644 = vunpack.c.0.s8 %v5643
    %v5645 = vlaneseq
    %v5646 = vshrl.u32 %v5645, 7
    %v5647 = vsub.s32 %v5644, %v5646
    %v5648 = vrot.slane %v5632, %v5647
    %v5650 = vunpack.c.l.s4 1966171168
    %v5651 = vunpack.c.0.s8 %v5650
    %v5652 = vlaneseq
    %v5653 = vshrl.u32 %v5652, 7
    %v5654 = vsub.s32 %v5651, %v5653
    %v5655 = vrot.slane %v5633, %v5654
    %v5657 = vunpack.c.l.s4 1966171168
    %v5658 = vunpack.c.0.s8 %v5657
    %v5659 = vlaneseq
    %v5660 = vshrl.u32 %v5659, 7
    %v5661 = vsub.s32 %v5658, %v5660
    %v5662 = vrot.slane %v5634, %v5661
    %v5663 = vcombine.low %v5641, %v5648
    %v5664 = vcombine.low %v5655, %v5662
    %v5666 = vunpack.c.l.s4 1966171168
    %v5667 = vunpack.c.0.s8 %v5666
    %v5668 = vlaneseq
    %v5669 = vshrl.u32 %v5668, 7
    %v5670 = vsub.s32 %v5667, %v5669
    %v5671 = vrot.slane %v5663, %v5670
    %v5673 = vunpack.c.l.s4 1966171168
    %v5674 = vunpack.c.0.s8 %v5673
    %v5675 = vlaneseq
    %v5676 = vshrl.u32 %v5675, 7
    %v5677 = vsub.s32 %v5674, %v5676
    %v5678 = vrot.slane %v5664, %v5677
    %v5679 = vcombine.low %v5671, %v5678
    %v5680 = vcombine.low %v5091, %v5099
    %v5681 = vcombine.low %v5101, %v5084
    %v5682 = vcombine.low %v5098, %v5100
    %v5683 = vcombine.low %v5102, %v5126
    %v5685 = vunpack.c.l.s4 1966171168
    %v5686 = vunpack.c.0.s8 %v5685
    %v5687 = vlaneseq
    %v5688 = vshrl.u32 %v5687, 7
    %v5689 = vsub.s32 %v5686, %v5688
    %v5690 = vrot.slane %v5680, %v5689
    %v5692 = vunpack.c.l.s4 1966171168
    %v5693 = vunpack.c.0.s8 %v5692
    %v5694 = vlaneseq
    %v5695 = vshrl.u32 %v5694, 7
    %v5696 = vsub.s32 %v5693, %v5695
    %v5697 = vrot.slane %v5681, %v5696
    %v5699 = vunpack.c.l.s4 1966171168
    %v5700 = vunpack.c.0.s8 %v5699
    %v5701 = vlaneseq
    %v5702 = vshrl.u32 %v5701, 7
    %v5703 = vsub.s32 %v5700, %v5702
    %v5704 = vrot.slane %v5682, %v5703
    %v5706 = vunpack.c.l.s4 1966171168
    %v5707 = vunpack.c.0.s8 %v5706
    %v5708 = vlaneseq
    %v5709 = vshrl.u32 %v5708, 7
    %v5710 = vsub.s32 %v5707, %v5709
    %v5711 = vrot.slane %v5683, %v5710
    %v5712 = vcombine.low %v5690, %v5697
    %v5713 = vcombine.low %v5704, %v5711
    %v5715 = vunpack.c.l.s4 1966171168
    %v5716 = vunpack.c.0.s8 %v5715
    %v5717 = vlaneseq
    %v5718 = vshrl.u32 %v5717, 7
    %v5719 = vsub.s32 %v5716, %v5718
    %v5720 = vrot.slane %v5712, %v5719
    %v5722 = vunpack.c.l.s4 1966171168
    %v5723 = vunpack.c.0.s8 %v5722
    %v5724 = vlaneseq
    %v5725 = vshrl.u32 %v5724, 7
    %v5726 = vsub.s32 %v5723, %v5725
    %v5727 = vrot.slane %v5713, %v5726
    %v5728 = vcombine.low %v5720, %v5727
    %v5729 = vcombine.low %v5140, %v5148
    %v5730 = vcombine.low %v5150, %v5133
    %v5731 = vcombine.low %v5147, %v5149
    %v5732 = vcombine.low %v5151, %v5175
    %v5734 = vunpack.c.l.s4 1966171168
    %v5735 = vunpack.c.0.s8 %v5734
    %v5736 = vlaneseq
    %v5737 = vshrl.u32 %v5736, 7
    %v5738 = vsub.s32 %v5735, %v5737
    %v5739 = vrot.slane %v5729, %v5738
    %v5741 = vunpack.c.l.s4 1966171168
    %v5742 = vunpack.c.0.s8 %v5741
    %v5743 = vlaneseq
    %v5744 = vshrl.u32 %v5743, 7
    %v5745 = vsub.s32 %v5742, %v5744
    %v5746 = vrot.slane %v5730, %v5745
    %v5748 = vunpack.c.l.s4 1966171168
    %v5749 = vunpack.c.0.s8 %v5748
    %v5750 = vlaneseq
    %v5751 = vshrl.u32 %v5750, 7
    %v5752 = vsub.s32 %v5749, %v5751
    %v5753 = vrot.slane %v5731, %v5752
    %v5755 = vunpack.c.l.s4 1966171168
    %v5756 = vunpack.c.0.s8 %v5755
    %v5757 = vlaneseq
    %v5758 = vshrl.u32 %v5757, 7
    %v5759 = vsub.s32 %v5756, %v5758
    %v5760 = vrot.slane %v5732, %v5759
    %v5761 = vcombine.low %v5739, %v5746
    %v5762 = vcombine.low %v5753, %v5760
    %v5764 = vunpack.c.l.s4 1966171168
    %v5765 = vunpack.c.0.s8 %v5764
    %v5766 = vlaneseq
    %v5767 = vshrl.u32 %v5766, 7
    %v5768 = vsub.s32 %v5765, %v5767
    %v5769 = vrot.slane %v5761, %v5768
    %v5771 = vunpack.c.l.s4 1966171168
    %v5772 = vunpack.c.0.s8 %v5771
    %v5773 = vlaneseq
    %v5774 = vshrl.u32 %v5773, 7
    %v5775 = vsub.s32 %v5772, %v5774
    %v5776 = vrot.slane %v5762, %v5775
    %v5777 = vcombine.low %v5769, %v5776
    %v5779 = vunpack.c.l.s4 1966171168
    %v5780 = vunpack.c.0.s8 %v5779
    %v5781 = vlaneseq
    %v5782 = vshrl.u32 %v5781, 7
    %v5783 = vsub.s32 %v5780, %v5782
    %v5784 = vrot.slane %v5189, %v5783
    %v5786 = vunpack.c.l.s4 1966171168
    %v5787 = vunpack.c.0.s8 %v5786
    %v5788 = vlaneseq
    %v5789 = vshrl.u32 %v5788, 7
    %v5790 = vsub.s32 %v5787, %v5789
    %v5791 = vrot.slane %v5784, %v5790
    %v5792 = vcombine.low %v5197, %v5199
    %v5793 = vcombine.low %v5182, %v5196
    %v5794 = vcombine.low %v5198, %v5200
    %v5795 = vcombine.low %v5224, %v5238
    %v5797 = vunpack.c.l.s4 1966171168
    %v5798 = vunpack.c.0.s8 %v5797
    %v5799 = vlaneseq
    %v5800 = vshrl.u32 %v5799, 7
    %v5801 = vsub.s32 %v5798, %v5800
    %v5802 = vrot.slane %v5792, %v5801
    %v5804 = vunpack.c.l.s4 1966171168
    %v5805 = vunpack.c.0.s8 %v5804
    %v5806 = vlaneseq
    %v5807 = vshrl.u32 %v5806, 7
    %v5808 = vsub.s32 %v5805, %v5807
    %v5809 = vrot.slane %v5793, %v5808
    %v5811 = vunpack.c.l.s4 1966171168
    %v5812 = vunpack.c.0.s8 %v5811
    %v5813 = vlaneseq
    %v5814 = vshrl.u32 %v5813, 7
    %v5815 = vsub.s32 %v5812, %v5814
    %v5816 = vrot.slane %v5794, %v5815
    %v5818 = vunpack.c.l.s4 1966171168
    %v5819 = vunpack.c.0.s8 %v5818
    %v5820 = vlaneseq
    %v5821 = vshrl.u32 %v5820, 7
    %v5822 = vsub.s32 %v5819, %v5821
    %v5823 = vrot.slane %v5795, %v5822
    %v5824 = vcombine.low %v5802, %v5809
    %v5825 = vcombine.low %v5816, %v5823
    %v5827 = vunpack.c.l.s4 1966171168
    %v5828 = vunpack.c.0.s8 %v5827
    %v5829 = vlaneseq
    %v5830 = vshrl.u32 %v5829, 7
    %v5831 = vsub.s32 %v5828, %v5830
    %v5832 = vrot.slane %v5824, %v5831
    %v5834 = vunpack.c.l.s4 1966171168
    %v5835 = vunpack.c.0.s8 %v5834
    %v5836 = vlaneseq
    %v5837 = vshrl.u32 %v5836, 7
    %v5838 = vsub.s32 %v5835, %v5837
    %v5839 = vrot.slane %v5825, %v5838
    %v5840 = vcombine.low %v5832, %v5839
    %v5841 = vcombine.low %v5246, %v5248
    %v5842 = vcombine.low %v5231, %v5245
    %v5843 = vcombine.low %v5247, %v5249
    %v5844 = vcombine.low %v5273, %v5287
    %v5846 = vunpack.c.l.s4 1966171168
    %v5847 = vunpack.c.0.s8 %v5846
    %v5848 = vlaneseq
    %v5849 = vshrl.u32 %v5848, 7
    %v5850 = vsub.s32 %v5847, %v5849
    %v5851 = vrot.slane %v5841, %v5850
    %v5853 = vunpack.c.l.s4 1966171168
    %v5854 = vunpack.c.0.s8 %v5853
    %v5855 = vlaneseq
    %v5856 = vshrl.u32 %v5855, 7
    %v5857 = vsub.s32 %v5854, %v5856
    %v5858 = vrot.slane %v5842, %v5857
    %v5860 = vunpack.c.l.s4 1966171168
    %v5861 = vunpack.c.0.s8 %v5860
    %v5862 = vlaneseq
    %v5863 = vshrl.u32 %v5862, 7
    %v5864 = vsub.s32 %v5861, %v5863
    %v5865 = vrot.slane %v5843, %v5864
    %v5867 = vunpack.c.l.s4 1966171168
    %v5868 = vunpack.c.0.s8 %v5867
    %v5869 = vlaneseq
    %v5870 = vshrl.u32 %v5869, 7
    %v5871 = vsub.s32 %v5868, %v5870
    %v5872 = vrot.slane %v5844, %v5871
    %v5873 = vcombine.low %v5851, %v5858
    %v5874 = vcombine.low %v5865, %v5872
    %v5876 = vunpack.c.l.s4 1966171168
    %v5877 = vunpack.c.0.s8 %v5876
    %v5878 = vlaneseq
    %v5879 = vshrl.u32 %v5878, 7
    %v5880 = vsub.s32 %v5877, %v5879
    %v5881 = vrot.slane %v5873, %v5880
    %v5883 = vunpack.c.l.s4 1966171168
    %v5884 = vunpack.c.0.s8 %v5883
    %v5885 = vlaneseq
    %v5886 = vshrl.u32 %v5885, 7
    %v5887 = vsub.s32 %v5884, %v5886
    %v5888 = vrot.slane %v5874, %v5887
    %v5889 = vcombine.low %v5881, %v5888
    %v5890 = vcombine.low %v5295, %v5297
    %v5891 = vcombine.low %v5280, %v5294
    %v5892 = vcombine.low %v5296, %v5298
    %v5893 = vcombine.low %v5322, %v5336
    %v5895 = vunpack.c.l.s4 1966171168
    %v5896 = vunpack.c.0.s8 %v5895
    %v5897 = vlaneseq
    %v5898 = vshrl.u32 %v5897, 7
    %v5899 = vsub.s32 %v5896, %v5898
    %v5900 = vrot.slane %v5890, %v5899
    %v5902 = vunpack.c.l.s4 1966171168
    %v5903 = vunpack.c.0.s8 %v5902
    %v5904 = vlaneseq
    %v5905 = vshrl.u32 %v5904, 7
    %v5906 = vsub.s32 %v5903, %v5905
    %v5907 = vrot.slane %v5891, %v5906
    %v5909 = vunpack.c.l.s4 1966171168
    %v5910 = vunpack.c.0.s8 %v5909
    %v5911 = vlaneseq
    %v5912 = vshrl.u32 %v5911, 7
    %v5913 = vsub.s32 %v5910, %v5912
    %v5914 = vrot.slane %v5892, %v5913
    %v5916 = vunpack.c.l.s4 1966171168
    %v5917 = vunpack.c.0.s8 %v5916
    %v5918 = vlaneseq
    %v5919 = vshrl.u32 %v5918, 7
    %v5920 = vsub.s32 %v5917, %v5919
    %v5921 = vrot.slane %v5893, %v5920
    %v5922 = vcombine.low %v5900, %v5907
    %v5923 = vcombine.low %v5914, %v5921
    %v5925 = vunpack.c.l.s4 1966171168
    %v5926 = vunpack.c.0.s8 %v5925
    %v5927 = vlaneseq
    %v5928 = vshrl.u32 %v5927, 7
    %v5929 = vsub.s32 %v5926, %v5928
    %v5930 = vrot.slane %v5922, %v5929
    %v5932 = vunpack.c.l.s4 1966171168
    %v5933 = vunpack.c.0.s8 %v5932
    %v5934 = vlaneseq
    %v5935 = vshrl.u32 %v5934, 7
    %v5936 = vsub.s32 %v5933, %v5935
    %v5937 = vrot.slane %v5923, %v5936
    %v5938 = vcombine.low %v5930, %v5937
    %v5940 = vunpack.c.l.s4 1966171168
    %v5941 = vunpack.c.0.s8 %v5940
    %v5942 = vlaneseq
    %v5943 = vshrl.u32 %v5942, 7
    %v5944 = vsub.s32 %v5941, %v5943
    %v5945 = vrot.slane %v5344, %v5944
    %v5947 = vunpack.c.l.s4 1966171168
    %v5948 = vunpack.c.0.s8 %v5947
    %v5949 = vlaneseq
    %v5950 = vshrl.u32 %v5949, 7
    %v5951 = vsub.s32 %v5948, %v5950
    %v5952 = vrot.slane %v5945, %v5951
    %v5953 = vcombine.low %v5346, %v5329
    %v5954 = vcombine.low %v5343, %v5345
    %v5955 = vcombine.low %v5347, %v5371
    %v5956 = vcombine.low %v5385, %v5393
    %v5958 = vunpack.c.l.s4 1966171168
    %v5959 = vunpack.c.0.s8 %v5958
    %v5960 = vlaneseq
    %v5961 = vshrl.u32 %v5960, 7
    %v5962 = vsub.s32 %v5959, %v5961
    %v5963 = vrot.slane %v5953, %v5962
    %v5965 = vunpack.c.l.s4 1966171168
    %v5966 = vunpack.c.0.s8 %v5965
    %v5967 = vlaneseq
    %v5968 = vshrl.u32 %v5967, 7
    %v5969 = vsub.s32 %v5966, %v5968
    %v5970 = vrot.slane %v5954, %v5969
    %v5972 = vunpack.c.l.s4 1966171168
    %v5973 = vunpack.c.0.s8 %v5972
    %v5974 = vlaneseq
    %v5975 = vshrl.u32 %v5974, 7
    %v5976 = vsub.s32 %v5973, %v5975
    %v5977 = vrot.slane %v5955, %v5976
    %v5979 = vunpack.c.l.s4 1966171168
    %v5980 = vunpack.c.0.s8 %v5979
    %v5981 = vlaneseq
    %v5982 = vshrl.u32 %v5981, 7
    %v5983 = vsub.s32 %v5980, %v5982
    %v5984 = vrot.slane %v5956, %v5983
    %v5985 = vcombine.low %v5963, %v5970
    %v5986 = vcombine.low %v5977, %v5984
    %v5988 = vunpack.c.l.s4 1966171168
    %v5989 = vunpack.c.0.s8 %v5988
    %v5990 = vlaneseq
    %v5991 = vshrl.u32 %v5990, 7
    %v5992 = vsub.s32 %v5989, %v5991
    %v5993 = vrot.slane %v5985, %v5992
    %v5995 = vunpack.c.l.s4 1966171168
    %v5996 = vunpack.c.0.s8 %v5995
    %v5997 = vlaneseq
    %v5998 = vshrl.u32 %v5997, 7
    %v5999 = vsub.s32 %v5996, %v5998
    %v6000 = vrot.slane %v5986, %v5999
    %v6001 = vcombine.low %v5993, %v6000
    %v6002 = vcombine.low %v5395, %v5378
    %v6003 = vcombine.low %v5392, %v5394
    %v6004 = vcombine.low %v5396, %v5420
    %v6005 = vcombine.low %v5434, %v5442
    %v6007 = vunpack.c.l.s4 1966171168
    %v6008 = vunpack.c.0.s8 %v6007
    %v6009 = vlaneseq
    %v6010 = vshrl.u32 %v6009, 7
    %v6011 = vsub.s32 %v6008, %v6010
    %v6012 = vrot.slane %v6002, %v6011
    %v6014 = vunpack.c.l.s4 1966171168
    %v6015 = vunpack.c.0.s8 %v6014
    %v6016 = vlaneseq
    %v6017 = vshrl.u32 %v6016, 7
    %v6018 = vsub.s32 %v6015, %v6017
    %v6019 = vrot.slane %v6003, %v6018
    %v6021 = vunpack.c.l.s4 1966171168
    %v6022 = vunpack.c.0.s8 %v6021
    %v6023 = vlaneseq
    %v6024 = vshrl.u32 %v6023, 7
    %v6025 = vsub.s32 %v6022, %v6024
    %v6026 = vrot.slane %v6004, %v6025
    %v6028 = vunpack.c.l.s4 1966171168
    %v6029 = vunpack.c.0.s8 %v6028
    %v6030 = vlaneseq
    %v6031 = vshrl.u32 %v6030, 7
    %v6032 = vsub.s32 %v6029, %v6031
    %v6033 = vrot.slane %v6005, %v6032
    %v6034 = vcombine.low %v6012, %v6019
    %v6035 = vcombine.low %v6026, %v6033
    %v6037 = vunpack.c.l.s4 1966171168
    %v6038 = vunpack.c.0.s8 %v6037
    %v6039 = vlaneseq
    %v6040 = vshrl.u32 %v6039, 7
    %v6041 = vsub.s32 %v6038, %v6040
    %v6042 = vrot.slane %v6034, %v6041
    %v6044 = vunpack.c.l.s4 1966171168
    %v6045 = vunpack.c.0.s8 %v6044
    %v6046 = vlaneseq
    %v6047 = vshrl.u32 %v6046, 7
    %v6048 = vsub.s32 %v6045, %v6047
    %v6049 = vrot.slane %v6035, %v6048
    %v6050 = vcombine.low %v6042, %v6049
    %v6051 = vcombine.low %v5444, %v5427
    %v6052 = vcombine.low %v5441, %v5443
    %v6053 = vcombine.low %v5445, %v5460
    %v6054 = vcombine.low %v5467, %v5468
    %v6056 = vunpack.c.l.s4 1966171168
    %v6057 = vunpack.c.0.s8 %v6056
    %v6058 = vlaneseq
    %v6059 = vshrl.u32 %v6058, 7
    %v6060 = vsub.s32 %v6057, %v6059
    %v6061 = vrot.slane %v6051, %v6060
    %v6063 = vunpack.c.l.s4 1966171168
    %v6064 = vunpack.c.0.s8 %v6063
    %v6065 = vlaneseq
    %v6066 = vshrl.u32 %v6065, 7
    %v6067 = vsub.s32 %v6064, %v6066
    %v6068 = vrot.slane %v6052, %v6067
    %v6070 = vunpack.c.l.s4 1966171168
    %v6071 = vunpack.c.0.s8 %v6070
    %v6072 = vlaneseq
    %v6073 = vshrl.u32 %v6072, 7
    %v6074 = vsub.s32 %v6071, %v6073
    %v6075 = vrot.slane %v6053, %v6074
    %v6077 = vunpack.c.l.s4 1966171168
    %v6078 = vunpack.c.0.s8 %v6077
    %v6079 = vlaneseq
    %v6080 = vshrl.u32 %v6079, 7
    %v6081 = vsub.s32 %v6078, %v6080
    %v6082 = vrot.slane %v6054, %v6081
    %v6083 = vcombine.low %v6061, %v6068
    %v6084 = vcombine.low %v6075, %v6082
    %v6086 = vunpack.c.l.s4 1966171168
    %v6087 = vunpack.c.0.s8 %v6086
    %v6088 = vlaneseq
    %v6089 = vshrl.u32 %v6088, 7
    %v6090 = vsub.s32 %v6087, %v6089
    %v6091 = vrot.slane %v6083, %v6090
    %v6093 = vunpack.c.l.s4 1966171168
    %v6094 = vunpack.c.0.s8 %v6093
    %v6095 = vlaneseq
    %v6096 = vshrl.u32 %v6095, 7
    %v6097 = vsub.s32 %v6094, %v6096
    %v6098 = vrot.slane %v6084, %v6097
    %v6099 = vcombine.low %v6091, %v6098
    %v6101 = vunpack.c.l.s4 1966171168
    %v6102 = vunpack.c.0.s8 %v6101
    %v6103 = vlaneseq
    %v6104 = vshrl.u32 %v6103, 7
    %v6105 = vsub.s32 %v6102, %v6104
    %v6106 = vrot.slane %v5469, %v6105
    %v6108 = vunpack.c.l.s4 1966171168
    %v6109 = vunpack.c.0.s8 %v6108
    %v6110 = vlaneseq
    %v6111 = vshrl.u32 %v6110, 7
    %v6112 = vsub.s32 %v6109, %v6111
    %v6113 = vrot.slane %v6106, %v6112
    %vm6130 = vcmask 261120
    %v6131 = vsel %vm6130, %v5518, -inf
    %v6132 = vsel %vm6130, %v5567, -inf
    %v6133 = vmax.f32 %v6131, %v6132
    %v6134 = vsel %vm6130, %v5616, -inf
    %v6135 = vmax.f32 %v6133, %v6134
    %vm6136 = vcmask 253952
    %v6137 = vsel %vm6136, %v5630, -inf
    %v6138 = vmax.f32 %v6135, %v6137
    %v6139 = vrot.slane %v6138, 4
    %v6140 = vmax.f32 %v6138, %v6139
    %v6141 = vrot.slane %v6140, 2
    %v6142 = vmax.f32 %v6140, %v6141
    %v6143 = vrot.slane %v6142, 1
    %v6144 = vmax.f32 %v6142, %v6143
    %v6145 = vsel %vm6130, %v5679, -inf
    %v6146 = vsel %vm6130, %v5728, -inf
    %v6147 = vmax.f32 %v6145, %v6146
    %v6148 = vsel %vm6130, %v5777, -inf
    %v6149 = vmax.f32 %v6147, %v6148
    %v6150 = vsel %vm6136, %v5791, -inf
    %v6151 = vmax.f32 %v6149, %v6150
    %v6152 = vrot.slane %v6151, 4
    %v6153 = vmax.f32 %v6151, %v6152
    %v6154 = vrot.slane %v6153, 2
    %v6155 = vmax.f32 %v6153, %v6154
    %v6156 = vrot.slane %v6155, 1
    %v6157 = vmax.f32 %v6155, %v6156
    %v6158 = vsel %vm6130, %v5840, -inf
    %v6159 = vsel %vm6130, %v5889, -inf
    %v6160 = vmax.f32 %v6158, %v6159
    %v6161 = vsel %vm6130, %v5938, -inf
    %v6162 = vmax.f32 %v6160, %v6161
    %v6163 = vsel %vm6136, %v5952, -inf
    %v6164 = vmax.f32 %v6162, %v6163
    %v6165 = vrot.slane %v6164, 4
    %v6166 = vmax.f32 %v6164, %v6165
    %v6167 = vrot.slane %v6166, 2
    %v6168 = vmax.f32 %v6166, %v6167
    %v6169 = vrot.slane %v6168, 1
    %v6170 = vmax.f32 %v6168, %v6169
    %v6171 = vsel %vm6130, %v6001, -inf
    %v6172 = vsel %vm6130, %v6050, -inf
    %v6173 = vmax.f32 %v6171, %v6172
    %v6174 = vsel %vm6130, %v6099, -inf
    %v6175 = vmax.f32 %v6173, %v6174
    %v6176 = vsel %vm6136, %v6113, -inf
    %v6177 = vmax.f32 %v6175, %v6176
    %v6178 = vrot.slane %v6177, 4
    %v6179 = vmax.f32 %v6177, %v6178
    %v6180 = vrot.slane %v6179, 2
    %v6181 = vmax.f32 %v6179, %v6180
    %v6182 = vrot.slane %v6181, 1
    %v6183 = vmax.f32 %v6181, %v6182
    %v6185 = vlaneseq
    %v6186 = vshrl.u32 %v6185, 7
    %v6187 = vsub.s32 0, %v6186
    %v6188 = vrot.slane %v3032, %v6187
    %v6190 = vadd.f32 %v6144, %v6188
    %v6191 = vadd.f32 %v6157, %v6188
    %v6192 = vadd.f32 %v6170, %v6188
    %v6193 = vadd.f32 %v6183, %v6188
    %v6198 = vrot.slane %v3008, 7
    %vm6199 = vcmask 1041409
    %v6200 = vsel %vm6199, %v6198, %v3007
    %v6201 = vrot.slane %v3009, 6
    %vm6202 = vcmask 1042434
    %v6203 = vsel %vm6202, %v6201, %v6200
    %v6204 = vrot.slane %v3010, 5
    %vm6205 = vcmask 1043459
    %v6206 = vsel %vm6205, %v6204, %v6203
    %v6212 = vrot.slane %v6191, 7
    %v6213 = vsel %vm6199, %v6212, %v6190
    %v6214 = vrot.slane %v6192, 6
    %v6215 = vsel %vm6202, %v6214, %v6213
    %v6216 = vrot.slane %v6193, 5
    %v6217 = vsel %vm6205, %v6216, %v6215
    %6218 = vrot.lane.b32.xlu0 %v6217, 16
    %v6219 = vpop.permute.xlu0 %6218
    %v6221 = vsel %vm2947, %v6206, %v6219
    %v6222 = vld [vmem:[%s5] sm:$0xf]
    %v6223 = vld [vmem:[%s5 + $0x4] sm:$0xf]
    %v6224 = vld [vmem:[%s5 + $0x8] sm:$0xf]
    %v6225 = vld [vmem:[%s5 + $0xc] sm:$0xf]
    %v6226 = vld [vmem:[%s5 + $0x10] sm:$0xf]
    %v6227 = vld [vmem:[%s5 + $0x14] sm:$0xf]
    %v6228 = vld [vmem:[%s6] sm:$0x1]
    %v6229 = vpack.c.bf16 %v6221, %v6221
    %v6231 = vlaneseq
    %v6232 = vshrl.u32 %v6231, 7
    %v6233 = vsub.s32 0, %v6232
    %v6234 = vrot.slane %v6228, %v6233
    %v6242 = vunpack.c.l.b16 %v6222
    %v6243 = vunpack.c.l.b16 %v6223
    %v6244 = vunpack.c.l.b16 %v6224
    %v6245 = vunpack.c.l.b16 %v6225
    %v6246 = vunpack.c.l.b16 %v6226
    %v6247 = vunpack.c.l.b16 %v6227
    %v6248 = vpack.c.b16 %v6243, %v6242
    %v6249 = vpack.c.b16 %v6245, %v6244
    %v6250 = vpack.c.b16 %v6247, %v6246
    %vm6254 = vcmask 392192
    %v6256 = vsel %vm6254, %v6229, 0
    %6258 = vmatprep.subr.bf16.mxu0 0
    %6259 = vmatpush1.bf16.msra.mxu0 %v6248
    %6260 = vmatprep.subr.bf16.mxu0 0
    %6261 = vmatpush1.bf16.msra.mxu0 %v6249
    %6262 = vmatprep.subr.bf16.mxu0 0
    %6263 = vmatpush1.bf16.msra.mxu0 %v6250
    %6264 = vmatprep.subr.bf16.mxu0 0
    %6265 = vmatpush1.bf16.msra.mxu0 0
    %6266 = vmatprep.subr.bf16.mxu0 0
    %6267 = vmatpush1.bf16.msra.mxu0 0
    %6268 = vmatprep.subr.bf16.mxu0 0
    %6269 = vmatpush1.bf16.msra.mxu0 0
    %6270 = vmatprep.subr.bf16.mxu0 0
    %6271 = vmatpush1.bf16.msra.mxu0 0
    %6272 = vmatprep.subr.bf16.mxu0 0
    %6273 = vmatpush1.bf16.msra.mxu0 0
    %6274 = vmatprep.subr.bf16.mxu0 0
    %6275 = vmatpush1.bf16.msra.mxu0 0
    %6276 = vmatprep.subr.bf16.mxu0 0
    %6277 = vmatpush1.bf16.msra.mxu0 0
    %6278 = vmatprep.subr.bf16.mxu0 0
    %6279 = vmatpush1.bf16.msra.mxu0 0
    %6280 = vmatprep.subr.bf16.mxu0 0
    %6281 = vmatpush1.bf16.msra.mxu0 0
    %6282 = vmatprep.subr.bf16.mxu0 0
    %6283 = vmatpush1.bf16.msra.mxu0 0
    %6284 = vmatprep.subr.bf16.mxu0 0
    %6285 = vmatpush1.bf16.msra.mxu0 0
    %6286 = vmatprep.subr.bf16.mxu0 0
    %6287 = vmatpush1.bf16.msra.mxu0 0
    %6288 = vmatprep.subr.bf16.mxu0 0
    %6289 = vmatpush1.bf16.msra.mxu0 0
    %6290 = vmatprep.mubr.bf16.mxu0 0
    %6291 = vmatmul.mubr.bf16.gmra.mrb[0].mxu0 %v6256
    %v6292 = vpop.f32.mrb[0].mxu0
    %v6293 = vadd.f32 %v6234, %v6292
    %v6294 = vpop.f32.mrb[0].mxu0
    %v6295 = vpop.f32.mrb[0].mxu0
    %v6296 = vpop.f32.mrb[0].mxu0
    %6297 = vdwg.mxu0
    %v6298 = vld [vmem:[%s7] sm:$0xf]
    %v6299 = vld [vmem:[%s7 + $0x4] sm:$0xf]
    %v6300 = vld [vmem:[%s7 + $0x8] sm:$0xf]
    %v6301 = vld [vmem:[%s7 + $0xc] sm:$0xf]
    %v6302 = vld [vmem:[%s7 + $0x10] sm:$0xf]
    %v6303 = vld [vmem:[%s7 + $0x14] sm:$0xf]
    %v6304 = vld [vmem:[%s7 + $0x18] sm:$0xf]
    %v6305 = vld [vmem:[%s7 + $0x1c] sm:$0xf]
    %v6306 = vld [vmem:[%s7 + $0x20] sm:$0xf]
    %v6307 = vld [vmem:[%s7 + $0x24] sm:$0xf]
    %v6308 = vld [vmem:[%s7 + $0x28] sm:$0xf]
    %v6309 = vld [vmem:[%s7 + $0x2c] sm:$0xf]
    %v6310 = vld [vmem:[%s7 + $0x30] sm:$0xf]
    %v6311 = vld [vmem:[%s7 + $0x34] sm:$0xf]
    %v6312 = vld [vmem:[%s7 + $0x38] sm:$0xf]
    %v6313 = vld [vmem:[%s7 + $0x3c] sm:$0xf]
    %v6314 = vld [vmem:[%s8] sm:$0x1]
    %v6315 = vpack.c.bf16 %v6293, %v6293
    %v6317 = vlaneseq
    %v6318 = vshrl.u32 %v6317, 7
    %v6319 = vsub.s32 0, %v6318
    %v6320 = vrot.slane %v6314, %v6319
    %v6338 = vunpack.c.l.b16 %v6298
    %v6339 = vunpack.c.l.b16 %v6299
    %v6340 = vunpack.c.l.b16 %v6300
    %v6341 = vunpack.c.l.b16 %v6301
    %v6342 = vunpack.c.l.b16 %v6302
    %v6343 = vunpack.c.l.b16 %v6303
    %v6344 = vunpack.c.l.b16 %v6304
    %v6345 = vunpack.c.l.b16 %v6305
    %v6346 = vunpack.c.l.b16 %v6306
    %v6347 = vunpack.c.l.b16 %v6307
    %v6348 = vunpack.c.l.b16 %v6308
    %v6349 = vunpack.c.l.b16 %v6309
    %v6350 = vunpack.c.l.b16 %v6310
    %v6351 = vunpack.c.l.b16 %v6311
    %v6352 = vunpack.c.l.b16 %v6312
    %v6353 = vunpack.c.l.b16 %v6313
    %v6354 = vpack.c.b16 %v6339, %v6338
    %v6355 = vpack.c.b16 %v6341, %v6340
    %v6356 = vpack.c.b16 %v6343, %v6342
    %v6357 = vpack.c.b16 %v6345, %v6344
    %v6358 = vpack.c.b16 %v6347, %v6346
    %v6359 = vpack.c.b16 %v6349, %v6348
    %v6360 = vpack.c.b16 %v6351, %v6350
    %v6361 = vpack.c.b16 %v6353, %v6352
    %6370 = vmatprep.subr.bf16.mxu0 0
    %6371 = vmatpush1.bf16.msra.mxu0 %v6354
    %6372 = vmatprep.subr.bf16.mxu0 0
    %6373 = vmatpush1.bf16.msra.mxu0 %v6355
    %6374 = vmatprep.subr.bf16.mxu0 0
    %6375 = vmatpush1.bf16.msra.mxu0 %v6356
    %6376 = vmatprep.subr.bf16.mxu0 0
    %6377 = vmatpush1.bf16.msra.mxu0 %v6357
    %6378 = vmatprep.subr.bf16.mxu0 0
    %6379 = vmatpush1.bf16.msra.mxu0 %v6358
    %6380 = vmatprep.subr.bf16.mxu0 0
    %6381 = vmatpush1.bf16.msra.mxu0 %v6359
    %6382 = vmatprep.subr.bf16.mxu0 0
    %6383 = vmatpush1.bf16.msra.mxu0 %v6360
    %6384 = vmatprep.subr.bf16.mxu0 0
    %6385 = vmatpush1.bf16.msra.mxu0 %v6361
    %6386 = vmatprep.subr.bf16.mxu0 0
    %6387 = vmatpush1.bf16.msra.mxu0 0
    %6388 = vmatprep.subr.bf16.mxu0 0
    %6389 = vmatpush1.bf16.msra.mxu0 0
    %6390 = vmatprep.subr.bf16.mxu0 0
    %6391 = vmatpush1.bf16.msra.mxu0 0
    %6392 = vmatprep.subr.bf16.mxu0 0
    %6393 = vmatpush1.bf16.msra.mxu0 0
    %6394 = vmatprep.subr.bf16.mxu0 0
    %6395 = vmatpush1.bf16.msra.mxu0 0
    %6396 = vmatprep.subr.bf16.mxu0 0
    %6397 = vmatpush1.bf16.msra.mxu0 0
    %6398 = vmatprep.subr.bf16.mxu0 0
    %6399 = vmatpush1.bf16.msra.mxu0 0
    %6400 = vmatprep.subr.bf16.mxu0 0
    %6401 = vmatpush1.bf16.msra.mxu0 0
    %6402 = vmatprep.mubr.bf16.mxu0 0
    %6403 = vmatmul.mubr.bf16.gmra.mrb[0].mxu0 %v6315
    %v6404 = vpop.f32.mrb[0].mxu0
    %v6405 = vadd.f32 %v6320, %v6404
    %v6406 = vpop.f32.mrb[0].mxu0
    %v6407 = vpop.f32.mrb[0].mxu0
    %v6408 = vpop.f32.mrb[0].mxu0
    %6409 = vdwg.mxu0
    %v6410 = vxor.u32 %v6405, 2147483648
    %v6411 = vmul.f32 %v6410, 1.442695
    %v6412 = vpow.pop %v6411
    %v6413 = vadd.f32 %v6412, 1.0
    %v6414 = vrcp.pop %v6413
    %v6415 = vmul.f32 1.0, %v6414
    %6416 = vst [vmem:[#allocation2] sm:$0xf] %v6415
    // Predicated region
    $region38: #{tpu_custom_call.1} parent=1 // pred_check
      _
    $region39: #{tpu_custom_call.1} parent=1 // pred_check_branch
      %6418 = sbr.rel (0) target = $region41
    $region40: #{tpu_custom_call.1} parent=1 // pred_region
      %s6420 = ssub.s32 64, 64
      %6421 = vsyncadd [#allocation3], %s6420
      %s6423 = sshll.u32 [#allocation2], 4
      %s6424 = int_to_ptr.vmem [resolvable:$true] %s6423
      %6426 = dma.vmem_to_hbm [thread:$0]  %s6424, 64, %s9, [#allocation3]
    $region41: #{tpu_custom_call.1} parent=1 // pred_fallthru
      _
    // Predicated region
    $region42: #{tpu_custom_call.1} parent=1 // pred_check
      _
    $region43: #{tpu_custom_call.1} parent=1 // pred_check_branch
      %6428 = sbr.rel (0) target = $region45
    $region44: #{tpu_custom_call.1} parent=1 // pred_region
      %6429 = dma.done [#allocation3], 64
    $region45: #{tpu_custom_call.1} parent=1 // pred_fallthru
      _
    %6430 = vsyncpa [#allocation3], 1

</llo_original>
